<compile_context>
chip_gen: v5e
topology: v5e:2x2
jax: 0.10.0
libtpu: 0.0.40
codegen_flags: <defaults>
</compile_context>

<pallas_src>
import jax
import jax.numpy as jnp
from jax.experimental import pallas as pl
from jax.experimental.pallas import tpu as pltpu

EPS = 1e-5
# Scoped-VMEM cap: well under v7x's 64 MiB physical VMEM, plenty on v5e/v6e (128 MiB).
VMEM_LIMIT = 48 * 1024 * 1024


def _round_up(x, m):
    return ((x + m - 1) // m) * m


# ---------------------------------------------------------------------------
# Pass 1: conv-as-matmul.  Writes Y once (narrow, bf16) and per-tile partial
# per-channel sum / sum-of-squares (reduced in the wrapper -> exact batch stats).
# Fully "parallel" over M tiles (megacore-shardable on v7x).
# ---------------------------------------------------------------------------
def conv_stats_kernel(p_ref, w_ref, y_ref, sum_ref, ssq_ref):
    """p_ref: (TM, K_pad) bf16, w_ref: (K_pad, C_out) bf16 (resident),
    y_ref: (TM, C_out) bf16, sum_ref/ssq_ref: (1, 1, C_out) f32 per-tile partials."""
    y = jnp.dot(p_ref[...], w_ref[...], preferred_element_type=jnp.float32)  # (TM, C_out) f32
    y_ref[...] = y.astype(y_ref.dtype)                                       # narrow bf16 store

    c = y.shape[-1]
    s = jnp.sum(y, axis=0, keepdims=True)          # (1, C_out) f32
    q = jnp.sum(y * y, axis=0, keepdims=True)      # (1, C_out) f32
    sum_ref[...] = s.reshape(1, 1, c)
    ssq_ref[...] = q.reshape(1, 1, c)


# ---------------------------------------------------------------------------
# Pass 2: folded BN affine (per-channel scale/shift) + ReLU on the narrow bf16 Y.
# ---------------------------------------------------------------------------
def bn_relu_kernel(y_ref, s_ref, t_ref, o_ref):
    y = y_ref[...].astype(jnp.float32)
    o_ref[...] = jnp.maximum(y * s_ref[...] + t_ref[...], 0.0).astype(o_ref.dtype)


def im2col_3d(x_ndhwc, k=3, pad=1):
    """x: (N, D, H, W, C) -> patches (N*D*H*W, k^3*C), inner order (kd, kh, kw, c).
    Done in the input dtype (bf16) so the 27x-inflated buffer is half-width in HBM."""
    N, D, H, W, C = x_ndhwc.shape
    xp = jnp.pad(x_ndhwc, ((0, 0), (pad, pad), (pad, pad), (pad, pad), (0, 0)))
    cols = []
    for kd in range(k):
        for kh in range(k):
            for kw in range(k):
                cols.append(xp[:, kd:kd + D, kh:kh + H, kw:kw + W, :])
    patches = jnp.stack(cols, axis=4)  # (N, D, H, W, k^3, C)
    return patches.reshape(N * D * H * W, k * k * k * C)


def conv_bn_relu_stage(x_ndhwc, w_oikkk, gamma, beta, *, k=3, pad=1, tm=2048,
                       out_dtype=jnp.bfloat16):
    """One (Conv3d + BatchNorm3d(train) + ReLU) stage.
    Conv bias omitted: it cancels exactly under training-mode (batch-statistics) BatchNorm."""
    N, D, H, W, C_in = x_ndhwc.shape
    C_out = w_oikkk.shape[0]
    K = k * k * k * C_in
    K_pad = _round_up(K, 128)
    M = N * D * H * W
    tm = min(tm, _round_up(M, 256))           # don't over-pad tiny problems
    M_pad = _round_up(M, tm)
    num_tiles = M_pad // tm
    grid = (num_tiles,)

    # bf16 BEFORE im2col (padded rows/cols contribute 0 to the matmul and to the BN sums).
    patches = im2col_3d(x_ndhwc.astype(jnp.bfloat16), k=k, pad=pad)     # (M, K) bf16
    patches = jnp.pad(patches, ((0, M_pad - M), (0, K_pad - K)))

    # Weight (C_out, C_in, kd, kh, kw) -> (kd, kh, kw, C_in, C_out) -> (K_pad, C_out) bf16.
    # Lane axis kept at C_out (no 128-padding): 16x fewer HBM bytes on every Y/output stream.
    w_mat = jnp.transpose(w_oikkk, (2, 3, 4, 1, 0)).reshape(K, C_out)
    w_mat = jnp.pad(w_mat, ((0, K_pad - K), (0, 0))).astype(jnp.bfloat16)

    # --- Pass 1: Y = patches @ W (bf16 store) + per-tile partial BN statistics.
    y, part_sum, part_ssq = pl.pallas_call(
        conv_stats_kernel,
        out_shape=(
            jax.ShapeDtypeStruct((M_pad, C_out), jnp.bfloat16),
            jax.ShapeDtypeStruct((num_tiles, 1, C_out), jnp.float32),
            jax.ShapeDtypeStruct((num_tiles, 1, C_out), jnp.float32),
        ),
        grid_spec=pltpu.PrefetchScalarGridSpec(
            num_scalar_prefetch=0,
            grid=grid,
            in_specs=[
                pl.BlockSpec((tm, K_pad), lambda i: (i, 0)),
                pl.BlockSpec((K_pad, C_out), lambda i: (0, 0)),   # weights stay resident
            ],
            out_specs=[
                pl.BlockSpec((tm, C_out), lambda i: (i, 0)),
                pl.BlockSpec((1, 1, C_out), lambda i: (i, 0, 0)),  # per-tile partials
                pl.BlockSpec((1, 1, C_out), lambda i: (i, 0, 0)),
            ],
        ),
        compiler_params=pltpu.CompilerParams(
            dimension_semantics=("parallel",),     # no cross-tile carry -> megacore on v7x
            vmem_limit_bytes=VMEM_LIMIT,
        ),
    )(patches, w_mat)

    # Reduce per-tile partials (exact batch statistics, f32 tree reduction in the wrapper),
    # then fold training-mode BN (biased variance) into per-channel scale/shift.
    col_sum = jnp.sum(part_sum, axis=(0, 1))                      # (C_out,)
    col_ssq = jnp.sum(part_ssq, axis=(0, 1))                      # (C_out,)
    inv_m = jnp.float32(1.0 / M)                                  # true M; padded rows add 0
    mean = col_sum * inv_m
    var = jnp.maximum(col_ssq * inv_m - mean * mean, 0.0)
    scale_v = gamma.astype(jnp.float32) * jax.lax.rsqrt(var + EPS)
    shift_v = beta.astype(jnp.float32) - mean * scale_v
    scale = scale_v.reshape(1, C_out)
    shift = shift_v.reshape(1, C_out)

    # --- Pass 2: out = relu(Y * scale + shift), parallel over M tiles.
    out = pl.pallas_call(
        bn_relu_kernel,
        out_shape=jax.ShapeDtypeStruct((M_pad, C_out), out_dtype),
        grid_spec=pltpu.PrefetchScalarGridSpec(
            num_scalar_prefetch=0,
            grid=grid,
            in_specs=[
                pl.BlockSpec((tm, C_out), lambda i: (i, 0)),
                pl.BlockSpec((1, C_out), lambda i: (0, 0)),
                pl.BlockSpec((1, C_out), lambda i: (0, 0)),
            ],
            out_specs=pl.BlockSpec((tm, C_out), lambda i: (i, 0)),
        ),
        compiler_params=pltpu.CompilerParams(
            dimension_semantics=("parallel",),
            vmem_limit_bytes=VMEM_LIMIT,
        ),
    )(y, scale, shift)

    return out[:M].reshape(N, D, H, W, C_out)


@jax.jit
def conv_block_forward(x_ncdhw, params):
    """ConvBlock.forward (training mode). Input/output are NCDHW like PyTorch."""
    x = jnp.transpose(x_ncdhw, (0, 2, 3, 4, 1))  # NCDHW -> NDHWC
    # Inter-stage activation kept in bf16 (stage 2 casts to bf16 for the MXU anyway).
    x = conv_bn_relu_stage(x, params["w1"], params["g1"], params["beta1"],
                           out_dtype=jnp.bfloat16)
    x = conv_bn_relu_stage(x, params["w2"], params["g2"], params["beta2"],
                           out_dtype=jnp.float32)
    return jnp.transpose(x, (0, 4, 1, 2, 3))     # NDHWC -> NCDHW


def reference_forward(x_ncdhw, params):
    """Pure-JAX f32 reference (lax conv + bias + batch-stats BN + relu) for validation."""
    def stage(x, w, b, g, beta):
        y = jax.lax.conv_general_dilated(
            x, w, window_strides=(1, 1, 1), padding=[(1, 1)] * 3,
            dimension_numbers=("NCDHW", "OIDHW", "NCDHW"),
            preferred_element_type=jnp.float32)
        y = y + b.reshape(1, -1, 1, 1, 1)
        mean = jnp.mean(y, axis=(0, 2, 3, 4), keepdims=True)
        var = jnp.mean(jnp.square(y - mean), axis=(0, 2, 3, 4), keepdims=True)
        y = (y - mean) * jax.lax.rsqrt(var + EPS)
        y = y * g.reshape(1, -1, 1, 1, 1) + beta.reshape(1, -1, 1, 1, 1)
        return jnp.maximum(y, 0.0)

    x = stage(x_ncdhw, params["w1"], params["b1"], params["g1"], params["beta1"])
    x = stage(x, params["w2"], params["b2"], params["g2"], params["beta2"])
    return x


if __name__ == "__main__":
    key = jax.random.PRNGKey(0)
    k_x, k_w1, k_b1, k_w2, k_b2 = jax.random.split(key, 5)

    N, IN_C, OUT_C, D, H, W = 2, 4, 8, 8, 8, 8

    x = jax.random.normal(k_x, (N, IN_C, D, H, W), dtype=jnp.float32)

    # Deterministic parameter init (shapes per nn.Conv3d / nn.BatchNorm3d defaults).
    params = {
        "w1": jax.random.normal(k_w1, (OUT_C, IN_C, 3, 3, 3), jnp.float32) * 0.1,
        "b1": jax.random.normal(k_b1, (OUT_C,), jnp.float32) * 0.1,
        "g1": jnp.ones((OUT_C,), jnp.float32),
        "beta1": jnp.zeros((OUT_C,), jnp.float32),
        "w2": jax.random.normal(k_w2, (OUT_C, OUT_C, 3, 3, 3), jnp.float32) * 0.1,
        "b2": jax.random.normal(k_b2, (OUT_C,), jnp.float32) * 0.1,
        "g2": jnp.ones((OUT_C,), jnp.float32),
        "beta2": jnp.zeros((OUT_C,), jnp.float32),
    }

    out = jax.block_until_ready(conv_block_forward(x, params))
    ref = jax.block_until_ready(reference_forward(x, params))

    assert out.shape == (N, OUT_C, D, H, W), out.shape
    # bf16 MXU operands + bf16 intermediate (Y, inter-stage activation) with f32 accumulation
    # and f32 BN math -> slightly looser tolerance than pure f32.
    assert jnp.allclose(out, ref, rtol=3e-2, atol=3e-2), float(jnp.max(jnp.abs(out - ref)))

    print("KERNEL_OK")
</pallas_src>

<mosaic_0001>
module attributes {stable_mosaic.version = 11 : i64} {
  func.func @conv_stats_kernel(%arg0: i32, %arg1: memref<1024x128xbf16, #tpu.memory_space<vmem>>, %arg2: memref<128x8xbf16, #tpu.memory_space<vmem>>, %arg3: memref<1024x8xbf16, #tpu.memory_space<vmem>>, %arg4: memref<1x1x8xf32, #tpu.memory_space<vmem>>, %arg5: memref<1x1x8xf32, #tpu.memory_space<vmem>>) attributes {dimension_semantics = [#tpu.dimension_semantics<parallel>], iteration_bounds = array<i64: 1>, scalar_prefetch = 0 : i64, scratch_operands = 0 : i64, tpu.core_type = #tpu.core_type<tc>, window_params = [{transform_indices = @transform_0, window_bounds = array<i64: 1024, 128>}, {pipeline_mode = #tpu.pipeline_mode<synchronous>, transform_indices = @transform_1, window_bounds = array<i64: 128, 8>}, {transform_indices = @transform_2, window_bounds = array<i64: 1024, 8>}, {transform_indices = @transform_3, window_bounds = array<i64: 1, 1, 8>}, {transform_indices = @transform_4, window_bounds = array<i64: 1, 1, 8>}]} {
    %c0 = arith.constant 0 : index
    %c0_0 = arith.constant 0 : index
    %0 = vector.load %arg1[%c0, %c0_0] : memref<1024x128xbf16, #tpu.memory_space<vmem>>, vector<1024x128xbf16>
    %c0_1 = arith.constant 0 : index
    %c0_2 = arith.constant 0 : index
    %1 = vector.load %arg2[%c0_1, %c0_2] : memref<128x8xbf16, #tpu.memory_space<vmem>>, vector<128x8xbf16>
    %cst = arith.constant dense<0.000000e+00> : vector<1024x8xf32>
    %2 = tpu.matmul %0, %1, %cst {dimension_numbers = #tpu.dot_dimension_numbers<[1], [0], [0], [1], [0, 0, 1, 1], [], []>} : vector<1024x128xbf16>, vector<128x8xbf16>, vector<1024x8xf32> -> vector<1024x8xf32>
    %3 = arith.truncf %2 : vector<1024x8xf32> to vector<1024x8xbf16>
    %c0_3 = arith.constant 0 : index
    %c0_4 = arith.constant 0 : index
    %4 = vector.load %arg3[%c0_3, %c0_4] : memref<1024x8xbf16, #tpu.memory_space<vmem>>, vector<1024x8xbf16>
    tpu.vector_store %arg3[%c0_3, %c0_4], %3 {strides = array<i32>} : memref<1024x8xbf16, #tpu.memory_space<vmem>>, vector<1024x8xbf16>,
    %cst_5 = arith.constant dense<0.000000e+00> : vector<8xf32>
    %5 = vector.multi_reduction <add>, %2, %cst_5 [0] : vector<1024x8xf32> to vector<8xf32>
    %6 = vector.shape_cast %5 : vector<8xf32> to vector<1x8xf32>
    %7 = arith.mulf %2, %2 : vector<1024x8xf32>
    %cst_6 = arith.constant dense<0.000000e+00> : vector<8xf32>
    %8 = vector.multi_reduction <add>, %7, %cst_6 [0] : vector<1024x8xf32> to vector<8xf32>
    %9 = vector.shape_cast %8 : vector<8xf32> to vector<1x8xf32>
    %10 = vector.shape_cast %6 : vector<1x8xf32> to vector<1x1x8xf32>
    %c0_7 = arith.constant 0 : index
    %c0_8 = arith.constant 0 : index
    %c0_9 = arith.constant 0 : index
    %11 = vector.load %arg4[%c0_7, %c0_8, %c0_9] : memref<1x1x8xf32, #tpu.memory_space<vmem>>, vector<1x1x8xf32>
    tpu.vector_store %arg4[%c0_7, %c0_8, %c0_9], %10 {strides = array<i32>} : memref<1x1x8xf32, #tpu.memory_space<vmem>>, vector<1x1x8xf32>,
    %12 = vector.shape_cast %9 : vector<1x8xf32> to vector<1x1x8xf32>
    %c0_10 = arith.constant 0 : index
    %c0_11 = arith.constant 0 : index
    %c0_12 = arith.constant 0 : index
    %13 = vector.load %arg5[%c0_10, %c0_11, %c0_12] : memref<1x1x8xf32, #tpu.memory_space<vmem>>, vector<1x1x8xf32>
    tpu.vector_store %arg5[%c0_10, %c0_11, %c0_12], %12 {strides = array<i32>} : memref<1x1x8xf32, #tpu.memory_space<vmem>>, vector<1x1x8xf32>,
    return
  }
  func.func @transform_0(%arg0: i32) -> (i32, i32) {
    %c0_i32 = arith.constant 0 : i32
    %c0_i32_0 = arith.constant 0 : i32
    return %arg0, %c0_i32 : i32, i32
  }
  func.func @transform_1(%arg0: i32) -> (i32, i32) {
    %c0_i32 = arith.constant 0 : i32
    %c0_i32_0 = arith.constant 0 : i32
    %c0_i32_1 = arith.constant 0 : i32
    return %c0_i32, %c0_i32_0 : i32, i32
  }
  func.func @transform_2(%arg0: i32) -> (i32, i32) {
    %c0_i32 = arith.constant 0 : i32
    %c0_i32_0 = arith.constant 0 : i32
    return %arg0, %c0_i32 : i32, i32
  }
  func.func @transform_3(%arg0: i32) -> (i32, i32, i32) {
    %c0_i32 = arith.constant 0 : i32
    %c0_i32_0 = arith.constant 0 : i32
    %c0_i32_1 = arith.constant 0 : i32
    return %arg0, %c0_i32, %c0_i32_0 : i32, i32, i32
  }
  func.func @transform_4(%arg0: i32) -> (i32, i32, i32) {
    %c0_i32 = arith.constant 0 : i32
    %c0_i32_0 = arith.constant 0 : i32
    %c0_i32_1 = arith.constant 0 : i32
    return %arg0, %c0_i32, %c0_i32_0 : i32, i32, i32
  }
}

module attributes {stable_mosaic.version = 11 : i64} {
  func.func @bn_relu_kernel(%arg0: i32, %arg1: memref<1024x8xbf16, #tpu.memory_space<vmem>>, %arg2: memref<1x8xf32, #tpu.memory_space<vmem>>, %arg3: memref<1x8xf32, #tpu.memory_space<vmem>>, %arg4: memref<1024x8xbf16, #tpu.memory_space<vmem>>) attributes {dimension_semantics = [#tpu.dimension_semantics<parallel>], iteration_bounds = array<i64: 1>, scalar_prefetch = 0 : i64, scratch_operands = 0 : i64, tpu.core_type = #tpu.core_type<tc>, window_params = [{transform_indices = @transform_0, window_bounds = array<i64: 1024, 8>}, {pipeline_mode = #tpu.pipeline_mode<synchronous>, transform_indices = @transform_1, window_bounds = array<i64: 1, 8>}, {pipeline_mode = #tpu.pipeline_mode<synchronous>, transform_indices = @transform_2, window_bounds = array<i64: 1, 8>}, {transform_indices = @transform_3, window_bounds = array<i64: 1024, 8>}]} {
    %c0 = arith.constant 0 : index
    %c0_0 = arith.constant 0 : index
    %0 = vector.load %arg1[%c0, %c0_0] : memref<1024x8xbf16, #tpu.memory_space<vmem>>, vector<1024x8xbf16>
    %1 = arith.extf %0 : vector<1024x8xbf16> to vector<1024x8xf32>
    %c0_1 = arith.constant 0 : index
    %c0_2 = arith.constant 0 : index
    %2 = vector.load %arg2[%c0_1, %c0_2] : memref<1x8xf32, #tpu.memory_space<vmem>>, vector<1x8xf32>
    %3 = vector.broadcast %2 : vector<1x8xf32> to vector<1024x8xf32>
    %4 = arith.mulf %1, %3 : vector<1024x8xf32>
    %c0_3 = arith.constant 0 : index
    %c0_4 = arith.constant 0 : index
    %5 = vector.load %arg3[%c0_3, %c0_4] : memref<1x8xf32, #tpu.memory_space<vmem>>, vector<1x8xf32>
    %6 = vector.broadcast %5 : vector<1x8xf32> to vector<1024x8xf32>
    %7 = arith.addf %4, %6 : vector<1024x8xf32>
    %cst = arith.constant 0.000000e+00 : f32
    %8 = vector.broadcast %cst : f32 to vector<1024x8xf32>
    %9 = arith.maximumf %7, %8 : vector<1024x8xf32>
    %10 = arith.truncf %9 : vector<1024x8xf32> to vector<1024x8xbf16>
    %c0_5 = arith.constant 0 : index
    %c0_6 = arith.constant 0 : index
    %11 = vector.load %arg4[%c0_5, %c0_6] : memref<1024x8xbf16, #tpu.memory_space<vmem>>, vector<1024x8xbf16>
    tpu.vector_store %arg4[%c0_5, %c0_6], %10 {strides = array<i32>} : memref<1024x8xbf16, #tpu.memory_space<vmem>>, vector<1024x8xbf16>,
    return
  }
  func.func @transform_0(%arg0: i32) -> (i32, i32) {
    %c0_i32 = arith.constant 0 : i32
    %c0_i32_0 = arith.constant 0 : i32
    return %arg0, %c0_i32 : i32, i32
  }
  func.func @transform_1(%arg0: i32) -> (i32, i32) {
    %c0_i32 = arith.constant 0 : i32
    %c0_i32_0 = arith.constant 0 : i32
    %c0_i32_1 = arith.constant 0 : i32
    return %c0_i32, %c0_i32_0 : i32, i32
  }
  func.func @transform_2(%arg0: i32) -> (i32, i32) {
    %c0_i32 = arith.constant 0 : i32
    %c0_i32_0 = arith.constant 0 : i32
    %c0_i32_1 = arith.constant 0 : i32
    return %c0_i32, %c0_i32_0 : i32, i32
  }
  func.func @transform_3(%arg0: i32) -> (i32, i32) {
    %c0_i32 = arith.constant 0 : i32
    %c0_i32_0 = arith.constant 0 : i32
    return %arg0, %c0_i32 : i32, i32
  }
}

module attributes {stable_mosaic.version = 11 : i64} {
  func.func @conv_stats_kernel(%arg0: i32, %arg1: memref<1024x256xbf16, #tpu.memory_space<vmem>>, %arg2: memref<256x8xbf16, #tpu.memory_space<vmem>>, %arg3: memref<1024x8xbf16, #tpu.memory_space<vmem>>, %arg4: memref<1x1x8xf32, #tpu.memory_space<vmem>>, %arg5: memref<1x1x8xf32, #tpu.memory_space<vmem>>) attributes {dimension_semantics = [#tpu.dimension_semantics<parallel>], iteration_bounds = array<i64: 1>, scalar_prefetch = 0 : i64, scratch_operands = 0 : i64, tpu.core_type = #tpu.core_type<tc>, window_params = [{transform_indices = @transform_0, window_bounds = array<i64: 1024, 256>}, {pipeline_mode = #tpu.pipeline_mode<synchronous>, transform_indices = @transform_1, window_bounds = array<i64: 256, 8>}, {transform_indices = @transform_2, window_bounds = array<i64: 1024, 8>}, {transform_indices = @transform_3, window_bounds = array<i64: 1, 1, 8>}, {transform_indices = @transform_4, window_bounds = array<i64: 1, 1, 8>}]} {
    %c0 = arith.constant 0 : index
    %c0_0 = arith.constant 0 : index
    %0 = vector.load %arg1[%c0, %c0_0] : memref<1024x256xbf16, #tpu.memory_space<vmem>>, vector<1024x256xbf16>
    %c0_1 = arith.constant 0 : index
    %c0_2 = arith.constant 0 : index
    %1 = vector.load %arg2[%c0_1, %c0_2] : memref<256x8xbf16, #tpu.memory_space<vmem>>, vector<256x8xbf16>
    %cst = arith.constant dense<0.000000e+00> : vector<1024x8xf32>
    %2 = tpu.matmul %0, %1, %cst {dimension_numbers = #tpu.dot_dimension_numbers<[1], [0], [0], [1], [0, 0, 1, 1], [], []>} : vector<1024x256xbf16>, vector<256x8xbf16>, vector<1024x8xf32> -> vector<1024x8xf32>
    %3 = arith.truncf %2 : vector<1024x8xf32> to vector<1024x8xbf16>
    %c0_3 = arith.constant 0 : index
    %c0_4 = arith.constant 0 : index
    %4 = vector.load %arg3[%c0_3, %c0_4] : memref<1024x8xbf16, #tpu.memory_space<vmem>>, vector<1024x8xbf16>
    tpu.vector_store %arg3[%c0_3, %c0_4], %3 {strides = array<i32>} : memref<1024x8xbf16, #tpu.memory_space<vmem>>, vector<1024x8xbf16>,
    %cst_5 = arith.constant dense<0.000000e+00> : vector<8xf32>
    %5 = vector.multi_reduction <add>, %2, %cst_5 [0] : vector<1024x8xf32> to vector<8xf32>
    %6 = vector.shape_cast %5 : vector<8xf32> to vector<1x8xf32>
    %7 = arith.mulf %2, %2 : vector<1024x8xf32>
    %cst_6 = arith.constant dense<0.000000e+00> : vector<8xf32>
    %8 = vector.multi_reduction <add>, %7, %cst_6 [0] : vector<1024x8xf32> to vector<8xf32>
    %9 = vector.shape_cast %8 : vector<8xf32> to vector<1x8xf32>
    %10 = vector.shape_cast %6 : vector<1x8xf32> to vector<1x1x8xf32>
    %c0_7 = arith.constant 0 : index
    %c0_8 = arith.constant 0 : index
    %c0_9 = arith.constant 0 : index
    %11 = vector.load %arg4[%c0_7, %c0_8, %c0_9] : memref<1x1x8xf32, #tpu.memory_space<vmem>>, vector<1x1x8xf32>
    tpu.vector_store %arg4[%c0_7, %c0_8, %c0_9], %10 {strides = array<i32>} : memref<1x1x8xf32, #tpu.memory_space<vmem>>, vector<1x1x8xf32>,
    %12 = vector.shape_cast %9 : vector<1x8xf32> to vector<1x1x8xf32>
    %c0_10 = arith.constant 0 : index
    %c0_11 = arith.constant 0 : index
    %c0_12 = arith.constant 0 : index
    %13 = vector.load %arg5[%c0_10, %c0_11, %c0_12] : memref<1x1x8xf32, #tpu.memory_space<vmem>>, vector<1x1x8xf32>
    tpu.vector_store %arg5[%c0_10, %c0_11, %c0_12], %12 {strides = array<i32>} : memref<1x1x8xf32, #tpu.memory_space<vmem>>, vector<1x1x8xf32>,
    return
  }
  func.func @transform_0(%arg0: i32) -> (i32, i32) {
    %c0_i32 = arith.constant 0 : i32
    %c0_i32_0 = arith.constant 0 : i32
    return %arg0, %c0_i32 : i32, i32
  }
  func.func @transform_1(%arg0: i32) -> (i32, i32) {
    %c0_i32 = arith.constant 0 : i32
    %c0_i32_0 = arith.constant 0 : i32
    %c0_i32_1 = arith.constant 0 : i32
    return %c0_i32, %c0_i32_0 : i32, i32
  }
  func.func @transform_2(%arg0: i32) -> (i32, i32) {
    %c0_i32 = arith.constant 0 : i32
    %c0_i32_0 = arith.constant 0 : i32
    return %arg0, %c0_i32 : i32, i32
  }
  func.func @transform_3(%arg0: i32) -> (i32, i32, i32) {
    %c0_i32 = arith.constant 0 : i32
    %c0_i32_0 = arith.constant 0 : i32
    %c0_i32_1 = arith.constant 0 : i32
    return %arg0, %c0_i32, %c0_i32_0 : i32, i32, i32
  }
  func.func @transform_4(%arg0: i32) -> (i32, i32, i32) {
    %c0_i32 = arith.constant 0 : i32
    %c0_i32_0 = arith.constant 0 : i32
    %c0_i32_1 = arith.constant 0 : i32
    return %arg0, %c0_i32, %c0_i32_0 : i32, i32, i32
  }
}

module attributes {stable_mosaic.version = 11 : i64} {
  func.func @bn_relu_kernel(%arg0: i32, %arg1: memref<1024x8xbf16, #tpu.memory_space<vmem>>, %arg2: memref<1x8xf32, #tpu.memory_space<vmem>>, %arg3: memref<1x8xf32, #tpu.memory_space<vmem>>, %arg4: memref<1024x8xf32, #tpu.memory_space<vmem>>) attributes {dimension_semantics = [#tpu.dimension_semantics<parallel>], iteration_bounds = array<i64: 1>, scalar_prefetch = 0 : i64, scratch_operands = 0 : i64, tpu.core_type = #tpu.core_type<tc>, window_params = [{transform_indices = @transform_0, window_bounds = array<i64: 1024, 8>}, {pipeline_mode = #tpu.pipeline_mode<synchronous>, transform_indices = @transform_1, window_bounds = array<i64: 1, 8>}, {pipeline_mode = #tpu.pipeline_mode<synchronous>, transform_indices = @transform_2, window_bounds = array<i64: 1, 8>}, {transform_indices = @transform_3, window_bounds = array<i64: 1024, 8>}]} {
    %c0 = arith.constant 0 : index
    %c0_0 = arith.constant 0 : index
    %0 = vector.load %arg1[%c0, %c0_0] : memref<1024x8xbf16, #tpu.memory_space<vmem>>, vector<1024x8xbf16>
    %1 = arith.extf %0 : vector<1024x8xbf16> to vector<1024x8xf32>
    %c0_1 = arith.constant 0 : index
    %c0_2 = arith.constant 0 : index
    %2 = vector.load %arg2[%c0_1, %c0_2] : memref<1x8xf32, #tpu.memory_space<vmem>>, vector<1x8xf32>
    %3 = vector.broadcast %2 : vector<1x8xf32> to vector<1024x8xf32>
    %4 = arith.mulf %1, %3 : vector<1024x8xf32>
    %c0_3 = arith.constant 0 : index
    %c0_4 = arith.constant 0 : index
    %5 = vector.load %arg3[%c0_3, %c0_4] : memref<1x8xf32, #tpu.memory_space<vmem>>, vector<1x8xf32>
    %6 = vector.broadcast %5 : vector<1x8xf32> to vector<1024x8xf32>
    %7 = arith.addf %4, %6 : vector<1024x8xf32>
    %cst = arith.constant 0.000000e+00 : f32
    %8 = vector.broadcast %cst : f32 to vector<1024x8xf32>
    %9 = arith.maximumf %7, %8 : vector<1024x8xf32>
    %c0_5 = arith.constant 0 : index
    %c0_6 = arith.constant 0 : index
    %10 = vector.load %arg4[%c0_5, %c0_6] : memref<1024x8xf32, #tpu.memory_space<vmem>>, vector<1024x8xf32>
    tpu.vector_store %arg4[%c0_5, %c0_6], %9 {strides = array<i32>} : memref<1024x8xf32, #tpu.memory_space<vmem>>, vector<1024x8xf32>,
    return
  }
  func.func @transform_0(%arg0: i32) -> (i32, i32) {
    %c0_i32 = arith.constant 0 : i32
    %c0_i32_0 = arith.constant 0 : i32
    return %arg0, %c0_i32 : i32, i32
  }
  func.func @transform_1(%arg0: i32) -> (i32, i32) {
    %c0_i32 = arith.constant 0 : i32
    %c0_i32_0 = arith.constant 0 : i32
    %c0_i32_1 = arith.constant 0 : i32
    return %c0_i32, %c0_i32_0 : i32, i32
  }
  func.func @transform_2(%arg0: i32) -> (i32, i32) {
    %c0_i32 = arith.constant 0 : i32
    %c0_i32_0 = arith.constant 0 : i32
    %c0_i32_1 = arith.constant 0 : i32
    return %c0_i32, %c0_i32_0 : i32, i32
  }
  func.func @transform_3(%arg0: i32) -> (i32, i32) {
    %c0_i32 = arith.constant 0 : i32
    %c0_i32_0 = arith.constant 0 : i32
    return %arg0, %c0_i32 : i32, i32
  }
}

</mosaic_0001>

<llo_original>
// kernel: conv_block_forward.5
$region0: #{conv_block_forward.5}
  #allocation0 [shape = 'u32[]', space=smem, size = 0x4, offset = 0x4, fixed_abs, tag = 'smem constant byte address 0x4 - core index']
  #allocation1 [shape = 'u32[72,128]{1,0:T(1,128)}', space=vmem, size = 0x9000, scoped, tag = 'internal scratch']
  %s0 = inlined_call_operand.vmem [shape: bf16[1024,8], index: 0, kind: input, shape index: {}]
  %s1 = inlined_call_operand.vmem [shape: f32[1,8], index: 1, kind: input, shape index: {}]
  %s2 = inlined_call_operand.vmem [shape: f32[1,8], index: 2, kind: input, shape index: {}]
  %s3 = inlined_call_operand.vmem [shape: bf16[1024,8], index: 3, kind: output, shape index: {}]
  %s4 = sld [smem:[#allocation0]]
  $region22: #{conv_block_forward.5} parent=0
    _
  %s6 = ssub.s32 1, %s4
  %s7 = scalar_select 0, %s6, %s4
  // Predicated region
  $region2: #{conv_block_forward.5} parent=0 // pred_check
    _
  $region3: #{conv_block_forward.5} parent=0 // pred_check_branch
    %9 = sbr.rel (0) target = $region5
  $region4: #{conv_block_forward.5} parent=0 // pred_region
    _
  $region5: #{conv_block_forward.5} parent=0 // pred_fallthru
    _
  // Predicated region
  $region6: #{conv_block_forward.5} parent=0 // pred_check
    _
  $region7: #{conv_block_forward.5} parent=0 // pred_check_branch
    %11 = sbr.rel (0) target = $region9
  $region8: #{conv_block_forward.5} parent=0 // pred_region
    _
  $region9: #{conv_block_forward.5} parent=0 // pred_fallthru
    _
  // Predicated region
  $region10: #{conv_block_forward.5} parent=0 // pred_check
    _
  $region11: #{conv_block_forward.5} parent=0 // pred_check_branch
    %13 = sbr.rel (0) target = $region13
  $region12: #{conv_block_forward.5} parent=0 // pred_region
    _
  $region13: #{conv_block_forward.5} parent=0 // pred_fallthru
    _
  %v14 = vld [vmem:[%s0] sm:$0xf]
  %v15 = vld [vmem:[%s0 + $0x4] sm:$0xf]
  %v16 = vld [vmem:[%s0 + $0x8] sm:$0xf]
  %v17 = vld [vmem:[%s0 + $0xc] sm:$0xf]
  %v18 = vld [vmem:[%s0 + $0x10] sm:$0xf]
  %v19 = vld [vmem:[%s0 + $0x14] sm:$0xf]
  %v20 = vld [vmem:[%s0 + $0x18] sm:$0xf]
  %v21 = vld [vmem:[%s0 + $0x1c] sm:$0xf]
  %v22 = vld [vmem:[%s0 + $0x20] sm:$0xf]
  %v23 = vld [vmem:[%s0 + $0x24] sm:$0xf]
  %v24 = vld [vmem:[%s0 + $0x28] sm:$0xf]
  %v25 = vld [vmem:[%s0 + $0x2c] sm:$0xf]
  %v26 = vld [vmem:[%s0 + $0x30] sm:$0xf]
  %v27 = vld [vmem:[%s0 + $0x34] sm:$0xf]
  %v28 = vld [vmem:[%s0 + $0x38] sm:$0xf]
  %v29 = vld [vmem:[%s0 + $0x3c] sm:$0xf]
  %v30 = vld [vmem:[%s0 + $0x40] sm:$0xf]
  %v31 = vld [vmem:[%s0 + $0x44] sm:$0xf]
  %v32 = vld [vmem:[%s0 + $0x48] sm:$0xf]
  %v33 = vld [vmem:[%s0 + $0x4c] sm:$0xf]
  %v34 = vld [vmem:[%s0 + $0x50] sm:$0xf]
  %v35 = vld [vmem:[%s0 + $0x54] sm:$0xf]
  %v36 = vld [vmem:[%s0 + $0x58] sm:$0xf]
  %v37 = vld [vmem:[%s0 + $0x5c] sm:$0xf]
  %v38 = vld [vmem:[%s0 + $0x60] sm:$0xf]
  %v39 = vld [vmem:[%s0 + $0x64] sm:$0xf]
  %v40 = vld [vmem:[%s0 + $0x68] sm:$0xf]
  %v41 = vld [vmem:[%s0 + $0x6c] sm:$0xf]
  %v42 = vld [vmem:[%s0 + $0x70] sm:$0xf]
  %v43 = vld [vmem:[%s0 + $0x74] sm:$0xf]
  %v44 = vld [vmem:[%s0 + $0x78] sm:$0xf]
  %v45 = vld [vmem:[%s0 + $0x7c] sm:$0xf]
  %v46 = vld [vmem:[%s0 + $0x80] sm:$0xf]
  %v47 = vld [vmem:[%s0 + $0x84] sm:$0xf]
  %v48 = vld [vmem:[%s0 + $0x88] sm:$0xf]
  %v49 = vld [vmem:[%s0 + $0x8c] sm:$0xf]
  %v50 = vld [vmem:[%s0 + $0x90] sm:$0xf]
  %v51 = vld [vmem:[%s0 + $0x94] sm:$0xf]
  %v52 = vld [vmem:[%s0 + $0x98] sm:$0xf]
  %v53 = vld [vmem:[%s0 + $0x9c] sm:$0xf]
  %v54 = vld [vmem:[%s0 + $0xa0] sm:$0xf]
  %v55 = vld [vmem:[%s0 + $0xa4] sm:$0xf]
  %v56 = vld [vmem:[%s0 + $0xa8] sm:$0xf]
  %v57 = vld [vmem:[%s0 + $0xac] sm:$0xf]
  %v58 = vld [vmem:[%s0 + $0xb0] sm:$0xf]
  %v59 = vld [vmem:[%s0 + $0xb4] sm:$0xf]
  %v60 = vld [vmem:[%s0 + $0xb8] sm:$0xf]
  %v61 = vld [vmem:[%s0 + $0xbc] sm:$0xf]
  %v62 = vld [vmem:[%s0 + $0xc0] sm:$0xf]
  %v63 = vld [vmem:[%s0 + $0xc4] sm:$0xf]
  %v64 = vld [vmem:[%s0 + $0xc8] sm:$0xf]
  %v65 = vld [vmem:[%s0 + $0xcc] sm:$0xf]
  %v66 = vld [vmem:[%s0 + $0xd0] sm:$0xf]
  %v67 = vld [vmem:[%s0 + $0xd4] sm:$0xf]
  %v68 = vld [vmem:[%s0 + $0xd8] sm:$0xf]
  %v69 = vld [vmem:[%s0 + $0xdc] sm:$0xf]
  %v70 = vld [vmem:[%s0 + $0xe0] sm:$0xf]
  %v71 = vld [vmem:[%s0 + $0xe4] sm:$0xf]
  %v72 = vld [vmem:[%s0 + $0xe8] sm:$0xf]
  %v73 = vld [vmem:[%s0 + $0xec] sm:$0xf]
  %v74 = vld [vmem:[%s0 + $0xf0] sm:$0xf]
  %v75 = vld [vmem:[%s0 + $0xf4] sm:$0xf]
  %v76 = vld [vmem:[%s0 + $0xf8] sm:$0xf]
  %v77 = vld [vmem:[%s0 + $0xfc] sm:$0xf]
  %v78 = vld [vmem:[%s0 + $0x100] sm:$0xf]
  %v79 = vld [vmem:[%s0 + $0x104] sm:$0xf]
  %v80 = vld [vmem:[%s0 + $0x108] sm:$0xf]
  %v81 = vld [vmem:[%s0 + $0x10c] sm:$0xf]
  %v82 = vld [vmem:[%s0 + $0x110] sm:$0xf]
  %v83 = vld [vmem:[%s0 + $0x114] sm:$0xf]
  %v84 = vld [vmem:[%s0 + $0x118] sm:$0xf]
  %v85 = vld [vmem:[%s0 + $0x11c] sm:$0xf]
  %v86 = vld [vmem:[%s0 + $0x120] sm:$0xf]
  %v87 = vld [vmem:[%s0 + $0x124] sm:$0xf]
  %v88 = vld [vmem:[%s0 + $0x128] sm:$0xf]
  %v89 = vld [vmem:[%s0 + $0x12c] sm:$0xf]
  %v90 = vld [vmem:[%s0 + $0x130] sm:$0xf]
  %v91 = vld [vmem:[%s0 + $0x134] sm:$0xf]
  %v92 = vld [vmem:[%s0 + $0x138] sm:$0xf]
  %v93 = vld [vmem:[%s0 + $0x13c] sm:$0xf]
  %v94 = vld [vmem:[%s0 + $0x140] sm:$0xf]
  %v95 = vld [vmem:[%s0 + $0x144] sm:$0xf]
  %v96 = vld [vmem:[%s0 + $0x148] sm:$0xf]
  %v97 = vld [vmem:[%s0 + $0x14c] sm:$0xf]
  %v98 = vld [vmem:[%s0 + $0x150] sm:$0xf]
  %v99 = vld [vmem:[%s0 + $0x154] sm:$0xf]
  %v100 = vld [vmem:[%s0 + $0x158] sm:$0xf]
  %v101 = vld [vmem:[%s0 + $0x15c] sm:$0xf]
  %v102 = vld [vmem:[%s0 + $0x160] sm:$0xf]
  %v103 = vld [vmem:[%s0 + $0x164] sm:$0xf]
  %v104 = vld [vmem:[%s0 + $0x168] sm:$0xf]
  %v105 = vld [vmem:[%s0 + $0x16c] sm:$0xf]
  %v106 = vld [vmem:[%s0 + $0x170] sm:$0xf]
  %v107 = vld [vmem:[%s0 + $0x174] sm:$0xf]
  %v108 = vld [vmem:[%s0 + $0x178] sm:$0xf]
  %v109 = vld [vmem:[%s0 + $0x17c] sm:$0xf]
  %v110 = vld [vmem:[%s0 + $0x180] sm:$0xf]
  %v111 = vld [vmem:[%s0 + $0x184] sm:$0xf]
  %v112 = vld [vmem:[%s0 + $0x188] sm:$0xf]
  %v113 = vld [vmem:[%s0 + $0x18c] sm:$0xf]
  %v114 = vld [vmem:[%s0 + $0x190] sm:$0xf]
  %v115 = vld [vmem:[%s0 + $0x194] sm:$0xf]
  %v116 = vld [vmem:[%s0 + $0x198] sm:$0xf]
  %v117 = vld [vmem:[%s0 + $0x19c] sm:$0xf]
  %v118 = vld [vmem:[%s0 + $0x1a0] sm:$0xf]
  %v119 = vld [vmem:[%s0 + $0x1a4] sm:$0xf]
  %v120 = vld [vmem:[%s0 + $0x1a8] sm:$0xf]
  %v121 = vld [vmem:[%s0 + $0x1ac] sm:$0xf]
  %v122 = vld [vmem:[%s0 + $0x1b0] sm:$0xf]
  %v123 = vld [vmem:[%s0 + $0x1b4] sm:$0xf]
  %v124 = vld [vmem:[%s0 + $0x1b8] sm:$0xf]
  %v125 = vld [vmem:[%s0 + $0x1bc] sm:$0xf]
  %v126 = vld [vmem:[%s0 + $0x1c0] sm:$0xf]
  %v127 = vld [vmem:[%s0 + $0x1c4] sm:$0xf]
  %v128 = vld [vmem:[%s0 + $0x1c8] sm:$0xf]
  %v129 = vld [vmem:[%s0 + $0x1cc] sm:$0xf]
  %v130 = vld [vmem:[%s0 + $0x1d0] sm:$0xf]
  %v131 = vld [vmem:[%s0 + $0x1d4] sm:$0xf]
  %v132 = vld [vmem:[%s0 + $0x1d8] sm:$0xf]
  %v133 = vld [vmem:[%s0 + $0x1dc] sm:$0xf]
  %v134 = vld [vmem:[%s0 + $0x1e0] sm:$0xf]
  %v135 = vld [vmem:[%s0 + $0x1e4] sm:$0xf]
  %v136 = vld [vmem:[%s0 + $0x1e8] sm:$0xf]
  %v137 = vld [vmem:[%s0 + $0x1ec] sm:$0xf]
  %v138 = vld [vmem:[%s0 + $0x1f0] sm:$0xf]
  %v139 = vld [vmem:[%s0 + $0x1f4] sm:$0xf]
  %v140 = vld [vmem:[%s0 + $0x1f8] sm:$0xf]
  %v141 = vld [vmem:[%s0 + $0x1fc] sm:$0xf]
  %v142 = vunpack.c.l.bf16 %v14
  %v143 = vunpack.c.l.bf16 %v15
  %v144 = vunpack.c.l.bf16 %v16
  %v145 = vunpack.c.l.bf16 %v17
  %v146 = vunpack.c.l.bf16 %v18
  %v147 = vunpack.c.l.bf16 %v19
  %v148 = vunpack.c.l.bf16 %v20
  %v149 = vunpack.c.l.bf16 %v21
  %v150 = vunpack.c.l.bf16 %v22
  %v151 = vunpack.c.l.bf16 %v23
  %v152 = vunpack.c.l.bf16 %v24
  %v153 = vunpack.c.l.bf16 %v25
  %v154 = vunpack.c.l.bf16 %v26
  %v155 = vunpack.c.l.bf16 %v27
  %v156 = vunpack.c.l.bf16 %v28
  %v157 = vunpack.c.l.bf16 %v29
  %v158 = vunpack.c.l.bf16 %v30
  %v159 = vunpack.c.l.bf16 %v31
  %v160 = vunpack.c.l.bf16 %v32
  %v161 = vunpack.c.l.bf16 %v33
  %v162 = vunpack.c.l.bf16 %v34
  %v163 = vunpack.c.l.bf16 %v35
  %v164 = vunpack.c.l.bf16 %v36
  %v165 = vunpack.c.l.bf16 %v37
  %v166 = vunpack.c.l.bf16 %v38
  %v167 = vunpack.c.l.bf16 %v39
  %v168 = vunpack.c.l.bf16 %v40
  %v169 = vunpack.c.l.bf16 %v41
  %v170 = vunpack.c.l.bf16 %v42
  %v171 = vunpack.c.l.bf16 %v43
  %v172 = vunpack.c.l.bf16 %v44
  %v173 = vunpack.c.l.bf16 %v45
  %v174 = vunpack.c.l.bf16 %v46
  %v175 = vunpack.c.l.bf16 %v47
  %v176 = vunpack.c.l.bf16 %v48
  %v177 = vunpack.c.l.bf16 %v49
  %v178 = vunpack.c.l.bf16 %v50
  %v179 = vunpack.c.l.bf16 %v51
  %v180 = vunpack.c.l.bf16 %v52
  %v181 = vunpack.c.l.bf16 %v53
  %v182 = vunpack.c.l.bf16 %v54
  %v183 = vunpack.c.l.bf16 %v55
  %v184 = vunpack.c.l.bf16 %v56
  %v185 = vunpack.c.l.bf16 %v57
  %v186 = vunpack.c.l.bf16 %v58
  %v187 = vunpack.c.l.bf16 %v59
  %v188 = vunpack.c.l.bf16 %v60
  %v189 = vunpack.c.l.bf16 %v61
  %v190 = vunpack.c.l.bf16 %v62
  %v191 = vunpack.c.l.bf16 %v63
  %v192 = vunpack.c.l.bf16 %v64
  %v193 = vunpack.c.l.bf16 %v65
  %v194 = vunpack.c.l.bf16 %v66
  %v195 = vunpack.c.l.bf16 %v67
  %v196 = vunpack.c.l.bf16 %v68
  %v197 = vunpack.c.l.bf16 %v69
  %v198 = vunpack.c.l.bf16 %v70
  %v199 = vunpack.c.l.bf16 %v71
  %v200 = vunpack.c.l.bf16 %v72
  %v201 = vunpack.c.l.bf16 %v73
  %v202 = vunpack.c.l.bf16 %v74
  %v203 = vunpack.c.l.bf16 %v75
  %v204 = vunpack.c.l.bf16 %v76
  %v205 = vunpack.c.l.bf16 %v77
  %v206 = vunpack.c.l.bf16 %v78
  %v207 = vunpack.c.l.bf16 %v79
  %v208 = vunpack.c.l.bf16 %v80
  %v209 = vunpack.c.l.bf16 %v81
  %v210 = vunpack.c.l.bf16 %v82
  %v211 = vunpack.c.l.bf16 %v83
  %v212 = vunpack.c.l.bf16 %v84
  %v213 = vunpack.c.l.bf16 %v85
  %v214 = vunpack.c.l.bf16 %v86
  %v215 = vunpack.c.l.bf16 %v87
  %v216 = vunpack.c.l.bf16 %v88
  %v217 = vunpack.c.l.bf16 %v89
  %v218 = vunpack.c.l.bf16 %v90
  %v219 = vunpack.c.l.bf16 %v91
  %v220 = vunpack.c.l.bf16 %v92
  %v221 = vunpack.c.l.bf16 %v93
  %v222 = vunpack.c.l.bf16 %v94
  %v223 = vunpack.c.l.bf16 %v95
  %v224 = vunpack.c.l.bf16 %v96
  %v225 = vunpack.c.l.bf16 %v97
  %v226 = vunpack.c.l.bf16 %v98
  %v227 = vunpack.c.l.bf16 %v99
  %v228 = vunpack.c.l.bf16 %v100
  %v229 = vunpack.c.l.bf16 %v101
  %v230 = vunpack.c.l.bf16 %v102
  %v231 = vunpack.c.l.bf16 %v103
  %v232 = vunpack.c.l.bf16 %v104
  %v233 = vunpack.c.l.bf16 %v105
  %v234 = vunpack.c.l.bf16 %v106
  %v235 = vunpack.c.l.bf16 %v107
  %v236 = vunpack.c.l.bf16 %v108
  %v237 = vunpack.c.l.bf16 %v109
  %v238 = vunpack.c.l.bf16 %v110
  %v239 = vunpack.c.l.bf16 %v111
  %v240 = vunpack.c.l.bf16 %v112
  %v241 = vunpack.c.l.bf16 %v113
  %v242 = vunpack.c.l.bf16 %v114
  %v243 = vunpack.c.l.bf16 %v115
  %v244 = vunpack.c.l.bf16 %v116
  %v245 = vunpack.c.l.bf16 %v117
  %v246 = vunpack.c.l.bf16 %v118
  %v247 = vunpack.c.l.bf16 %v119
  %v248 = vunpack.c.l.bf16 %v120
  %v249 = vunpack.c.l.bf16 %v121
  %v250 = vunpack.c.l.bf16 %v122
  %v251 = vunpack.c.l.bf16 %v123
  %v252 = vunpack.c.l.bf16 %v124
  %v253 = vunpack.c.l.bf16 %v125
  %v254 = vunpack.c.l.bf16 %v126
  %v255 = vunpack.c.l.bf16 %v127
  %v256 = vunpack.c.l.bf16 %v128
  %v257 = vunpack.c.l.bf16 %v129
  %v258 = vunpack.c.l.bf16 %v130
  %v259 = vunpack.c.l.bf16 %v131
  %v260 = vunpack.c.l.bf16 %v132
  %v261 = vunpack.c.l.bf16 %v133
  %v262 = vunpack.c.l.bf16 %v134
  %v263 = vunpack.c.l.bf16 %v135
  %v264 = vunpack.c.l.bf16 %v136
  %v265 = vunpack.c.l.bf16 %v137
  %v266 = vunpack.c.l.bf16 %v138
  %v267 = vunpack.c.l.bf16 %v139
  %v268 = vunpack.c.l.bf16 %v140
  %v269 = vunpack.c.l.bf16 %v141
  %v270 = vld [vmem:[%s1] sm:$0x1]
  %v272 = vperm.slane %v270, 0
  %v274 = vmul.f32 %v142, %v272
  %v275 = vmul.f32 %v143, %v272
  %v276 = vmul.f32 %v144, %v272
  %v277 = vmul.f32 %v145, %v272
  %v278 = vmul.f32 %v146, %v272
  %v279 = vmul.f32 %v147, %v272
  %v280 = vmul.f32 %v148, %v272
  %v281 = vmul.f32 %v149, %v272
  %v282 = vmul.f32 %v150, %v272
  %v283 = vmul.f32 %v151, %v272
  %v284 = vmul.f32 %v152, %v272
  %v285 = vmul.f32 %v153, %v272
  %v286 = vmul.f32 %v154, %v272
  %v287 = vmul.f32 %v155, %v272
  %v288 = vmul.f32 %v156, %v272
  %v289 = vmul.f32 %v157, %v272
  %v290 = vmul.f32 %v158, %v272
  %v291 = vmul.f32 %v159, %v272
  %v292 = vmul.f32 %v160, %v272
  %v293 = vmul.f32 %v161, %v272
  %v294 = vmul.f32 %v162, %v272
  %v295 = vmul.f32 %v163, %v272
  %v296 = vmul.f32 %v164, %v272
  %v297 = vmul.f32 %v165, %v272
  %v298 = vmul.f32 %v166, %v272
  %v299 = vmul.f32 %v167, %v272
  %v300 = vmul.f32 %v168, %v272
  %v301 = vmul.f32 %v169, %v272
  %v302 = vmul.f32 %v170, %v272
  %v303 = vmul.f32 %v171, %v272
  %v304 = vmul.f32 %v172, %v272
  %v305 = vmul.f32 %v173, %v272
  %v306 = vmul.f32 %v174, %v272
  %v307 = vmul.f32 %v175, %v272
  %v308 = vmul.f32 %v176, %v272
  %v309 = vmul.f32 %v177, %v272
  %v310 = vmul.f32 %v178, %v272
  %v311 = vmul.f32 %v179, %v272
  %v312 = vmul.f32 %v180, %v272
  %v313 = vmul.f32 %v181, %v272
  %v314 = vmul.f32 %v182, %v272
  %v315 = vmul.f32 %v183, %v272
  %v316 = vmul.f32 %v184, %v272
  %v317 = vmul.f32 %v185, %v272
  %v318 = vmul.f32 %v186, %v272
  %v319 = vmul.f32 %v187, %v272
  %v320 = vmul.f32 %v188, %v272
  %v321 = vmul.f32 %v189, %v272
  %v322 = vmul.f32 %v190, %v272
  %v323 = vmul.f32 %v191, %v272
  %v324 = vmul.f32 %v192, %v272
  %v325 = vmul.f32 %v193, %v272
  %v326 = vmul.f32 %v194, %v272
  %v327 = vmul.f32 %v195, %v272
  %v328 = vmul.f32 %v196, %v272
  %v329 = vmul.f32 %v197, %v272
  %v330 = vmul.f32 %v198, %v272
  %v331 = vmul.f32 %v199, %v272
  %v332 = vmul.f32 %v200, %v272
  %v333 = vmul.f32 %v201, %v272
  %v334 = vmul.f32 %v202, %v272
  %v335 = vmul.f32 %v203, %v272
  %v336 = vmul.f32 %v204, %v272
  %v337 = vmul.f32 %v205, %v272
  %v338 = vmul.f32 %v206, %v272
  %v339 = vmul.f32 %v207, %v272
  %v340 = vmul.f32 %v208, %v272
  %v341 = vmul.f32 %v209, %v272
  %v342 = vmul.f32 %v210, %v272
  %v343 = vmul.f32 %v211, %v272
  %v344 = vmul.f32 %v212, %v272
  %v345 = vmul.f32 %v213, %v272
  %v346 = vmul.f32 %v214, %v272
  %v347 = vmul.f32 %v215, %v272
  %v348 = vmul.f32 %v216, %v272
  %v349 = vmul.f32 %v217, %v272
  %v350 = vmul.f32 %v218, %v272
  %v351 = vmul.f32 %v219, %v272
  %v352 = vmul.f32 %v220, %v272
  %v353 = vmul.f32 %v221, %v272
  %v354 = vmul.f32 %v222, %v272
  %v355 = vmul.f32 %v223, %v272
  %v356 = vmul.f32 %v224, %v272
  %v357 = vmul.f32 %v225, %v272
  %v358 = vmul.f32 %v226, %v272
  %v359 = vmul.f32 %v227, %v272
  %v360 = vmul.f32 %v228, %v272
  %v361 = vmul.f32 %v229, %v272
  %v362 = vmul.f32 %v230, %v272
  %v363 = vmul.f32 %v231, %v272
  %v364 = vmul.f32 %v232, %v272
  %v365 = vmul.f32 %v233, %v272
  %v366 = vmul.f32 %v234, %v272
  %v367 = vmul.f32 %v235, %v272
  %v368 = vmul.f32 %v236, %v272
  %v369 = vmul.f32 %v237, %v272
  %v370 = vmul.f32 %v238, %v272
  %v371 = vmul.f32 %v239, %v272
  %v372 = vmul.f32 %v240, %v272
  %v373 = vmul.f32 %v241, %v272
  %v374 = vmul.f32 %v242, %v272
  %v375 = vmul.f32 %v243, %v272
  %v376 = vmul.f32 %v244, %v272
  %v377 = vmul.f32 %v245, %v272
  %v378 = vmul.f32 %v246, %v272
  %v379 = vmul.f32 %v247, %v272
  %v380 = vmul.f32 %v248, %v272
  %v381 = vmul.f32 %v249, %v272
  %v382 = vmul.f32 %v250, %v272
  %v383 = vmul.f32 %v251, %v272
  %v384 = vmul.f32 %v252, %v272
  %v385 = vmul.f32 %v253, %v272
  %v386 = vmul.f32 %v254, %v272
  %v387 = vmul.f32 %v255, %v272
  %v388 = vmul.f32 %v256, %v272
  %v389 = vmul.f32 %v257, %v272
  %v390 = vmul.f32 %v258, %v272
  %v391 = vmul.f32 %v259, %v272
  %v392 = vmul.f32 %v260, %v272
  %v393 = vmul.f32 %v261, %v272
  %v394 = vmul.f32 %v262, %v272
  %v395 = vmul.f32 %v263, %v272
  %v396 = vmul.f32 %v264, %v272
  %v397 = vmul.f32 %v265, %v272
  %v398 = vmul.f32 %v266, %v272
  %v399 = vmul.f32 %v267, %v272
  %v400 = vmul.f32 %v268, %v272
  %v401 = vmul.f32 %v269, %v272
  %v402 = vld [vmem:[%s2] sm:$0x1]
  %v404 = vperm.slane %v402, 0
  %v406 = vadd.f32 %v274, %v404
  %v407 = vadd.f32 %v275, %v404
  %v408 = vadd.f32 %v276, %v404
  %v409 = vadd.f32 %v277, %v404
  %v410 = vadd.f32 %v278, %v404
  %v411 = vadd.f32 %v279, %v404
  %v412 = vadd.f32 %v280, %v404
  %v413 = vadd.f32 %v281, %v404
  %v414 = vadd.f32 %v282, %v404
  %v415 = vadd.f32 %v283, %v404
  %v416 = vadd.f32 %v284, %v404
  %v417 = vadd.f32 %v285, %v404
  %v418 = vadd.f32 %v286, %v404
  %v419 = vadd.f32 %v287, %v404
  %v420 = vadd.f32 %v288, %v404
  %v421 = vadd.f32 %v289, %v404
  %v422 = vadd.f32 %v290, %v404
  %v423 = vadd.f32 %v291, %v404
  %v424 = vadd.f32 %v292, %v404
  %v425 = vadd.f32 %v293, %v404
  %v426 = vadd.f32 %v294, %v404
  %v427 = vadd.f32 %v295, %v404
  %v428 = vadd.f32 %v296, %v404
  %v429 = vadd.f32 %v297, %v404
  %v430 = vadd.f32 %v298, %v404
  %v431 = vadd.f32 %v299, %v404
  %v432 = vadd.f32 %v300, %v404
  %v433 = vadd.f32 %v301, %v404
  %v434 = vadd.f32 %v302, %v404
  %v435 = vadd.f32 %v303, %v404
  %v436 = vadd.f32 %v304, %v404
  %v437 = vadd.f32 %v305, %v404
  %v438 = vadd.f32 %v306, %v404
  %v439 = vadd.f32 %v307, %v404
  %v440 = vadd.f32 %v308, %v404
  %v441 = vadd.f32 %v309, %v404
  %v442 = vadd.f32 %v310, %v404
  %v443 = vadd.f32 %v311, %v404
  %v444 = vadd.f32 %v312, %v404
  %v445 = vadd.f32 %v313, %v404
  %v446 = vadd.f32 %v314, %v404
  %v447 = vadd.f32 %v315, %v404
  %v448 = vadd.f32 %v316, %v404
  %v449 = vadd.f32 %v317, %v404
  %v450 = vadd.f32 %v318, %v404
  %v451 = vadd.f32 %v319, %v404
  %v452 = vadd.f32 %v320, %v404
  %v453 = vadd.f32 %v321, %v404
  %v454 = vadd.f32 %v322, %v404
  %v455 = vadd.f32 %v323, %v404
  %v456 = vadd.f32 %v324, %v404
  %v457 = vadd.f32 %v325, %v404
  %v458 = vadd.f32 %v326, %v404
  %v459 = vadd.f32 %v327, %v404
  %v460 = vadd.f32 %v328, %v404
  %v461 = vadd.f32 %v329, %v404
  %v462 = vadd.f32 %v330, %v404
  %v463 = vadd.f32 %v331, %v404
  %v464 = vadd.f32 %v332, %v404
  %v465 = vadd.f32 %v333, %v404
  %v466 = vadd.f32 %v334, %v404
  %v467 = vadd.f32 %v335, %v404
  %v468 = vadd.f32 %v336, %v404
  %v469 = vadd.f32 %v337, %v404
  %v470 = vadd.f32 %v338, %v404
  %v471 = vadd.f32 %v339, %v404
  %v472 = vadd.f32 %v340, %v404
  %v473 = vadd.f32 %v341, %v404
  %v474 = vadd.f32 %v342, %v404
  %v475 = vadd.f32 %v343, %v404
  %v476 = vadd.f32 %v344, %v404
  %v477 = vadd.f32 %v345, %v404
  %v478 = vadd.f32 %v346, %v404
  %v479 = vadd.f32 %v347, %v404
  %v480 = vadd.f32 %v348, %v404
  %v481 = vadd.f32 %v349, %v404
  %v482 = vadd.f32 %v350, %v404
  %v483 = vadd.f32 %v351, %v404
  %v484 = vadd.f32 %v352, %v404
  %v485 = vadd.f32 %v353, %v404
  %v486 = vadd.f32 %v354, %v404
  %v487 = vadd.f32 %v355, %v404
  %v488 = vadd.f32 %v356, %v404
  %v489 = vadd.f32 %v357, %v404
  %v490 = vadd.f32 %v358, %v404
  %v491 = vadd.f32 %v359, %v404
  %v492 = vadd.f32 %v360, %v404
  %v493 = vadd.f32 %v361, %v404
  %v494 = vadd.f32 %v362, %v404
  %v495 = vadd.f32 %v363, %v404
  %v496 = vadd.f32 %v364, %v404
  %v497 = vadd.f32 %v365, %v404
  %v498 = vadd.f32 %v366, %v404
  %v499 = vadd.f32 %v367, %v404
  %v500 = vadd.f32 %v368, %v404
  %v501 = vadd.f32 %v369, %v404
  %v502 = vadd.f32 %v370, %v404
  %v503 = vadd.f32 %v371, %v404
  %v504 = vadd.f32 %v372, %v404
  %v505 = vadd.f32 %v373, %v404
  %v506 = vadd.f32 %v374, %v404
  %v507 = vadd.f32 %v375, %v404
  %v508 = vadd.f32 %v376, %v404
  %v509 = vadd.f32 %v377, %v404
  %v510 = vadd.f32 %v378, %v404
  %v511 = vadd.f32 %v379, %v404
  %v512 = vadd.f32 %v380, %v404
  %v513 = vadd.f32 %v381, %v404
  %v514 = vadd.f32 %v382, %v404
  %v515 = vadd.f32 %v383, %v404
  %v516 = vadd.f32 %v384, %v404
  %v517 = vadd.f32 %v385, %v404
  %v518 = vadd.f32 %v386, %v404
  %v519 = vadd.f32 %v387, %v404
  %v520 = vadd.f32 %v388, %v404
  %v521 = vadd.f32 %v389, %v404
  %v522 = vadd.f32 %v390, %v404
  %v523 = vadd.f32 %v391, %v404
  %v524 = vadd.f32 %v392, %v404
  %v525 = vadd.f32 %v393, %v404
  %v526 = vadd.f32 %v394, %v404
  %v527 = vadd.f32 %v395, %v404
  %v528 = vadd.f32 %v396, %v404
  %v529 = vadd.f32 %v397, %v404
  %v530 = vadd.f32 %v398, %v404
  %v531 = vadd.f32 %v399, %v404
  %v532 = vadd.f32 %v400, %v404
  %v533 = vadd.f32 %v401, %v404
  %v534 = vmax.f32 %v406, 0.0
  %v535 = vmax.f32 %v407, 0.0
  %v536 = vmax.f32 %v408, 0.0
  %v537 = vmax.f32 %v409, 0.0
  %v538 = vmax.f32 %v410, 0.0
  %v539 = vmax.f32 %v411, 0.0
  %v540 = vmax.f32 %v412, 0.0
  %v541 = vmax.f32 %v413, 0.0
  %v542 = vmax.f32 %v414, 0.0
  %v543 = vmax.f32 %v415, 0.0
  %v544 = vmax.f32 %v416, 0.0
  %v545 = vmax.f32 %v417, 0.0
  %v546 = vmax.f32 %v418, 0.0
  %v547 = vmax.f32 %v419, 0.0
  %v548 = vmax.f32 %v420, 0.0
  %v549 = vmax.f32 %v421, 0.0
  %v550 = vmax.f32 %v422, 0.0
  %v551 = vmax.f32 %v423, 0.0
  %v552 = vmax.f32 %v424, 0.0
  %v553 = vmax.f32 %v425, 0.0
  %v554 = vmax.f32 %v426, 0.0
  %v555 = vmax.f32 %v427, 0.0
  %v556 = vmax.f32 %v428, 0.0
  %v557 = vmax.f32 %v429, 0.0
  %v558 = vmax.f32 %v430, 0.0
  %v559 = vmax.f32 %v431, 0.0
  %v560 = vmax.f32 %v432, 0.0
  %v561 = vmax.f32 %v433, 0.0
  %v562 = vmax.f32 %v434, 0.0
  %v563 = vmax.f32 %v435, 0.0
  %v564 = vmax.f32 %v436, 0.0
  %v565 = vmax.f32 %v437, 0.0
  %v566 = vmax.f32 %v438, 0.0
  %v567 = vmax.f32 %v439, 0.0
  %v568 = vmax.f32 %v440, 0.0
  %v569 = vmax.f32 %v441, 0.0
  %v570 = vmax.f32 %v442, 0.0
  %v571 = vmax.f32 %v443, 0.0
  %v572 = vmax.f32 %v444, 0.0
  %v573 = vmax.f32 %v445, 0.0
  %v574 = vmax.f32 %v446, 0.0
  %v575 = vmax.f32 %v447, 0.0
  %v576 = vmax.f32 %v448, 0.0
  %v577 = vmax.f32 %v449, 0.0
  %v578 = vmax.f32 %v450, 0.0
  %v579 = vmax.f32 %v451, 0.0
  %v580 = vmax.f32 %v452, 0.0
  %v581 = vmax.f32 %v453, 0.0
  %v582 = vmax.f32 %v454, 0.0
  %v583 = vmax.f32 %v455, 0.0
  %v584 = vmax.f32 %v456, 0.0
  %v585 = vmax.f32 %v457, 0.0
  %v586 = vmax.f32 %v458, 0.0
  %v587 = vmax.f32 %v459, 0.0
  %v588 = vmax.f32 %v460, 0.0
  %v589 = vmax.f32 %v461, 0.0
  %v590 = vmax.f32 %v462, 0.0
  %v591 = vmax.f32 %v463, 0.0
  %v592 = vmax.f32 %v464, 0.0
  %v593 = vmax.f32 %v465, 0.0
  %v594 = vmax.f32 %v466, 0.0
  %v595 = vmax.f32 %v467, 0.0
  %v596 = vmax.f32 %v468, 0.0
  %v597 = vmax.f32 %v469, 0.0
  %v598 = vmax.f32 %v470, 0.0
  %v599 = vmax.f32 %v471, 0.0
  %v600 = vmax.f32 %v472, 0.0
  %v601 = vmax.f32 %v473, 0.0
  %v602 = vmax.f32 %v474, 0.0
  %v603 = vmax.f32 %v475, 0.0
  %v604 = vmax.f32 %v476, 0.0
  %v605 = vmax.f32 %v477, 0.0
  %v606 = vmax.f32 %v478, 0.0
  %v607 = vmax.f32 %v479, 0.0
  %v608 = vmax.f32 %v480, 0.0
  %v609 = vmax.f32 %v481, 0.0
  %v610 = vmax.f32 %v482, 0.0
  %v611 = vmax.f32 %v483, 0.0
  %v612 = vmax.f32 %v484, 0.0
  %v613 = vmax.f32 %v485, 0.0
  %v614 = vmax.f32 %v486, 0.0
  %v615 = vmax.f32 %v487, 0.0
  %v616 = vmax.f32 %v488, 0.0
  %v617 = vmax.f32 %v489, 0.0
  %v618 = vmax.f32 %v490, 0.0
  %v619 = vmax.f32 %v491, 0.0
  %v620 = vmax.f32 %v492, 0.0
  %v621 = vmax.f32 %v493, 0.0
  %v622 = vmax.f32 %v494, 0.0
  %v623 = vmax.f32 %v495, 0.0
  %v624 = vmax.f32 %v496, 0.0
  %v625 = vmax.f32 %v497, 0.0
  %v626 = vmax.f32 %v498, 0.0
  %v627 = vmax.f32 %v499, 0.0
  %v628 = vmax.f32 %v500, 0.0
  %v629 = vmax.f32 %v501, 0.0
  %v630 = vmax.f32 %v502, 0.0
  %v631 = vmax.f32 %v503, 0.0
  %v632 = vmax.f32 %v504, 0.0
  %v633 = vmax.f32 %v505, 0.0
  %v634 = vmax.f32 %v506, 0.0
  %v635 = vmax.f32 %v507, 0.0
  %v636 = vmax.f32 %v508, 0.0
  %v637 = vmax.f32 %v509, 0.0
  %v638 = vmax.f32 %v510, 0.0
  %v639 = vmax.f32 %v511, 0.0
  %v640 = vmax.f32 %v512, 0.0
  %v641 = vmax.f32 %v513, 0.0
  %v642 = vmax.f32 %v514, 0.0
  %v643 = vmax.f32 %v515, 0.0
  %v644 = vmax.f32 %v516, 0.0
  %v645 = vmax.f32 %v517, 0.0
  %v646 = vmax.f32 %v518, 0.0
  %v647 = vmax.f32 %v519, 0.0
  %v648 = vmax.f32 %v520, 0.0
  %v649 = vmax.f32 %v521, 0.0
  %v650 = vmax.f32 %v522, 0.0
  %v651 = vmax.f32 %v523, 0.0
  %v652 = vmax.f32 %v524, 0.0
  %v653 = vmax.f32 %v525, 0.0
  %v654 = vmax.f32 %v526, 0.0
  %v655 = vmax.f32 %v527, 0.0
  %v656 = vmax.f32 %v528, 0.0
  %v657 = vmax.f32 %v529, 0.0
  %v658 = vmax.f32 %v530, 0.0
  %v659 = vmax.f32 %v531, 0.0
  %v660 = vmax.f32 %v532, 0.0
  %v661 = vmax.f32 %v533, 0.0
  %v662 = vpack.c.bf16 %v534, %v534
  %v663 = vpack.c.bf16 %v535, %v535
  %v664 = vpack.c.bf16 %v536, %v536
  %v665 = vpack.c.bf16 %v537, %v537
  %v666 = vpack.c.bf16 %v538, %v538
  %v667 = vpack.c.bf16 %v539, %v539
  %v668 = vpack.c.bf16 %v540, %v540
  %v669 = vpack.c.bf16 %v541, %v541
  %v670 = vpack.c.bf16 %v542, %v542
  %v671 = vpack.c.bf16 %v543, %v543
  %v672 = vpack.c.bf16 %v544, %v544
  %v673 = vpack.c.bf16 %v545, %v545
  %v674 = vpack.c.bf16 %v546, %v546
  %v675 = vpack.c.bf16 %v547, %v547
  %v676 = vpack.c.bf16 %v548, %v548
  %v677 = vpack.c.bf16 %v549, %v549
  %v678 = vpack.c.bf16 %v550, %v550
  %v679 = vpack.c.bf16 %v551, %v551
  %v680 = vpack.c.bf16 %v552, %v552
  %v681 = vpack.c.bf16 %v553, %v553
  %v682 = vpack.c.bf16 %v554, %v554
  %v683 = vpack.c.bf16 %v555, %v555
  %v684 = vpack.c.bf16 %v556, %v556
  %v685 = vpack.c.bf16 %v557, %v557
  %v686 = vpack.c.bf16 %v558, %v558
  %v687 = vpack.c.bf16 %v559, %v559
  %v688 = vpack.c.bf16 %v560, %v560
  %v689 = vpack.c.bf16 %v561, %v561
  %v690 = vpack.c.bf16 %v562, %v562
  %v691 = vpack.c.bf16 %v563, %v563
  %v692 = vpack.c.bf16 %v564, %v564
  %v693 = vpack.c.bf16 %v565, %v565
  %v694 = vpack.c.bf16 %v566, %v566
  %v695 = vpack.c.bf16 %v567, %v567
  %v696 = vpack.c.bf16 %v568, %v568
  %v697 = vpack.c.bf16 %v569, %v569
  %v698 = vpack.c.bf16 %v570, %v570
  %v699 = vpack.c.bf16 %v571, %v571
  %v700 = vpack.c.bf16 %v572, %v572
  %v701 = vpack.c.bf16 %v573, %v573
  %v702 = vpack.c.bf16 %v574, %v574
  %v703 = vpack.c.bf16 %v575, %v575
  %v704 = vpack.c.bf16 %v576, %v576
  %v705 = vpack.c.bf16 %v577, %v577
  %v706 = vpack.c.bf16 %v578, %v578
  %v707 = vpack.c.bf16 %v579, %v579
  %v708 = vpack.c.bf16 %v580, %v580
  %v709 = vpack.c.bf16 %v581, %v581
  %v710 = vpack.c.bf16 %v582, %v582
  %v711 = vpack.c.bf16 %v583, %v583
  %v712 = vpack.c.bf16 %v584, %v584
  %v713 = vpack.c.bf16 %v585, %v585
  %v714 = vpack.c.bf16 %v586, %v586
  %v715 = vpack.c.bf16 %v587, %v587
  %v716 = vpack.c.bf16 %v588, %v588
  %v717 = vpack.c.bf16 %v589, %v589
  %v718 = vpack.c.bf16 %v590, %v590
  %v719 = vpack.c.bf16 %v591, %v591
  %v720 = vpack.c.bf16 %v592, %v592
  %v721 = vpack.c.bf16 %v593, %v593
  %v722 = vpack.c.bf16 %v594, %v594
  %v723 = vpack.c.bf16 %v595, %v595
  %v724 = vpack.c.bf16 %v596, %v596
  %v725 = vpack.c.bf16 %v597, %v597
  %v726 = vpack.c.bf16 %v598, %v598
  %v727 = vpack.c.bf16 %v599, %v599
  %v728 = vpack.c.bf16 %v600, %v600
  %v729 = vpack.c.bf16 %v601, %v601
  %v730 = vpack.c.bf16 %v602, %v602
  %v731 = vpack.c.bf16 %v603, %v603
  %v732 = vpack.c.bf16 %v604, %v604
  %v733 = vpack.c.bf16 %v605, %v605
  %v734 = vpack.c.bf16 %v606, %v606
  %v735 = vpack.c.bf16 %v607, %v607
  %v736 = vpack.c.bf16 %v608, %v608
  %v737 = vpack.c.bf16 %v609, %v609
  %v738 = vpack.c.bf16 %v610, %v610
  %v739 = vpack.c.bf16 %v611, %v611
  %v740 = vpack.c.bf16 %v612, %v612
  %v741 = vpack.c.bf16 %v613, %v613
  %v742 = vpack.c.bf16 %v614, %v614
  %v743 = vpack.c.bf16 %v615, %v615
  %v744 = vpack.c.bf16 %v616, %v616
  %v745 = vpack.c.bf16 %v617, %v617
  %v746 = vpack.c.bf16 %v618, %v618
  %v747 = vpack.c.bf16 %v619, %v619
  %v748 = vpack.c.bf16 %v620, %v620
  %v749 = vpack.c.bf16 %v621, %v621
  %v750 = vpack.c.bf16 %v622, %v622
  %v751 = vpack.c.bf16 %v623, %v623
  %v752 = vpack.c.bf16 %v624, %v624
  %v753 = vpack.c.bf16 %v625, %v625
  %v754 = vpack.c.bf16 %v626, %v626
  %v755 = vpack.c.bf16 %v627, %v627
  %v756 = vpack.c.bf16 %v628, %v628
  %v757 = vpack.c.bf16 %v629, %v629
  %v758 = vpack.c.bf16 %v630, %v630
  %v759 = vpack.c.bf16 %v631, %v631
  %v760 = vpack.c.bf16 %v632, %v632
  %v761 = vpack.c.bf16 %v633, %v633
  %v762 = vpack.c.bf16 %v634, %v634
  %v763 = vpack.c.bf16 %v635, %v635
  %v764 = vpack.c.bf16 %v636, %v636
  %v765 = vpack.c.bf16 %v637, %v637
  %v766 = vpack.c.bf16 %v638, %v638
  %v767 = vpack.c.bf16 %v639, %v639
  %v768 = vpack.c.bf16 %v640, %v640
  %v769 = vpack.c.bf16 %v641, %v641
  %v770 = vpack.c.bf16 %v642, %v642
  %v771 = vpack.c.bf16 %v643, %v643
  %v772 = vpack.c.bf16 %v644, %v644
  %v773 = vpack.c.bf16 %v645, %v645
  %v774 = vpack.c.bf16 %v646, %v646
  %v775 = vpack.c.bf16 %v647, %v647
  %v776 = vpack.c.bf16 %v648, %v648
  %v777 = vpack.c.bf16 %v649, %v649
  %v778 = vpack.c.bf16 %v650, %v650
  %v779 = vpack.c.bf16 %v651, %v651
  %v780 = vpack.c.bf16 %v652, %v652
  %v781 = vpack.c.bf16 %v653, %v653
  %v782 = vpack.c.bf16 %v654, %v654
  %v783 = vpack.c.bf16 %v655, %v655
  %v784 = vpack.c.bf16 %v656, %v656
  %v785 = vpack.c.bf16 %v657, %v657
  %v786 = vpack.c.bf16 %v658, %v658
  %v787 = vpack.c.bf16 %v659, %v659
  %v788 = vpack.c.bf16 %v660, %v660
  %v789 = vpack.c.bf16 %v661, %v661
  %vm790 = vcmask 60416
  %791 = vst.msk [vmem:[%s3] sm:$0xf] %vm790, %v662
  %792 = vst.msk [vmem:[%s3 + $0x4] sm:$0xf] %vm790, %v663
  %793 = vst.msk [vmem:[%s3 + $0x8] sm:$0xf] %vm790, %v664
  %794 = vst.msk [vmem:[%s3 + $0xc] sm:$0xf] %vm790, %v665
  %795 = vst.msk [vmem:[%s3 + $0x10] sm:$0xf] %vm790, %v666
  %796 = vst.msk [vmem:[%s3 + $0x14] sm:$0xf] %vm790, %v667
  %797 = vst.msk [vmem:[%s3 + $0x18] sm:$0xf] %vm790, %v668
  %798 = vst.msk [vmem:[%s3 + $0x1c] sm:$0xf] %vm790, %v669
  %799 = vst.msk [vmem:[%s3 + $0x20] sm:$0xf] %vm790, %v670
  %800 = vst.msk [vmem:[%s3 + $0x24] sm:$0xf] %vm790, %v671
  %801 = vst.msk [vmem:[%s3 + $0x28] sm:$0xf] %vm790, %v672
  %802 = vst.msk [vmem:[%s3 + $0x2c] sm:$0xf] %vm790, %v673
  %803 = vst.msk [vmem:[%s3 + $0x30] sm:$0xf] %vm790, %v674
  %804 = vst.msk [vmem:[%s3 + $0x34] sm:$0xf] %vm790, %v675
  %805 = vst.msk [vmem:[%s3 + $0x38] sm:$0xf] %vm790, %v676
  %806 = vst.msk [vmem:[%s3 + $0x3c] sm:$0xf] %vm790, %v677
  %807 = vst.msk [vmem:[%s3 + $0x40] sm:$0xf] %vm790, %v678
  %808 = vst.msk [vmem:[%s3 + $0x44] sm:$0xf] %vm790, %v679
  %809 = vst.msk [vmem:[%s3 + $0x48] sm:$0xf] %vm790, %v680
  %810 = vst.msk [vmem:[%s3 + $0x4c] sm:$0xf] %vm790, %v681
  %811 = vst.msk [vmem:[%s3 + $0x50] sm:$0xf] %vm790, %v682
  %812 = vst.msk [vmem:[%s3 + $0x54] sm:$0xf] %vm790, %v683
  %813 = vst.msk [vmem:[%s3 + $0x58] sm:$0xf] %vm790, %v684
  %814 = vst.msk [vmem:[%s3 + $0x5c] sm:$0xf] %vm790, %v685
  %815 = vst.msk [vmem:[%s3 + $0x60] sm:$0xf] %vm790, %v686
  %816 = vst.msk [vmem:[%s3 + $0x64] sm:$0xf] %vm790, %v687
  %817 = vst.msk [vmem:[%s3 + $0x68] sm:$0xf] %vm790, %v688
  %818 = vst.msk [vmem:[%s3 + $0x6c] sm:$0xf] %vm790, %v689
  %819 = vst.msk [vmem:[%s3 + $0x70] sm:$0xf] %vm790, %v690
  %820 = vst.msk [vmem:[%s3 + $0x74] sm:$0xf] %vm790, %v691
  %821 = vst.msk [vmem:[%s3 + $0x78] sm:$0xf] %vm790, %v692
  %822 = vst.msk [vmem:[%s3 + $0x7c] sm:$0xf] %vm790, %v693
  %823 = vst.msk [vmem:[%s3 + $0x80] sm:$0xf] %vm790, %v694
  %824 = vst.msk [vmem:[%s3 + $0x84] sm:$0xf] %vm790, %v695
  %825 = vst.msk [vmem:[%s3 + $0x88] sm:$0xf] %vm790, %v696
  %826 = vst.msk [vmem:[%s3 + $0x8c] sm:$0xf] %vm790, %v697
  %827 = vst.msk [vmem:[%s3 + $0x90] sm:$0xf] %vm790, %v698
  %828 = vst.msk [vmem:[%s3 + $0x94] sm:$0xf] %vm790, %v699
  %829 = vst.msk [vmem:[%s3 + $0x98] sm:$0xf] %vm790, %v700
  %830 = vst.msk [vmem:[%s3 + $0x9c] sm:$0xf] %vm790, %v701
  %831 = vst.msk [vmem:[%s3 + $0xa0] sm:$0xf] %vm790, %v702
  %832 = vst.msk [vmem:[%s3 + $0xa4] sm:$0xf] %vm790, %v703
  %833 = vst.msk [vmem:[%s3 + $0xa8] sm:$0xf] %vm790, %v704
  %834 = vst.msk [vmem:[%s3 + $0xac] sm:$0xf] %vm790, %v705
  %835 = vst.msk [vmem:[%s3 + $0xb0] sm:$0xf] %vm790, %v706
  %836 = vst.msk [vmem:[%s3 + $0xb4] sm:$0xf] %vm790, %v707
  %837 = vst.msk [vmem:[%s3 + $0xb8] sm:$0xf] %vm790, %v708
  %838 = vst.msk [vmem:[%s3 + $0xbc] sm:$0xf] %vm790, %v709
  %839 = vst.msk [vmem:[%s3 + $0xc0] sm:$0xf] %vm790, %v710
  %840 = vst.msk [vmem:[%s3 + $0xc4] sm:$0xf] %vm790, %v711
  %841 = vst.msk [vmem:[%s3 + $0xc8] sm:$0xf] %vm790, %v712
  %842 = vst.msk [vmem:[%s3 + $0xcc] sm:$0xf] %vm790, %v713
  %843 = vst.msk [vmem:[%s3 + $0xd0] sm:$0xf] %vm790, %v714
  %844 = vst.msk [vmem:[%s3 + $0xd4] sm:$0xf] %vm790, %v715
  %845 = vst.msk [vmem:[%s3 + $0xd8] sm:$0xf] %vm790, %v716
  %846 = vst.msk [vmem:[%s3 + $0xdc] sm:$0xf] %vm790, %v717
  %847 = vst.msk [vmem:[%s3 + $0xe0] sm:$0xf] %vm790, %v718
  %848 = vst.msk [vmem:[%s3 + $0xe4] sm:$0xf] %vm790, %v719
  %849 = vst.msk [vmem:[%s3 + $0xe8] sm:$0xf] %vm790, %v720
  %850 = vst.msk [vmem:[%s3 + $0xec] sm:$0xf] %vm790, %v721
  %851 = vst.msk [vmem:[%s3 + $0xf0] sm:$0xf] %vm790, %v722
  %852 = vst.msk [vmem:[%s3 + $0xf4] sm:$0xf] %vm790, %v723
  %853 = vst.msk [vmem:[%s3 + $0xf8] sm:$0xf] %vm790, %v724
  %854 = vst.msk [vmem:[%s3 + $0xfc] sm:$0xf] %vm790, %v725
  %855 = vst.msk [vmem:[%s3 + $0x100] sm:$0xf] %vm790, %v726
  %856 = vst.msk [vmem:[%s3 + $0x104] sm:$0xf] %vm790, %v727
  %857 = vst.msk [vmem:[%s3 + $0x108] sm:$0xf] %vm790, %v728
  %858 = vst.msk [vmem:[%s3 + $0x10c] sm:$0xf] %vm790, %v729
  %859 = vst.msk [vmem:[%s3 + $0x110] sm:$0xf] %vm790, %v730
  %860 = vst.msk [vmem:[%s3 + $0x114] sm:$0xf] %vm790, %v731
  %861 = vst.msk [vmem:[%s3 + $0x118] sm:$0xf] %vm790, %v732
  %862 = vst.msk [vmem:[%s3 + $0x11c] sm:$0xf] %vm790, %v733
  %863 = vst.msk [vmem:[%s3 + $0x120] sm:$0xf] %vm790, %v734
  %864 = vst.msk [vmem:[%s3 + $0x124] sm:$0xf] %vm790, %v735
  %865 = vst.msk [vmem:[%s3 + $0x128] sm:$0xf] %vm790, %v736
  %866 = vst.msk [vmem:[%s3 + $0x12c] sm:$0xf] %vm790, %v737
  %867 = vst.msk [vmem:[%s3 + $0x130] sm:$0xf] %vm790, %v738
  %868 = vst.msk [vmem:[%s3 + $0x134] sm:$0xf] %vm790, %v739
  %869 = vst.msk [vmem:[%s3 + $0x138] sm:$0xf] %vm790, %v740
  %870 = vst.msk [vmem:[%s3 + $0x13c] sm:$0xf] %vm790, %v741
  %871 = vst.msk [vmem:[%s3 + $0x140] sm:$0xf] %vm790, %v742
  %872 = vst.msk [vmem:[%s3 + $0x144] sm:$0xf] %vm790, %v743
  %873 = vst.msk [vmem:[%s3 + $0x148] sm:$0xf] %vm790, %v744
  %874 = vst.msk [vmem:[%s3 + $0x14c] sm:$0xf] %vm790, %v745
  %875 = vst.msk [vmem:[%s3 + $0x150] sm:$0xf] %vm790, %v746
  %876 = vst.msk [vmem:[%s3 + $0x154] sm:$0xf] %vm790, %v747
  %877 = vst.msk [vmem:[%s3 + $0x158] sm:$0xf] %vm790, %v748
  %878 = vst.msk [vmem:[%s3 + $0x15c] sm:$0xf] %vm790, %v749
  %879 = vst.msk [vmem:[%s3 + $0x160] sm:$0xf] %vm790, %v750
  %880 = vst.msk [vmem:[%s3 + $0x164] sm:$0xf] %vm790, %v751
  %881 = vst.msk [vmem:[%s3 + $0x168] sm:$0xf] %vm790, %v752
  %882 = vst.msk [vmem:[%s3 + $0x16c] sm:$0xf] %vm790, %v753
  %883 = vst.msk [vmem:[%s3 + $0x170] sm:$0xf] %vm790, %v754
  %884 = vst.msk [vmem:[%s3 + $0x174] sm:$0xf] %vm790, %v755
  %885 = vst.msk [vmem:[%s3 + $0x178] sm:$0xf] %vm790, %v756
  %886 = vst.msk [vmem:[%s3 + $0x17c] sm:$0xf] %vm790, %v757
  %887 = vst.msk [vmem:[%s3 + $0x180] sm:$0xf] %vm790, %v758
  %888 = vst.msk [vmem:[%s3 + $0x184] sm:$0xf] %vm790, %v759
  %889 = vst.msk [vmem:[%s3 + $0x188] sm:$0xf] %vm790, %v760
  %890 = vst.msk [vmem:[%s3 + $0x18c] sm:$0xf] %vm790, %v761
  %891 = vst.msk [vmem:[%s3 + $0x190] sm:$0xf] %vm790, %v762
  %892 = vst.msk [vmem:[%s3 + $0x194] sm:$0xf] %vm790, %v763
  %893 = vst.msk [vmem:[%s3 + $0x198] sm:$0xf] %vm790, %v764
  %894 = vst.msk [vmem:[%s3 + $0x19c] sm:$0xf] %vm790, %v765
  %895 = vst.msk [vmem:[%s3 + $0x1a0] sm:$0xf] %vm790, %v766
  %896 = vst.msk [vmem:[%s3 + $0x1a4] sm:$0xf] %vm790, %v767
  %897 = vst.msk [vmem:[%s3 + $0x1a8] sm:$0xf] %vm790, %v768
  %898 = vst.msk [vmem:[%s3 + $0x1ac] sm:$0xf] %vm790, %v769
  %899 = vst.msk [vmem:[%s3 + $0x1b0] sm:$0xf] %vm790, %v770
  %900 = vst.msk [vmem:[%s3 + $0x1b4] sm:$0xf] %vm790, %v771
  %901 = vst.msk [vmem:[%s3 + $0x1b8] sm:$0xf] %vm790, %v772
  %902 = vst.msk [vmem:[%s3 + $0x1bc] sm:$0xf] %vm790, %v773
  %903 = vst.msk [vmem:[%s3 + $0x1c0] sm:$0xf] %vm790, %v774
  %904 = vst.msk [vmem:[%s3 + $0x1c4] sm:$0xf] %vm790, %v775
  %905 = vst.msk [vmem:[%s3 + $0x1c8] sm:$0xf] %vm790, %v776
  %906 = vst.msk [vmem:[%s3 + $0x1cc] sm:$0xf] %vm790, %v777
  %907 = vst.msk [vmem:[%s3 + $0x1d0] sm:$0xf] %vm790, %v778
  %908 = vst.msk [vmem:[%s3 + $0x1d4] sm:$0xf] %vm790, %v779
  %909 = vst.msk [vmem:[%s3 + $0x1d8] sm:$0xf] %vm790, %v780
  %910 = vst.msk [vmem:[%s3 + $0x1dc] sm:$0xf] %vm790, %v781
  %911 = vst.msk [vmem:[%s3 + $0x1e0] sm:$0xf] %vm790, %v782
  %912 = vst.msk [vmem:[%s3 + $0x1e4] sm:$0xf] %vm790, %v783
  %913 = vst.msk [vmem:[%s3 + $0x1e8] sm:$0xf] %vm790, %v784
  %914 = vst.msk [vmem:[%s3 + $0x1ec] sm:$0xf] %vm790, %v785
  %915 = vst.msk [vmem:[%s3 + $0x1f0] sm:$0xf] %vm790, %v786
  %916 = vst.msk [vmem:[%s3 + $0x1f4] sm:$0xf] %vm790, %v787
  %917 = vst.msk [vmem:[%s3 + $0x1f8] sm:$0xf] %vm790, %v788
  %918 = vst.msk [vmem:[%s3 + $0x1fc] sm:$0xf] %vm790, %v789
  // Predicated region
  $region14: #{conv_block_forward.5} parent=0 // pred_check
    _
  $region15: #{conv_block_forward.5} parent=0 // pred_check_branch
    %920 = sbr.rel (0) target = $region17
  $region16: #{conv_block_forward.5} parent=0 // pred_region
    _
  $region17: #{conv_block_forward.5} parent=0 // pred_fallthru
    _
  // Predicated region
  $region18: #{conv_block_forward.5} parent=0 // pred_check
    _
  $region19: #{conv_block_forward.5} parent=0 // pred_check_branch
    %922 = sbr.rel (0) target = $region21
  $region20: #{conv_block_forward.5} parent=0 // pred_region
    _
  $region21: #{conv_block_forward.5} parent=0 // pred_fallthru
    _

// kernel: conv_block_forward.4
$region0: #{conv_block_forward.4}
  #allocation0 [shape = 'u32[]', space=smem, size = 0x4, offset = 0x4, fixed_abs, tag = 'smem constant byte address 0x4 - core index']
  #allocation1 [shape = 'u32[72,128]{1,0:T(1,128)}', space=vmem, size = 0x9000, scoped, tag = 'internal scratch']
  %s0 = inlined_call_operand.vmem [shape: bf16[1024,128], index: 0, kind: input, shape index: {}]
  %s1 = inlined_call_operand.vmem [shape: bf16[128,8], index: 1, kind: input, shape index: {}]
  %s2 = inlined_call_operand.vmem [shape: bf16[1024,8], index: 2, kind: output, shape index: {0}]
  %s3 = inlined_call_operand.vmem [shape: f32[1,1,8], index: 3, kind: output, shape index: {1}]
  %s4 = inlined_call_operand.vmem [shape: f32[1,1,8], index: 4, kind: output, shape index: {2}]
  %5 = xla_tuple %s2, %s3, %s4
  %s6 = sld [smem:[#allocation0]]
  $region34: #{conv_block_forward.4} parent=0
    _
  %s8 = ssub.s32 1, %s6
  %s9 = scalar_select 0, %s8, %s6
  // Predicated region
  $region2: #{conv_block_forward.4} parent=0 // pred_check
    _
  $region3: #{conv_block_forward.4} parent=0 // pred_check_branch
    %11 = sbr.rel (0) target = $region5
  $region4: #{conv_block_forward.4} parent=0 // pred_region
    _
  $region5: #{conv_block_forward.4} parent=0 // pred_fallthru
    _
  // Predicated region
  $region6: #{conv_block_forward.4} parent=0 // pred_check
    _
  $region7: #{conv_block_forward.4} parent=0 // pred_check_branch
    %13 = sbr.rel (0) target = $region9
  $region8: #{conv_block_forward.4} parent=0 // pred_region
    _
  $region9: #{conv_block_forward.4} parent=0 // pred_fallthru
    _
  %v14 = vld [vmem:[%s0] sm:$0xf]
  %v15 = vld [vmem:[%s0 + $0x4] sm:$0xf]
  %v16 = vld [vmem:[%s0 + $0x8] sm:$0xf]
  %v17 = vld [vmem:[%s0 + $0xc] sm:$0xf]
  %v18 = vld [vmem:[%s0 + $0x10] sm:$0xf]
  %v19 = vld [vmem:[%s0 + $0x14] sm:$0xf]
  %v20 = vld [vmem:[%s0 + $0x18] sm:$0xf]
  %v21 = vld [vmem:[%s0 + $0x1c] sm:$0xf]
  %v22 = vld [vmem:[%s0 + $0x20] sm:$0xf]
  %v23 = vld [vmem:[%s0 + $0x24] sm:$0xf]
  %v24 = vld [vmem:[%s0 + $0x28] sm:$0xf]
  %v25 = vld [vmem:[%s0 + $0x2c] sm:$0xf]
  %v26 = vld [vmem:[%s0 + $0x30] sm:$0xf]
  %v27 = vld [vmem:[%s0 + $0x34] sm:$0xf]
  %v28 = vld [vmem:[%s0 + $0x38] sm:$0xf]
  %v29 = vld [vmem:[%s0 + $0x3c] sm:$0xf]
  %v30 = vld [vmem:[%s0 + $0x40] sm:$0xf]
  %v31 = vld [vmem:[%s0 + $0x44] sm:$0xf]
  %v32 = vld [vmem:[%s0 + $0x48] sm:$0xf]
  %v33 = vld [vmem:[%s0 + $0x4c] sm:$0xf]
  %v34 = vld [vmem:[%s0 + $0x50] sm:$0xf]
  %v35 = vld [vmem:[%s0 + $0x54] sm:$0xf]
  %v36 = vld [vmem:[%s0 + $0x58] sm:$0xf]
  %v37 = vld [vmem:[%s0 + $0x5c] sm:$0xf]
  %v38 = vld [vmem:[%s0 + $0x60] sm:$0xf]
  %v39 = vld [vmem:[%s0 + $0x64] sm:$0xf]
  %v40 = vld [vmem:[%s0 + $0x68] sm:$0xf]
  %v41 = vld [vmem:[%s0 + $0x6c] sm:$0xf]
  %v42 = vld [vmem:[%s0 + $0x70] sm:$0xf]
  %v43 = vld [vmem:[%s0 + $0x74] sm:$0xf]
  %v44 = vld [vmem:[%s0 + $0x78] sm:$0xf]
  %v45 = vld [vmem:[%s0 + $0x7c] sm:$0xf]
  %v46 = vld [vmem:[%s0 + $0x80] sm:$0xf]
  %v47 = vld [vmem:[%s0 + $0x84] sm:$0xf]
  %v48 = vld [vmem:[%s0 + $0x88] sm:$0xf]
  %v49 = vld [vmem:[%s0 + $0x8c] sm:$0xf]
  %v50 = vld [vmem:[%s0 + $0x90] sm:$0xf]
  %v51 = vld [vmem:[%s0 + $0x94] sm:$0xf]
  %v52 = vld [vmem:[%s0 + $0x98] sm:$0xf]
  %v53 = vld [vmem:[%s0 + $0x9c] sm:$0xf]
  %v54 = vld [vmem:[%s0 + $0xa0] sm:$0xf]
  %v55 = vld [vmem:[%s0 + $0xa4] sm:$0xf]
  %v56 = vld [vmem:[%s0 + $0xa8] sm:$0xf]
  %v57 = vld [vmem:[%s0 + $0xac] sm:$0xf]
  %v58 = vld [vmem:[%s0 + $0xb0] sm:$0xf]
  %v59 = vld [vmem:[%s0 + $0xb4] sm:$0xf]
  %v60 = vld [vmem:[%s0 + $0xb8] sm:$0xf]
  %v61 = vld [vmem:[%s0 + $0xbc] sm:$0xf]
  %v62 = vld [vmem:[%s0 + $0xc0] sm:$0xf]
  %v63 = vld [vmem:[%s0 + $0xc4] sm:$0xf]
  %v64 = vld [vmem:[%s0 + $0xc8] sm:$0xf]
  %v65 = vld [vmem:[%s0 + $0xcc] sm:$0xf]
  %v66 = vld [vmem:[%s0 + $0xd0] sm:$0xf]
  %v67 = vld [vmem:[%s0 + $0xd4] sm:$0xf]
  %v68 = vld [vmem:[%s0 + $0xd8] sm:$0xf]
  %v69 = vld [vmem:[%s0 + $0xdc] sm:$0xf]
  %v70 = vld [vmem:[%s0 + $0xe0] sm:$0xf]
  %v71 = vld [vmem:[%s0 + $0xe4] sm:$0xf]
  %v72 = vld [vmem:[%s0 + $0xe8] sm:$0xf]
  %v73 = vld [vmem:[%s0 + $0xec] sm:$0xf]
  %v74 = vld [vmem:[%s0 + $0xf0] sm:$0xf]
  %v75 = vld [vmem:[%s0 + $0xf4] sm:$0xf]
  %v76 = vld [vmem:[%s0 + $0xf8] sm:$0xf]
  %v77 = vld [vmem:[%s0 + $0xfc] sm:$0xf]
  %v78 = vld [vmem:[%s0 + $0x100] sm:$0xf]
  %v79 = vld [vmem:[%s0 + $0x104] sm:$0xf]
  %v80 = vld [vmem:[%s0 + $0x108] sm:$0xf]
  %v81 = vld [vmem:[%s0 + $0x10c] sm:$0xf]
  %v82 = vld [vmem:[%s0 + $0x110] sm:$0xf]
  %v83 = vld [vmem:[%s0 + $0x114] sm:$0xf]
  %v84 = vld [vmem:[%s0 + $0x118] sm:$0xf]
  %v85 = vld [vmem:[%s0 + $0x11c] sm:$0xf]
  %v86 = vld [vmem:[%s0 + $0x120] sm:$0xf]
  %v87 = vld [vmem:[%s0 + $0x124] sm:$0xf]
  %v88 = vld [vmem:[%s0 + $0x128] sm:$0xf]
  %v89 = vld [vmem:[%s0 + $0x12c] sm:$0xf]
  %v90 = vld [vmem:[%s0 + $0x130] sm:$0xf]
  %v91 = vld [vmem:[%s0 + $0x134] sm:$0xf]
  %v92 = vld [vmem:[%s0 + $0x138] sm:$0xf]
  %v93 = vld [vmem:[%s0 + $0x13c] sm:$0xf]
  %v94 = vld [vmem:[%s0 + $0x140] sm:$0xf]
  %v95 = vld [vmem:[%s0 + $0x144] sm:$0xf]
  %v96 = vld [vmem:[%s0 + $0x148] sm:$0xf]
  %v97 = vld [vmem:[%s0 + $0x14c] sm:$0xf]
  %v98 = vld [vmem:[%s0 + $0x150] sm:$0xf]
  %v99 = vld [vmem:[%s0 + $0x154] sm:$0xf]
  %v100 = vld [vmem:[%s0 + $0x158] sm:$0xf]
  %v101 = vld [vmem:[%s0 + $0x15c] sm:$0xf]
  %v102 = vld [vmem:[%s0 + $0x160] sm:$0xf]
  %v103 = vld [vmem:[%s0 + $0x164] sm:$0xf]
  %v104 = vld [vmem:[%s0 + $0x168] sm:$0xf]
  %v105 = vld [vmem:[%s0 + $0x16c] sm:$0xf]
  %v106 = vld [vmem:[%s0 + $0x170] sm:$0xf]
  %v107 = vld [vmem:[%s0 + $0x174] sm:$0xf]
  %v108 = vld [vmem:[%s0 + $0x178] sm:$0xf]
  %v109 = vld [vmem:[%s0 + $0x17c] sm:$0xf]
  %v110 = vld [vmem:[%s0 + $0x180] sm:$0xf]
  %v111 = vld [vmem:[%s0 + $0x184] sm:$0xf]
  %v112 = vld [vmem:[%s0 + $0x188] sm:$0xf]
  %v113 = vld [vmem:[%s0 + $0x18c] sm:$0xf]
  %v114 = vld [vmem:[%s0 + $0x190] sm:$0xf]
  %v115 = vld [vmem:[%s0 + $0x194] sm:$0xf]
  %v116 = vld [vmem:[%s0 + $0x198] sm:$0xf]
  %v117 = vld [vmem:[%s0 + $0x19c] sm:$0xf]
  %v118 = vld [vmem:[%s0 + $0x1a0] sm:$0xf]
  %v119 = vld [vmem:[%s0 + $0x1a4] sm:$0xf]
  %v120 = vld [vmem:[%s0 + $0x1a8] sm:$0xf]
  %v121 = vld [vmem:[%s0 + $0x1ac] sm:$0xf]
  %v122 = vld [vmem:[%s0 + $0x1b0] sm:$0xf]
  %v123 = vld [vmem:[%s0 + $0x1b4] sm:$0xf]
  %v124 = vld [vmem:[%s0 + $0x1b8] sm:$0xf]
  %v125 = vld [vmem:[%s0 + $0x1bc] sm:$0xf]
  %v126 = vld [vmem:[%s0 + $0x1c0] sm:$0xf]
  %v127 = vld [vmem:[%s0 + $0x1c4] sm:$0xf]
  %v128 = vld [vmem:[%s0 + $0x1c8] sm:$0xf]
  %v129 = vld [vmem:[%s0 + $0x1cc] sm:$0xf]
  %v130 = vld [vmem:[%s0 + $0x1d0] sm:$0xf]
  %v131 = vld [vmem:[%s0 + $0x1d4] sm:$0xf]
  %v132 = vld [vmem:[%s0 + $0x1d8] sm:$0xf]
  %v133 = vld [vmem:[%s0 + $0x1dc] sm:$0xf]
  %v134 = vld [vmem:[%s0 + $0x1e0] sm:$0xf]
  %v135 = vld [vmem:[%s0 + $0x1e4] sm:$0xf]
  %v136 = vld [vmem:[%s0 + $0x1e8] sm:$0xf]
  %v137 = vld [vmem:[%s0 + $0x1ec] sm:$0xf]
  %v138 = vld [vmem:[%s0 + $0x1f0] sm:$0xf]
  %v139 = vld [vmem:[%s0 + $0x1f4] sm:$0xf]
  %v140 = vld [vmem:[%s0 + $0x1f8] sm:$0xf]
  %v141 = vld [vmem:[%s0 + $0x1fc] sm:$0xf]
  %v142 = vld [vmem:[%s1] sm:$0xf]
  %v143 = vld [vmem:[%s1 + $0x4] sm:$0xf]
  %v144 = vld [vmem:[%s1 + $0x8] sm:$0xf]
  %v145 = vld [vmem:[%s1 + $0xc] sm:$0xf]
  %v146 = vld [vmem:[%s1 + $0x10] sm:$0xf]
  %v147 = vld [vmem:[%s1 + $0x14] sm:$0xf]
  %v148 = vld [vmem:[%s1 + $0x18] sm:$0xf]
  %v149 = vld [vmem:[%s1 + $0x1c] sm:$0xf]
  %v150 = vld [vmem:[%s1 + $0x20] sm:$0xf]
  %v151 = vld [vmem:[%s1 + $0x24] sm:$0xf]
  %v152 = vld [vmem:[%s1 + $0x28] sm:$0xf]
  %v153 = vld [vmem:[%s1 + $0x2c] sm:$0xf]
  %v154 = vld [vmem:[%s1 + $0x30] sm:$0xf]
  %v155 = vld [vmem:[%s1 + $0x34] sm:$0xf]
  %v156 = vld [vmem:[%s1 + $0x38] sm:$0xf]
  %v157 = vld [vmem:[%s1 + $0x3c] sm:$0xf]
  %v286 = vunpack.c.l.b16 %v14
  %v287 = vunpack.c.l.b16 %v15
  %v288 = vunpack.c.l.b16 %v16
  %v289 = vunpack.c.l.b16 %v17
  %v290 = vunpack.c.l.b16 %v18
  %v291 = vunpack.c.l.b16 %v19
  %v292 = vunpack.c.l.b16 %v20
  %v293 = vunpack.c.l.b16 %v21
  %v294 = vunpack.c.l.b16 %v22
  %v295 = vunpack.c.l.b16 %v23
  %v296 = vunpack.c.l.b16 %v24
  %v297 = vunpack.c.l.b16 %v25
  %v298 = vunpack.c.l.b16 %v26
  %v299 = vunpack.c.l.b16 %v27
  %v300 = vunpack.c.l.b16 %v28
  %v301 = vunpack.c.l.b16 %v29
  %v302 = vunpack.c.l.b16 %v30
  %v303 = vunpack.c.l.b16 %v31
  %v304 = vunpack.c.l.b16 %v32
  %v305 = vunpack.c.l.b16 %v33
  %v306 = vunpack.c.l.b16 %v34
  %v307 = vunpack.c.l.b16 %v35
  %v308 = vunpack.c.l.b16 %v36
  %v309 = vunpack.c.l.b16 %v37
  %v310 = vunpack.c.l.b16 %v38
  %v311 = vunpack.c.l.b16 %v39
  %v312 = vunpack.c.l.b16 %v40
  %v313 = vunpack.c.l.b16 %v41
  %v314 = vunpack.c.l.b16 %v42
  %v315 = vunpack.c.l.b16 %v43
  %v316 = vunpack.c.l.b16 %v44
  %v317 = vunpack.c.l.b16 %v45
  %v318 = vunpack.c.l.b16 %v46
  %v319 = vunpack.c.l.b16 %v47
  %v320 = vunpack.c.l.b16 %v48
  %v321 = vunpack.c.l.b16 %v49
  %v322 = vunpack.c.l.b16 %v50
  %v323 = vunpack.c.l.b16 %v51
  %v324 = vunpack.c.l.b16 %v52
  %v325 = vunpack.c.l.b16 %v53
  %v326 = vunpack.c.l.b16 %v54
  %v327 = vunpack.c.l.b16 %v55
  %v328 = vunpack.c.l.b16 %v56
  %v329 = vunpack.c.l.b16 %v57
  %v330 = vunpack.c.l.b16 %v58
  %v331 = vunpack.c.l.b16 %v59
  %v332 = vunpack.c.l.b16 %v60
  %v333 = vunpack.c.l.b16 %v61
  %v334 = vunpack.c.l.b16 %v62
  %v335 = vunpack.c.l.b16 %v63
  %v336 = vunpack.c.l.b16 %v64
  %v337 = vunpack.c.l.b16 %v65
  %v338 = vunpack.c.l.b16 %v66
  %v339 = vunpack.c.l.b16 %v67
  %v340 = vunpack.c.l.b16 %v68
  %v341 = vunpack.c.l.b16 %v69
  %v342 = vunpack.c.l.b16 %v70
  %v343 = vunpack.c.l.b16 %v71
  %v344 = vunpack.c.l.b16 %v72
  %v345 = vunpack.c.l.b16 %v73
  %v346 = vunpack.c.l.b16 %v74
  %v347 = vunpack.c.l.b16 %v75
  %v348 = vunpack.c.l.b16 %v76
  %v349 = vunpack.c.l.b16 %v77
  %v350 = vunpack.c.l.b16 %v78
  %v351 = vunpack.c.l.b16 %v79
  %v352 = vunpack.c.l.b16 %v80
  %v353 = vunpack.c.l.b16 %v81
  %v354 = vunpack.c.l.b16 %v82
  %v355 = vunpack.c.l.b16 %v83
  %v356 = vunpack.c.l.b16 %v84
  %v357 = vunpack.c.l.b16 %v85
  %v358 = vunpack.c.l.b16 %v86
  %v359 = vunpack.c.l.b16 %v87
  %v360 = vunpack.c.l.b16 %v88
  %v361 = vunpack.c.l.b16 %v89
  %v362 = vunpack.c.l.b16 %v90
  %v363 = vunpack.c.l.b16 %v91
  %v364 = vunpack.c.l.b16 %v92
  %v365 = vunpack.c.l.b16 %v93
  %v366 = vunpack.c.l.b16 %v94
  %v367 = vunpack.c.l.b16 %v95
  %v368 = vunpack.c.l.b16 %v96
  %v369 = vunpack.c.l.b16 %v97
  %v370 = vunpack.c.l.b16 %v98
  %v371 = vunpack.c.l.b16 %v99
  %v372 = vunpack.c.l.b16 %v100
  %v373 = vunpack.c.l.b16 %v101
  %v374 = vunpack.c.l.b16 %v102
  %v375 = vunpack.c.l.b16 %v103
  %v376 = vunpack.c.l.b16 %v104
  %v377 = vunpack.c.l.b16 %v105
  %v378 = vunpack.c.l.b16 %v106
  %v379 = vunpack.c.l.b16 %v107
  %v380 = vunpack.c.l.b16 %v108
  %v381 = vunpack.c.l.b16 %v109
  %v382 = vunpack.c.l.b16 %v110
  %v383 = vunpack.c.l.b16 %v111
  %v384 = vunpack.c.l.b16 %v112
  %v385 = vunpack.c.l.b16 %v113
  %v386 = vunpack.c.l.b16 %v114
  %v387 = vunpack.c.l.b16 %v115
  %v388 = vunpack.c.l.b16 %v116
  %v389 = vunpack.c.l.b16 %v117
  %v390 = vunpack.c.l.b16 %v118
  %v391 = vunpack.c.l.b16 %v119
  %v392 = vunpack.c.l.b16 %v120
  %v393 = vunpack.c.l.b16 %v121
  %v394 = vunpack.c.l.b16 %v122
  %v395 = vunpack.c.l.b16 %v123
  %v396 = vunpack.c.l.b16 %v124
  %v397 = vunpack.c.l.b16 %v125
  %v398 = vunpack.c.l.b16 %v126
  %v399 = vunpack.c.l.b16 %v127
  %v400 = vunpack.c.l.b16 %v128
  %v401 = vunpack.c.l.b16 %v129
  %v402 = vunpack.c.l.b16 %v130
  %v403 = vunpack.c.l.b16 %v131
  %v404 = vunpack.c.l.b16 %v132
  %v405 = vunpack.c.l.b16 %v133
  %v406 = vunpack.c.l.b16 %v134
  %v407 = vunpack.c.l.b16 %v135
  %v408 = vunpack.c.l.b16 %v136
  %v409 = vunpack.c.l.b16 %v137
  %v410 = vunpack.c.l.b16 %v138
  %v411 = vunpack.c.l.b16 %v139
  %v412 = vunpack.c.l.b16 %v140
  %v413 = vunpack.c.l.b16 %v141
  %v414 = vpack.c.b16 %v287, %v286
  %v415 = vpack.c.b16 %v289, %v288
  %v416 = vpack.c.b16 %v291, %v290
  %v417 = vpack.c.b16 %v293, %v292
  %v418 = vpack.c.b16 %v295, %v294
  %v419 = vpack.c.b16 %v297, %v296
  %v420 = vpack.c.b16 %v299, %v298
  %v421 = vpack.c.b16 %v301, %v300
  %v422 = vpack.c.b16 %v303, %v302
  %v423 = vpack.c.b16 %v305, %v304
  %v424 = vpack.c.b16 %v307, %v306
  %v425 = vpack.c.b16 %v309, %v308
  %v426 = vpack.c.b16 %v311, %v310
  %v427 = vpack.c.b16 %v313, %v312
  %v428 = vpack.c.b16 %v315, %v314
  %v429 = vpack.c.b16 %v317, %v316
  %v430 = vpack.c.b16 %v319, %v318
  %v431 = vpack.c.b16 %v321, %v320
  %v432 = vpack.c.b16 %v323, %v322
  %v433 = vpack.c.b16 %v325, %v324
  %v434 = vpack.c.b16 %v327, %v326
  %v435 = vpack.c.b16 %v329, %v328
  %v436 = vpack.c.b16 %v331, %v330
  %v437 = vpack.c.b16 %v333, %v332
  %v438 = vpack.c.b16 %v335, %v334
  %v439 = vpack.c.b16 %v337, %v336
  %v440 = vpack.c.b16 %v339, %v338
  %v441 = vpack.c.b16 %v341, %v340
  %v442 = vpack.c.b16 %v343, %v342
  %v443 = vpack.c.b16 %v345, %v344
  %v444 = vpack.c.b16 %v347, %v346
  %v445 = vpack.c.b16 %v349, %v348
  %v446 = vpack.c.b16 %v351, %v350
  %v447 = vpack.c.b16 %v353, %v352
  %v448 = vpack.c.b16 %v355, %v354
  %v449 = vpack.c.b16 %v357, %v356
  %v450 = vpack.c.b16 %v359, %v358
  %v451 = vpack.c.b16 %v361, %v360
  %v452 = vpack.c.b16 %v363, %v362
  %v453 = vpack.c.b16 %v365, %v364
  %v454 = vpack.c.b16 %v367, %v366
  %v455 = vpack.c.b16 %v369, %v368
  %v456 = vpack.c.b16 %v371, %v370
  %v457 = vpack.c.b16 %v373, %v372
  %v458 = vpack.c.b16 %v375, %v374
  %v459 = vpack.c.b16 %v377, %v376
  %v460 = vpack.c.b16 %v379, %v378
  %v461 = vpack.c.b16 %v381, %v380
  %v462 = vpack.c.b16 %v383, %v382
  %v463 = vpack.c.b16 %v385, %v384
  %v464 = vpack.c.b16 %v387, %v386
  %v465 = vpack.c.b16 %v389, %v388
  %v466 = vpack.c.b16 %v391, %v390
  %v467 = vpack.c.b16 %v393, %v392
  %v468 = vpack.c.b16 %v395, %v394
  %v469 = vpack.c.b16 %v397, %v396
  %v470 = vpack.c.b16 %v399, %v398
  %v471 = vpack.c.b16 %v401, %v400
  %v472 = vpack.c.b16 %v403, %v402
  %v473 = vpack.c.b16 %v405, %v404
  %v474 = vpack.c.b16 %v407, %v406
  %v475 = vpack.c.b16 %v409, %v408
  %v476 = vpack.c.b16 %v411, %v410
  %v477 = vpack.c.b16 %v413, %v412
  %v558 = vunpack.c.l.b16 %v142
  %v559 = vunpack.c.l.b16 %v143
  %v560 = vunpack.c.l.b16 %v144
  %v561 = vunpack.c.l.b16 %v145
  %v562 = vunpack.c.l.b16 %v146
  %v563 = vunpack.c.l.b16 %v147
  %v564 = vunpack.c.l.b16 %v148
  %v565 = vunpack.c.l.b16 %v149
  %v566 = vunpack.c.l.b16 %v150
  %v567 = vunpack.c.l.b16 %v151
  %v568 = vunpack.c.l.b16 %v152
  %v569 = vunpack.c.l.b16 %v153
  %v570 = vunpack.c.l.b16 %v154
  %v571 = vunpack.c.l.b16 %v155
  %v572 = vunpack.c.l.b16 %v156
  %v573 = vunpack.c.l.b16 %v157
  %v574 = vpack.c.b16 %v559, %v558
  %v575 = vpack.c.b16 %v561, %v560
  %v576 = vpack.c.b16 %v563, %v562
  %v577 = vpack.c.b16 %v565, %v564
  %v578 = vpack.c.b16 %v567, %v566
  %v579 = vpack.c.b16 %v569, %v568
  %v580 = vpack.c.b16 %v571, %v570
  %v581 = vpack.c.b16 %v573, %v572
  %590 = vmatpush.bf16.msra.mxu0 %v581
  %591 = vmatpush.bf16.msra.mxu0 %v580
  %592 = vmatpush.bf16.msra.mxu0 %v579
  %593 = vmatpush.bf16.msra.mxu0 %v578
  %594 = vmatpush.bf16.msra.mxu0 %v577
  %595 = vmatpush.bf16.msra.mxu0 %v576
  %596 = vmatpush.bf16.msra.mxu0 %v575
  %597 = vmatpush.bf16.msra.mxu0 %v574
  %598 = vmatmul.bf16.gmra.mxu0 %v414
  %v599 = vpop.f32.mrf.mxu0
  %v600 = vadd.f32 0.0, %v599
  %v601 = vpop.f32.mrf.mxu0
  %v602 = vadd.f32 0.0, %v601
  %603 = vmatmul.bf16.gmra.mxu0 %v415
  %v604 = vpop.f32.mrf.mxu0
  %v605 = vadd.f32 0.0, %v604
  %v606 = vpop.f32.mrf.mxu0
  %v607 = vadd.f32 0.0, %v606
  %608 = vmatmul.bf16.gmra.mxu0 %v416
  %v609 = vpop.f32.mrf.mxu0
  %v610 = vadd.f32 0.0, %v609
  %v611 = vpop.f32.mrf.mxu0
  %v612 = vadd.f32 0.0, %v611
  %613 = vmatmul.bf16.gmra.mxu0 %v417
  %v614 = vpop.f32.mrf.mxu0
  %v615 = vadd.f32 0.0, %v614
  %v616 = vpop.f32.mrf.mxu0
  %v617 = vadd.f32 0.0, %v616
  %618 = vmatmul.bf16.gmra.mxu0 %v418
  %v619 = vpop.f32.mrf.mxu0
  %v620 = vadd.f32 0.0, %v619
  %v621 = vpop.f32.mrf.mxu0
  %v622 = vadd.f32 0.0, %v621
  %623 = vmatmul.bf16.gmra.mxu0 %v419
  %v624 = vpop.f32.mrf.mxu0
  %v625 = vadd.f32 0.0, %v624
  %v626 = vpop.f32.mrf.mxu0
  %v627 = vadd.f32 0.0, %v626
  %628 = vmatmul.bf16.gmra.mxu0 %v420
  %v629 = vpop.f32.mrf.mxu0
  %v630 = vadd.f32 0.0, %v629
  %v631 = vpop.f32.mrf.mxu0
  %v632 = vadd.f32 0.0, %v631
  %633 = vmatmul.bf16.gmra.mxu0 %v421
  %v634 = vpop.f32.mrf.mxu0
  %v635 = vadd.f32 0.0, %v634
  %v636 = vpop.f32.mrf.mxu0
  %v637 = vadd.f32 0.0, %v636
  %638 = vmatmul.bf16.gmra.mxu0 %v422
  %v639 = vpop.f32.mrf.mxu0
  %v640 = vadd.f32 0.0, %v639
  %v641 = vpop.f32.mrf.mxu0
  %v642 = vadd.f32 0.0, %v641
  %643 = vmatmul.bf16.gmra.mxu0 %v423
  %v644 = vpop.f32.mrf.mxu0
  %v645 = vadd.f32 0.0, %v644
  %v646 = vpop.f32.mrf.mxu0
  %v647 = vadd.f32 0.0, %v646
  %648 = vmatmul.bf16.gmra.mxu0 %v424
  %v649 = vpop.f32.mrf.mxu0
  %v650 = vadd.f32 0.0, %v649
  %v651 = vpop.f32.mrf.mxu0
  %v652 = vadd.f32 0.0, %v651
  %653 = vmatmul.bf16.gmra.mxu0 %v425
  %v654 = vpop.f32.mrf.mxu0
  %v655 = vadd.f32 0.0, %v654
  %v656 = vpop.f32.mrf.mxu0
  %v657 = vadd.f32 0.0, %v656
  %658 = vmatmul.bf16.gmra.mxu0 %v426
  %v659 = vpop.f32.mrf.mxu0
  %v660 = vadd.f32 0.0, %v659
  %v661 = vpop.f32.mrf.mxu0
  %v662 = vadd.f32 0.0, %v661
  %663 = vmatmul.bf16.gmra.mxu0 %v427
  %v664 = vpop.f32.mrf.mxu0
  %v665 = vadd.f32 0.0, %v664
  %v666 = vpop.f32.mrf.mxu0
  %v667 = vadd.f32 0.0, %v666
  %668 = vmatmul.bf16.gmra.mxu0 %v428
  %v669 = vpop.f32.mrf.mxu0
  %v670 = vadd.f32 0.0, %v669
  %v671 = vpop.f32.mrf.mxu0
  %v672 = vadd.f32 0.0, %v671
  %673 = vmatmul.bf16.gmra.mxu0 %v429
  %v674 = vpop.f32.mrf.mxu0
  %v675 = vadd.f32 0.0, %v674
  %v676 = vpop.f32.mrf.mxu0
  %v677 = vadd.f32 0.0, %v676
  %678 = vmatmul.bf16.gmra.mxu0 %v430
  %v679 = vpop.f32.mrf.mxu0
  %v680 = vadd.f32 0.0, %v679
  %v681 = vpop.f32.mrf.mxu0
  %v682 = vadd.f32 0.0, %v681
  %683 = vmatmul.bf16.gmra.mxu0 %v431
  %v684 = vpop.f32.mrf.mxu0
  %v685 = vadd.f32 0.0, %v684
  %v686 = vpop.f32.mrf.mxu0
  %v687 = vadd.f32 0.0, %v686
  %688 = vmatmul.bf16.gmra.mxu0 %v432
  %v689 = vpop.f32.mrf.mxu0
  %v690 = vadd.f32 0.0, %v689
  %v691 = vpop.f32.mrf.mxu0
  %v692 = vadd.f32 0.0, %v691
  %693 = vmatmul.bf16.gmra.mxu0 %v433
  %v694 = vpop.f32.mrf.mxu0
  %v695 = vadd.f32 0.0, %v694
  %v696 = vpop.f32.mrf.mxu0
  %v697 = vadd.f32 0.0, %v696
  %698 = vmatmul.bf16.gmra.mxu0 %v434
  %v699 = vpop.f32.mrf.mxu0
  %v700 = vadd.f32 0.0, %v699
  %v701 = vpop.f32.mrf.mxu0
  %v702 = vadd.f32 0.0, %v701
  %703 = vmatmul.bf16.gmra.mxu0 %v435
  %v704 = vpop.f32.mrf.mxu0
  %v705 = vadd.f32 0.0, %v704
  %v706 = vpop.f32.mrf.mxu0
  %v707 = vadd.f32 0.0, %v706
  %708 = vmatmul.bf16.gmra.mxu0 %v436
  %v709 = vpop.f32.mrf.mxu0
  %v710 = vadd.f32 0.0, %v709
  %v711 = vpop.f32.mrf.mxu0
  %v712 = vadd.f32 0.0, %v711
  %713 = vmatmul.bf16.gmra.mxu0 %v437
  %v714 = vpop.f32.mrf.mxu0
  %v715 = vadd.f32 0.0, %v714
  %v716 = vpop.f32.mrf.mxu0
  %v717 = vadd.f32 0.0, %v716
  %718 = vmatmul.bf16.gmra.mxu0 %v438
  %v719 = vpop.f32.mrf.mxu0
  %v720 = vadd.f32 0.0, %v719
  %v721 = vpop.f32.mrf.mxu0
  %v722 = vadd.f32 0.0, %v721
  %723 = vmatmul.bf16.gmra.mxu0 %v439
  %v724 = vpop.f32.mrf.mxu0
  %v725 = vadd.f32 0.0, %v724
  %v726 = vpop.f32.mrf.mxu0
  %v727 = vadd.f32 0.0, %v726
  %728 = vmatmul.bf16.gmra.mxu0 %v440
  %v729 = vpop.f32.mrf.mxu0
  %v730 = vadd.f32 0.0, %v729
  %v731 = vpop.f32.mrf.mxu0
  %v732 = vadd.f32 0.0, %v731
  %733 = vmatmul.bf16.gmra.mxu0 %v441
  %v734 = vpop.f32.mrf.mxu0
  %v735 = vadd.f32 0.0, %v734
  %v736 = vpop.f32.mrf.mxu0
  %v737 = vadd.f32 0.0, %v736
  %738 = vmatmul.bf16.gmra.mxu0 %v442
  %v739 = vpop.f32.mrf.mxu0
  %v740 = vadd.f32 0.0, %v739
  %v741 = vpop.f32.mrf.mxu0
  %v742 = vadd.f32 0.0, %v741
  %743 = vmatmul.bf16.gmra.mxu0 %v443
  %v744 = vpop.f32.mrf.mxu0
  %v745 = vadd.f32 0.0, %v744
  %v746 = vpop.f32.mrf.mxu0
  %v747 = vadd.f32 0.0, %v746
  %748 = vmatmul.bf16.gmra.mxu0 %v444
  %v749 = vpop.f32.mrf.mxu0
  %v750 = vadd.f32 0.0, %v749
  %v751 = vpop.f32.mrf.mxu0
  %v752 = vadd.f32 0.0, %v751
  %753 = vmatmul.bf16.gmra.mxu0 %v445
  %v754 = vpop.f32.mrf.mxu0
  %v755 = vadd.f32 0.0, %v754
  %v756 = vpop.f32.mrf.mxu0
  %v757 = vadd.f32 0.0, %v756
  %758 = vmatmul.bf16.gmra.mxu0 %v446
  %v759 = vpop.f32.mrf.mxu0
  %v760 = vadd.f32 0.0, %v759
  %v761 = vpop.f32.mrf.mxu0
  %v762 = vadd.f32 0.0, %v761
  %763 = vmatmul.bf16.gmra.mxu0 %v447
  %v764 = vpop.f32.mrf.mxu0
  %v765 = vadd.f32 0.0, %v764
  %v766 = vpop.f32.mrf.mxu0
  %v767 = vadd.f32 0.0, %v766
  %768 = vmatmul.bf16.gmra.mxu0 %v448
  %v769 = vpop.f32.mrf.mxu0
  %v770 = vadd.f32 0.0, %v769
  %v771 = vpop.f32.mrf.mxu0
  %v772 = vadd.f32 0.0, %v771
  %773 = vmatmul.bf16.gmra.mxu0 %v449
  %v774 = vpop.f32.mrf.mxu0
  %v775 = vadd.f32 0.0, %v774
  %v776 = vpop.f32.mrf.mxu0
  %v777 = vadd.f32 0.0, %v776
  %778 = vmatmul.bf16.gmra.mxu0 %v450
  %v779 = vpop.f32.mrf.mxu0
  %v780 = vadd.f32 0.0, %v779
  %v781 = vpop.f32.mrf.mxu0
  %v782 = vadd.f32 0.0, %v781
  %783 = vmatmul.bf16.gmra.mxu0 %v451
  %v784 = vpop.f32.mrf.mxu0
  %v785 = vadd.f32 0.0, %v784
  %v786 = vpop.f32.mrf.mxu0
  %v787 = vadd.f32 0.0, %v786
  %788 = vmatmul.bf16.gmra.mxu0 %v452
  %v789 = vpop.f32.mrf.mxu0
  %v790 = vadd.f32 0.0, %v789
  %v791 = vpop.f32.mrf.mxu0
  %v792 = vadd.f32 0.0, %v791
  %793 = vmatmul.bf16.gmra.mxu0 %v453
  %v794 = vpop.f32.mrf.mxu0
  %v795 = vadd.f32 0.0, %v794
  %v796 = vpop.f32.mrf.mxu0
  %v797 = vadd.f32 0.0, %v796
  %798 = vmatmul.bf16.gmra.mxu0 %v454
  %v799 = vpop.f32.mrf.mxu0
  %v800 = vadd.f32 0.0, %v799
  %v801 = vpop.f32.mrf.mxu0
  %v802 = vadd.f32 0.0, %v801
  %803 = vmatmul.bf16.gmra.mxu0 %v455
  %v804 = vpop.f32.mrf.mxu0
  %v805 = vadd.f32 0.0, %v804
  %v806 = vpop.f32.mrf.mxu0
  %v807 = vadd.f32 0.0, %v806
  %808 = vmatmul.bf16.gmra.mxu0 %v456
  %v809 = vpop.f32.mrf.mxu0
  %v810 = vadd.f32 0.0, %v809
  %v811 = vpop.f32.mrf.mxu0
  %v812 = vadd.f32 0.0, %v811
  %813 = vmatmul.bf16.gmra.mxu0 %v457
  %v814 = vpop.f32.mrf.mxu0
  %v815 = vadd.f32 0.0, %v814
  %v816 = vpop.f32.mrf.mxu0
  %v817 = vadd.f32 0.0, %v816
  %818 = vmatmul.bf16.gmra.mxu0 %v458
  %v819 = vpop.f32.mrf.mxu0
  %v820 = vadd.f32 0.0, %v819
  %v821 = vpop.f32.mrf.mxu0
  %v822 = vadd.f32 0.0, %v821
  %823 = vmatmul.bf16.gmra.mxu0 %v459
  %v824 = vpop.f32.mrf.mxu0
  %v825 = vadd.f32 0.0, %v824
  %v826 = vpop.f32.mrf.mxu0
  %v827 = vadd.f32 0.0, %v826
  %828 = vmatmul.bf16.gmra.mxu0 %v460
  %v829 = vpop.f32.mrf.mxu0
  %v830 = vadd.f32 0.0, %v829
  %v831 = vpop.f32.mrf.mxu0
  %v832 = vadd.f32 0.0, %v831
  %833 = vmatmul.bf16.gmra.mxu0 %v461
  %v834 = vpop.f32.mrf.mxu0
  %v835 = vadd.f32 0.0, %v834
  %v836 = vpop.f32.mrf.mxu0
  %v837 = vadd.f32 0.0, %v836
  %838 = vmatmul.bf16.gmra.mxu0 %v462
  %v839 = vpop.f32.mrf.mxu0
  %v840 = vadd.f32 0.0, %v839
  %v841 = vpop.f32.mrf.mxu0
  %v842 = vadd.f32 0.0, %v841
  %843 = vmatmul.bf16.gmra.mxu0 %v463
  %v844 = vpop.f32.mrf.mxu0
  %v845 = vadd.f32 0.0, %v844
  %v846 = vpop.f32.mrf.mxu0
  %v847 = vadd.f32 0.0, %v846
  %848 = vmatmul.bf16.gmra.mxu0 %v464
  %v849 = vpop.f32.mrf.mxu0
  %v850 = vadd.f32 0.0, %v849
  %v851 = vpop.f32.mrf.mxu0
  %v852 = vadd.f32 0.0, %v851
  %853 = vmatmul.bf16.gmra.mxu0 %v465
  %v854 = vpop.f32.mrf.mxu0
  %v855 = vadd.f32 0.0, %v854
  %v856 = vpop.f32.mrf.mxu0
  %v857 = vadd.f32 0.0, %v856
  %858 = vmatmul.bf16.gmra.mxu0 %v466
  %v859 = vpop.f32.mrf.mxu0
  %v860 = vadd.f32 0.0, %v859
  %v861 = vpop.f32.mrf.mxu0
  %v862 = vadd.f32 0.0, %v861
  %863 = vmatmul.bf16.gmra.mxu0 %v467
  %v864 = vpop.f32.mrf.mxu0
  %v865 = vadd.f32 0.0, %v864
  %v866 = vpop.f32.mrf.mxu0
  %v867 = vadd.f32 0.0, %v866
  %868 = vmatmul.bf16.gmra.mxu0 %v468
  %v869 = vpop.f32.mrf.mxu0
  %v870 = vadd.f32 0.0, %v869
  %v871 = vpop.f32.mrf.mxu0
  %v872 = vadd.f32 0.0, %v871
  %873 = vmatmul.bf16.gmra.mxu0 %v469
  %v874 = vpop.f32.mrf.mxu0
  %v875 = vadd.f32 0.0, %v874
  %v876 = vpop.f32.mrf.mxu0
  %v877 = vadd.f32 0.0, %v876
  %878 = vmatmul.bf16.gmra.mxu0 %v470
  %v879 = vpop.f32.mrf.mxu0
  %v880 = vadd.f32 0.0, %v879
  %v881 = vpop.f32.mrf.mxu0
  %v882 = vadd.f32 0.0, %v881
  %883 = vmatmul.bf16.gmra.mxu0 %v471
  %v884 = vpop.f32.mrf.mxu0
  %v885 = vadd.f32 0.0, %v884
  %v886 = vpop.f32.mrf.mxu0
  %v887 = vadd.f32 0.0, %v886
  %888 = vmatmul.bf16.gmra.mxu0 %v472
  %v889 = vpop.f32.mrf.mxu0
  %v890 = vadd.f32 0.0, %v889
  %v891 = vpop.f32.mrf.mxu0
  %v892 = vadd.f32 0.0, %v891
  %893 = vmatmul.bf16.gmra.mxu0 %v473
  %v894 = vpop.f32.mrf.mxu0
  %v895 = vadd.f32 0.0, %v894
  %v896 = vpop.f32.mrf.mxu0
  %v897 = vadd.f32 0.0, %v896
  %898 = vmatmul.bf16.gmra.mxu0 %v474
  %v899 = vpop.f32.mrf.mxu0
  %v900 = vadd.f32 0.0, %v899
  %v901 = vpop.f32.mrf.mxu0
  %v902 = vadd.f32 0.0, %v901
  %903 = vmatmul.bf16.gmra.mxu0 %v475
  %v904 = vpop.f32.mrf.mxu0
  %v905 = vadd.f32 0.0, %v904
  %v906 = vpop.f32.mrf.mxu0
  %v907 = vadd.f32 0.0, %v906
  %908 = vmatmul.bf16.gmra.mxu0 %v476
  %v909 = vpop.f32.mrf.mxu0
  %v910 = vadd.f32 0.0, %v909
  %v911 = vpop.f32.mrf.mxu0
  %v912 = vadd.f32 0.0, %v911
  %913 = vmatmul.bf16.gmra.mxu0 %v477
  %v914 = vpop.f32.mrf.mxu0
  %v915 = vadd.f32 0.0, %v914
  %v916 = vpop.f32.mrf.mxu0
  %v917 = vadd.f32 0.0, %v916
  %918 = vdwg.mxu0
  %v919 = vpack.c.bf16 %v600, %v600
  %v920 = vpack.c.bf16 %v602, %v602
  %v921 = vpack.c.bf16 %v605, %v605
  %v922 = vpack.c.bf16 %v607, %v607
  %v923 = vpack.c.bf16 %v610, %v610
  %v924 = vpack.c.bf16 %v612, %v612
  %v925 = vpack.c.bf16 %v615, %v615
  %v926 = vpack.c.bf16 %v617, %v617
  %v927 = vpack.c.bf16 %v620, %v620
  %v928 = vpack.c.bf16 %v622, %v622
  %v929 = vpack.c.bf16 %v625, %v625
  %v930 = vpack.c.bf16 %v627, %v627
  %v931 = vpack.c.bf16 %v630, %v630
  %v932 = vpack.c.bf16 %v632, %v632
  %v933 = vpack.c.bf16 %v635, %v635
  %v934 = vpack.c.bf16 %v637, %v637
  %v935 = vpack.c.bf16 %v640, %v640
  %v936 = vpack.c.bf16 %v642, %v642
  %v937 = vpack.c.bf16 %v645, %v645
  %v938 = vpack.c.bf16 %v647, %v647
  %v939 = vpack.c.bf16 %v650, %v650
  %v940 = vpack.c.bf16 %v652, %v652
  %v941 = vpack.c.bf16 %v655, %v655
  %v942 = vpack.c.bf16 %v657, %v657
  %v943 = vpack.c.bf16 %v660, %v660
  %v944 = vpack.c.bf16 %v662, %v662
  %v945 = vpack.c.bf16 %v665, %v665
  %v946 = vpack.c.bf16 %v667, %v667
  %v947 = vpack.c.bf16 %v670, %v670
  %v948 = vpack.c.bf16 %v672, %v672
  %v949 = vpack.c.bf16 %v675, %v675
  %v950 = vpack.c.bf16 %v677, %v677
  %v951 = vpack.c.bf16 %v680, %v680
  %v952 = vpack.c.bf16 %v682, %v682
  %v953 = vpack.c.bf16 %v685, %v685
  %v954 = vpack.c.bf16 %v687, %v687
  %v955 = vpack.c.bf16 %v690, %v690
  %v956 = vpack.c.bf16 %v692, %v692
  %v957 = vpack.c.bf16 %v695, %v695
  %v958 = vpack.c.bf16 %v697, %v697
  %v959 = vpack.c.bf16 %v700, %v700
  %v960 = vpack.c.bf16 %v702, %v702
  %v961 = vpack.c.bf16 %v705, %v705
  %v962 = vpack.c.bf16 %v707, %v707
  %v963 = vpack.c.bf16 %v710, %v710
  %v964 = vpack.c.bf16 %v712, %v712
  %v965 = vpack.c.bf16 %v715, %v715
  %v966 = vpack.c.bf16 %v717, %v717
  %v967 = vpack.c.bf16 %v720, %v720
  %v968 = vpack.c.bf16 %v722, %v722
  %v969 = vpack.c.bf16 %v725, %v725
  %v970 = vpack.c.bf16 %v727, %v727
  %v971 = vpack.c.bf16 %v730, %v730
  %v972 = vpack.c.bf16 %v732, %v732
  %v973 = vpack.c.bf16 %v735, %v735
  %v974 = vpack.c.bf16 %v737, %v737
  %v975 = vpack.c.bf16 %v740, %v740
  %v976 = vpack.c.bf16 %v742, %v742
  %v977 = vpack.c.bf16 %v745, %v745
  %v978 = vpack.c.bf16 %v747, %v747
  %v979 = vpack.c.bf16 %v750, %v750
  %v980 = vpack.c.bf16 %v752, %v752
  %v981 = vpack.c.bf16 %v755, %v755
  %v982 = vpack.c.bf16 %v757, %v757
  %v983 = vpack.c.bf16 %v760, %v760
  %v984 = vpack.c.bf16 %v762, %v762
  %v985 = vpack.c.bf16 %v765, %v765
  %v986 = vpack.c.bf16 %v767, %v767
  %v987 = vpack.c.bf16 %v770, %v770
  %v988 = vpack.c.bf16 %v772, %v772
  %v989 = vpack.c.bf16 %v775, %v775
  %v990 = vpack.c.bf16 %v777, %v777
  %v991 = vpack.c.bf16 %v780, %v780
  %v992 = vpack.c.bf16 %v782, %v782
  %v993 = vpack.c.bf16 %v785, %v785
  %v994 = vpack.c.bf16 %v787, %v787
  %v995 = vpack.c.bf16 %v790, %v790
  %v996 = vpack.c.bf16 %v792, %v792
  %v997 = vpack.c.bf16 %v795, %v795
  %v998 = vpack.c.bf16 %v797, %v797
  %v999 = vpack.c.bf16 %v800, %v800
  %v1000 = vpack.c.bf16 %v802, %v802
  %v1001 = vpack.c.bf16 %v805, %v805
  %v1002 = vpack.c.bf16 %v807, %v807
  %v1003 = vpack.c.bf16 %v810, %v810
  %v1004 = vpack.c.bf16 %v812, %v812
  %v1005 = vpack.c.bf16 %v815, %v815
  %v1006 = vpack.c.bf16 %v817, %v817
  %v1007 = vpack.c.bf16 %v820, %v820
  %v1008 = vpack.c.bf16 %v822, %v822
  %v1009 = vpack.c.bf16 %v825, %v825
  %v1010 = vpack.c.bf16 %v827, %v827
  %v1011 = vpack.c.bf16 %v830, %v830
  %v1012 = vpack.c.bf16 %v832, %v832
  %v1013 = vpack.c.bf16 %v835, %v835
  %v1014 = vpack.c.bf16 %v837, %v837
  %v1015 = vpack.c.bf16 %v840, %v840
  %v1016 = vpack.c.bf16 %v842, %v842
  %v1017 = vpack.c.bf16 %v845, %v845
  %v1018 = vpack.c.bf16 %v847, %v847
  %v1019 = vpack.c.bf16 %v850, %v850
  %v1020 = vpack.c.bf16 %v852, %v852
  %v1021 = vpack.c.bf16 %v855, %v855
  %v1022 = vpack.c.bf16 %v857, %v857
  %v1023 = vpack.c.bf16 %v860, %v860
  %v1024 = vpack.c.bf16 %v862, %v862
  %v1025 = vpack.c.bf16 %v865, %v865
  %v1026 = vpack.c.bf16 %v867, %v867
  %v1027 = vpack.c.bf16 %v870, %v870
  %v1028 = vpack.c.bf16 %v872, %v872
  %v1029 = vpack.c.bf16 %v875, %v875
  %v1030 = vpack.c.bf16 %v877, %v877
  %v1031 = vpack.c.bf16 %v880, %v880
  %v1032 = vpack.c.bf16 %v882, %v882
  %v1033 = vpack.c.bf16 %v885, %v885
  %v1034 = vpack.c.bf16 %v887, %v887
  %v1035 = vpack.c.bf16 %v890, %v890
  %v1036 = vpack.c.bf16 %v892, %v892
  %v1037 = vpack.c.bf16 %v895, %v895
  %v1038 = vpack.c.bf16 %v897, %v897
  %v1039 = vpack.c.bf16 %v900, %v900
  %v1040 = vpack.c.bf16 %v902, %v902
  %v1041 = vpack.c.bf16 %v905, %v905
  %v1042 = vpack.c.bf16 %v907, %v907
  %v1043 = vpack.c.bf16 %v910, %v910
  %v1044 = vpack.c.bf16 %v912, %v912
  %v1045 = vpack.c.bf16 %v915, %v915
  %v1046 = vpack.c.bf16 %v917, %v917
  %vm1047 = vcmask 60416
  %1048 = vst.msk [vmem:[%s2] sm:$0xf] %vm1047, %v919
  %1049 = vst.msk [vmem:[%s2 + $0x4] sm:$0xf] %vm1047, %v920
  %1050 = vst.msk [vmem:[%s2 + $0x8] sm:$0xf] %vm1047, %v921
  %1051 = vst.msk [vmem:[%s2 + $0xc] sm:$0xf] %vm1047, %v922
  %1052 = vst.msk [vmem:[%s2 + $0x10] sm:$0xf] %vm1047, %v923
  %1053 = vst.msk [vmem:[%s2 + $0x14] sm:$0xf] %vm1047, %v924
  %1054 = vst.msk [vmem:[%s2 + $0x18] sm:$0xf] %vm1047, %v925
  %1055 = vst.msk [vmem:[%s2 + $0x1c] sm:$0xf] %vm1047, %v926
  %1056 = vst.msk [vmem:[%s2 + $0x20] sm:$0xf] %vm1047, %v927
  %1057 = vst.msk [vmem:[%s2 + $0x24] sm:$0xf] %vm1047, %v928
  %1058 = vst.msk [vmem:[%s2 + $0x28] sm:$0xf] %vm1047, %v929
  %1059 = vst.msk [vmem:[%s2 + $0x2c] sm:$0xf] %vm1047, %v930
  %1060 = vst.msk [vmem:[%s2 + $0x30] sm:$0xf] %vm1047, %v931
  %1061 = vst.msk [vmem:[%s2 + $0x34] sm:$0xf] %vm1047, %v932
  %1062 = vst.msk [vmem:[%s2 + $0x38] sm:$0xf] %vm1047, %v933
  %1063 = vst.msk [vmem:[%s2 + $0x3c] sm:$0xf] %vm1047, %v934
  %1064 = vst.msk [vmem:[%s2 + $0x40] sm:$0xf] %vm1047, %v935
  %1065 = vst.msk [vmem:[%s2 + $0x44] sm:$0xf] %vm1047, %v936
  %1066 = vst.msk [vmem:[%s2 + $0x48] sm:$0xf] %vm1047, %v937
  %1067 = vst.msk [vmem:[%s2 + $0x4c] sm:$0xf] %vm1047, %v938
  %1068 = vst.msk [vmem:[%s2 + $0x50] sm:$0xf] %vm1047, %v939
  %1069 = vst.msk [vmem:[%s2 + $0x54] sm:$0xf] %vm1047, %v940
  %1070 = vst.msk [vmem:[%s2 + $0x58] sm:$0xf] %vm1047, %v941
  %1071 = vst.msk [vmem:[%s2 + $0x5c] sm:$0xf] %vm1047, %v942
  %1072 = vst.msk [vmem:[%s2 + $0x60] sm:$0xf] %vm1047, %v943
  %1073 = vst.msk [vmem:[%s2 + $0x64] sm:$0xf] %vm1047, %v944
  %1074 = vst.msk [vmem:[%s2 + $0x68] sm:$0xf] %vm1047, %v945
  %1075 = vst.msk [vmem:[%s2 + $0x6c] sm:$0xf] %vm1047, %v946
  %1076 = vst.msk [vmem:[%s2 + $0x70] sm:$0xf] %vm1047, %v947
  %1077 = vst.msk [vmem:[%s2 + $0x74] sm:$0xf] %vm1047, %v948
  %1078 = vst.msk [vmem:[%s2 + $0x78] sm:$0xf] %vm1047, %v949
  %1079 = vst.msk [vmem:[%s2 + $0x7c] sm:$0xf] %vm1047, %v950
  %1080 = vst.msk [vmem:[%s2 + $0x80] sm:$0xf] %vm1047, %v951
  %1081 = vst.msk [vmem:[%s2 + $0x84] sm:$0xf] %vm1047, %v952
  %1082 = vst.msk [vmem:[%s2 + $0x88] sm:$0xf] %vm1047, %v953
  %1083 = vst.msk [vmem:[%s2 + $0x8c] sm:$0xf] %vm1047, %v954
  %1084 = vst.msk [vmem:[%s2 + $0x90] sm:$0xf] %vm1047, %v955
  %1085 = vst.msk [vmem:[%s2 + $0x94] sm:$0xf] %vm1047, %v956
  %1086 = vst.msk [vmem:[%s2 + $0x98] sm:$0xf] %vm1047, %v957
  %1087 = vst.msk [vmem:[%s2 + $0x9c] sm:$0xf] %vm1047, %v958
  %1088 = vst.msk [vmem:[%s2 + $0xa0] sm:$0xf] %vm1047, %v959
  %1089 = vst.msk [vmem:[%s2 + $0xa4] sm:$0xf] %vm1047, %v960
  %1090 = vst.msk [vmem:[%s2 + $0xa8] sm:$0xf] %vm1047, %v961
  %1091 = vst.msk [vmem:[%s2 + $0xac] sm:$0xf] %vm1047, %v962
  %1092 = vst.msk [vmem:[%s2 + $0xb0] sm:$0xf] %vm1047, %v963
  %1093 = vst.msk [vmem:[%s2 + $0xb4] sm:$0xf] %vm1047, %v964
  %1094 = vst.msk [vmem:[%s2 + $0xb8] sm:$0xf] %vm1047, %v965
  %1095 = vst.msk [vmem:[%s2 + $0xbc] sm:$0xf] %vm1047, %v966
  %1096 = vst.msk [vmem:[%s2 + $0xc0] sm:$0xf] %vm1047, %v967
  %1097 = vst.msk [vmem:[%s2 + $0xc4] sm:$0xf] %vm1047, %v968
  %1098 = vst.msk [vmem:[%s2 + $0xc8] sm:$0xf] %vm1047, %v969
  %1099 = vst.msk [vmem:[%s2 + $0xcc] sm:$0xf] %vm1047, %v970
  %1100 = vst.msk [vmem:[%s2 + $0xd0] sm:$0xf] %vm1047, %v971
  %1101 = vst.msk [vmem:[%s2 + $0xd4] sm:$0xf] %vm1047, %v972
  %1102 = vst.msk [vmem:[%s2 + $0xd8] sm:$0xf] %vm1047, %v973
  %1103 = vst.msk [vmem:[%s2 + $0xdc] sm:$0xf] %vm1047, %v974
  %1104 = vst.msk [vmem:[%s2 + $0xe0] sm:$0xf] %vm1047, %v975
  %1105 = vst.msk [vmem:[%s2 + $0xe4] sm:$0xf] %vm1047, %v976
  %1106 = vst.msk [vmem:[%s2 + $0xe8] sm:$0xf] %vm1047, %v977
  %1107 = vst.msk [vmem:[%s2 + $0xec] sm:$0xf] %vm1047, %v978
  %1108 = vst.msk [vmem:[%s2 + $0xf0] sm:$0xf] %vm1047, %v979
  %1109 = vst.msk [vmem:[%s2 + $0xf4] sm:$0xf] %vm1047, %v980
  %1110 = vst.msk [vmem:[%s2 + $0xf8] sm:$0xf] %vm1047, %v981
  %1111 = vst.msk [vmem:[%s2 + $0xfc] sm:$0xf] %vm1047, %v982
  %1112 = vst.msk [vmem:[%s2 + $0x100] sm:$0xf] %vm1047, %v983
  %1113 = vst.msk [vmem:[%s2 + $0x104] sm:$0xf] %vm1047, %v984
  %1114 = vst.msk [vmem:[%s2 + $0x108] sm:$0xf] %vm1047, %v985
  %1115 = vst.msk [vmem:[%s2 + $0x10c] sm:$0xf] %vm1047, %v986
  %1116 = vst.msk [vmem:[%s2 + $0x110] sm:$0xf] %vm1047, %v987
  %1117 = vst.msk [vmem:[%s2 + $0x114] sm:$0xf] %vm1047, %v988
  %1118 = vst.msk [vmem:[%s2 + $0x118] sm:$0xf] %vm1047, %v989
  %1119 = vst.msk [vmem:[%s2 + $0x11c] sm:$0xf] %vm1047, %v990
  %1120 = vst.msk [vmem:[%s2 + $0x120] sm:$0xf] %vm1047, %v991
  %1121 = vst.msk [vmem:[%s2 + $0x124] sm:$0xf] %vm1047, %v992
  %1122 = vst.msk [vmem:[%s2 + $0x128] sm:$0xf] %vm1047, %v993
  %1123 = vst.msk [vmem:[%s2 + $0x12c] sm:$0xf] %vm1047, %v994
  %1124 = vst.msk [vmem:[%s2 + $0x130] sm:$0xf] %vm1047, %v995
  %1125 = vst.msk [vmem:[%s2 + $0x134] sm:$0xf] %vm1047, %v996
  %1126 = vst.msk [vmem:[%s2 + $0x138] sm:$0xf] %vm1047, %v997
  %1127 = vst.msk [vmem:[%s2 + $0x13c] sm:$0xf] %vm1047, %v998
  %1128 = vst.msk [vmem:[%s2 + $0x140] sm:$0xf] %vm1047, %v999
  %1129 = vst.msk [vmem:[%s2 + $0x144] sm:$0xf] %vm1047, %v1000
  %1130 = vst.msk [vmem:[%s2 + $0x148] sm:$0xf] %vm1047, %v1001
  %1131 = vst.msk [vmem:[%s2 + $0x14c] sm:$0xf] %vm1047, %v1002
  %1132 = vst.msk [vmem:[%s2 + $0x150] sm:$0xf] %vm1047, %v1003
  %1133 = vst.msk [vmem:[%s2 + $0x154] sm:$0xf] %vm1047, %v1004
  %1134 = vst.msk [vmem:[%s2 + $0x158] sm:$0xf] %vm1047, %v1005
  %1135 = vst.msk [vmem:[%s2 + $0x15c] sm:$0xf] %vm1047, %v1006
  %1136 = vst.msk [vmem:[%s2 + $0x160] sm:$0xf] %vm1047, %v1007
  %1137 = vst.msk [vmem:[%s2 + $0x164] sm:$0xf] %vm1047, %v1008
  %1138 = vst.msk [vmem:[%s2 + $0x168] sm:$0xf] %vm1047, %v1009
  %1139 = vst.msk [vmem:[%s2 + $0x16c] sm:$0xf] %vm1047, %v1010
  %1140 = vst.msk [vmem:[%s2 + $0x170] sm:$0xf] %vm1047, %v1011
  %1141 = vst.msk [vmem:[%s2 + $0x174] sm:$0xf] %vm1047, %v1012
  %1142 = vst.msk [vmem:[%s2 + $0x178] sm:$0xf] %vm1047, %v1013
  %1143 = vst.msk [vmem:[%s2 + $0x17c] sm:$0xf] %vm1047, %v1014
  %1144 = vst.msk [vmem:[%s2 + $0x180] sm:$0xf] %vm1047, %v1015
  %1145 = vst.msk [vmem:[%s2 + $0x184] sm:$0xf] %vm1047, %v1016
  %1146 = vst.msk [vmem:[%s2 + $0x188] sm:$0xf] %vm1047, %v1017
  %1147 = vst.msk [vmem:[%s2 + $0x18c] sm:$0xf] %vm1047, %v1018
  %1148 = vst.msk [vmem:[%s2 + $0x190] sm:$0xf] %vm1047, %v1019
  %1149 = vst.msk [vmem:[%s2 + $0x194] sm:$0xf] %vm1047, %v1020
  %1150 = vst.msk [vmem:[%s2 + $0x198] sm:$0xf] %vm1047, %v1021
  %1151 = vst.msk [vmem:[%s2 + $0x19c] sm:$0xf] %vm1047, %v1022
  %1152 = vst.msk [vmem:[%s2 + $0x1a0] sm:$0xf] %vm1047, %v1023
  %1153 = vst.msk [vmem:[%s2 + $0x1a4] sm:$0xf] %vm1047, %v1024
  %1154 = vst.msk [vmem:[%s2 + $0x1a8] sm:$0xf] %vm1047, %v1025
  %1155 = vst.msk [vmem:[%s2 + $0x1ac] sm:$0xf] %vm1047, %v1026
  %1156 = vst.msk [vmem:[%s2 + $0x1b0] sm:$0xf] %vm1047, %v1027
  %1157 = vst.msk [vmem:[%s2 + $0x1b4] sm:$0xf] %vm1047, %v1028
  %1158 = vst.msk [vmem:[%s2 + $0x1b8] sm:$0xf] %vm1047, %v1029
  %1159 = vst.msk [vmem:[%s2 + $0x1bc] sm:$0xf] %vm1047, %v1030
  %1160 = vst.msk [vmem:[%s2 + $0x1c0] sm:$0xf] %vm1047, %v1031
  %1161 = vst.msk [vmem:[%s2 + $0x1c4] sm:$0xf] %vm1047, %v1032
  %1162 = vst.msk [vmem:[%s2 + $0x1c8] sm:$0xf] %vm1047, %v1033
  %1163 = vst.msk [vmem:[%s2 + $0x1cc] sm:$0xf] %vm1047, %v1034
  %1164 = vst.msk [vmem:[%s2 + $0x1d0] sm:$0xf] %vm1047, %v1035
  %1165 = vst.msk [vmem:[%s2 + $0x1d4] sm:$0xf] %vm1047, %v1036
  %1166 = vst.msk [vmem:[%s2 + $0x1d8] sm:$0xf] %vm1047, %v1037
  %1167 = vst.msk [vmem:[%s2 + $0x1dc] sm:$0xf] %vm1047, %v1038
  %1168 = vst.msk [vmem:[%s2 + $0x1e0] sm:$0xf] %vm1047, %v1039
  %1169 = vst.msk [vmem:[%s2 + $0x1e4] sm:$0xf] %vm1047, %v1040
  %1170 = vst.msk [vmem:[%s2 + $0x1e8] sm:$0xf] %vm1047, %v1041
  %1171 = vst.msk [vmem:[%s2 + $0x1ec] sm:$0xf] %vm1047, %v1042
  %1172 = vst.msk [vmem:[%s2 + $0x1f0] sm:$0xf] %vm1047, %v1043
  %1173 = vst.msk [vmem:[%s2 + $0x1f4] sm:$0xf] %vm1047, %v1044
  %1174 = vst.msk [vmem:[%s2 + $0x1f8] sm:$0xf] %vm1047, %v1045
  %1175 = vst.msk [vmem:[%s2 + $0x1fc] sm:$0xf] %vm1047, %v1046
  %vm1176 = vcmask 64512
  %v1177 = vsel %vm1176, %v600, 0.0
  %v1178 = vsel %vm1176, %v602, 0.0
  %v1179 = vadd.f32 %v1177, %v1178
  %v1180 = vsel %vm1176, %v605, 0.0
  %v1181 = vadd.f32 %v1179, %v1180
  %v1182 = vsel %vm1176, %v607, 0.0
  %v1183 = vadd.f32 %v1181, %v1182
  %v1184 = vsel %vm1176, %v610, 0.0
  %v1185 = vadd.f32 %v1183, %v1184
  %v1186 = vsel %vm1176, %v612, 0.0
  %v1187 = vadd.f32 %v1185, %v1186
  %v1188 = vsel %vm1176, %v615, 0.0
  %v1189 = vadd.f32 %v1187, %v1188
  %v1190 = vsel %vm1176, %v617, 0.0
  %v1191 = vadd.f32 %v1189, %v1190
  %v1192 = vsel %vm1176, %v620, 0.0
  %v1193 = vadd.f32 %v1191, %v1192
  %v1194 = vsel %vm1176, %v622, 0.0
  %v1195 = vadd.f32 %v1193, %v1194
  %v1196 = vsel %vm1176, %v625, 0.0
  %v1197 = vadd.f32 %v1195, %v1196
  %v1198 = vsel %vm1176, %v627, 0.0
  %v1199 = vadd.f32 %v1197, %v1198
  %v1200 = vsel %vm1176, %v630, 0.0
  %v1201 = vadd.f32 %v1199, %v1200
  %v1202 = vsel %vm1176, %v632, 0.0
  %v1203 = vadd.f32 %v1201, %v1202
  %v1204 = vsel %vm1176, %v635, 0.0
  %v1205 = vadd.f32 %v1203, %v1204
  %v1206 = vsel %vm1176, %v637, 0.0
  %v1207 = vadd.f32 %v1205, %v1206
  %v1208 = vsel %vm1176, %v640, 0.0
  %v1209 = vadd.f32 %v1207, %v1208
  %v1210 = vsel %vm1176, %v642, 0.0
  %v1211 = vadd.f32 %v1209, %v1210
  %v1212 = vsel %vm1176, %v645, 0.0
  %v1213 = vadd.f32 %v1211, %v1212
  %v1214 = vsel %vm1176, %v647, 0.0
  %v1215 = vadd.f32 %v1213, %v1214
  %v1216 = vsel %vm1176, %v650, 0.0
  %v1217 = vadd.f32 %v1215, %v1216
  %v1218 = vsel %vm1176, %v652, 0.0
  %v1219 = vadd.f32 %v1217, %v1218
  %v1220 = vsel %vm1176, %v655, 0.0
  %v1221 = vadd.f32 %v1219, %v1220
  %v1222 = vsel %vm1176, %v657, 0.0
  %v1223 = vadd.f32 %v1221, %v1222
  %v1224 = vsel %vm1176, %v660, 0.0
  %v1225 = vadd.f32 %v1223, %v1224
  %v1226 = vsel %vm1176, %v662, 0.0
  %v1227 = vadd.f32 %v1225, %v1226
  %v1228 = vsel %vm1176, %v665, 0.0
  %v1229 = vadd.f32 %v1227, %v1228
  %v1230 = vsel %vm1176, %v667, 0.0
  %v1231 = vadd.f32 %v1229, %v1230
  %v1232 = vsel %vm1176, %v670, 0.0
  %v1233 = vadd.f32 %v1231, %v1232
  %v1234 = vsel %vm1176, %v672, 0.0
  %v1235 = vadd.f32 %v1233, %v1234
  %v1236 = vsel %vm1176, %v675, 0.0
  %v1237 = vadd.f32 %v1235, %v1236
  %v1238 = vsel %vm1176, %v677, 0.0
  %v1239 = vadd.f32 %v1237, %v1238
  %v1240 = vsel %vm1176, %v680, 0.0
  %v1241 = vadd.f32 %v1239, %v1240
  %v1242 = vsel %vm1176, %v682, 0.0
  %v1243 = vadd.f32 %v1241, %v1242
  %v1244 = vsel %vm1176, %v685, 0.0
  %v1245 = vadd.f32 %v1243, %v1244
  %v1246 = vsel %vm1176, %v687, 0.0
  %v1247 = vadd.f32 %v1245, %v1246
  %v1248 = vsel %vm1176, %v690, 0.0
  %v1249 = vadd.f32 %v1247, %v1248
  %v1250 = vsel %vm1176, %v692, 0.0
  %v1251 = vadd.f32 %v1249, %v1250
  %v1252 = vsel %vm1176, %v695, 0.0
  %v1253 = vadd.f32 %v1251, %v1252
  %v1254 = vsel %vm1176, %v697, 0.0
  %v1255 = vadd.f32 %v1253, %v1254
  %v1256 = vsel %vm1176, %v700, 0.0
  %v1257 = vadd.f32 %v1255, %v1256
  %v1258 = vsel %vm1176, %v702, 0.0
  %v1259 = vadd.f32 %v1257, %v1258
  %v1260 = vsel %vm1176, %v705, 0.0
  %v1261 = vadd.f32 %v1259, %v1260
  %v1262 = vsel %vm1176, %v707, 0.0
  %v1263 = vadd.f32 %v1261, %v1262
  %v1264 = vsel %vm1176, %v710, 0.0
  %v1265 = vadd.f32 %v1263, %v1264
  %v1266 = vsel %vm1176, %v712, 0.0
  %v1267 = vadd.f32 %v1265, %v1266
  %v1268 = vsel %vm1176, %v715, 0.0
  %v1269 = vadd.f32 %v1267, %v1268
  %v1270 = vsel %vm1176, %v717, 0.0
  %v1271 = vadd.f32 %v1269, %v1270
  %v1272 = vsel %vm1176, %v720, 0.0
  %v1273 = vadd.f32 %v1271, %v1272
  %v1274 = vsel %vm1176, %v722, 0.0
  %v1275 = vadd.f32 %v1273, %v1274
  %v1276 = vsel %vm1176, %v725, 0.0
  %v1277 = vadd.f32 %v1275, %v1276
  %v1278 = vsel %vm1176, %v727, 0.0
  %v1279 = vadd.f32 %v1277, %v1278
  %v1280 = vsel %vm1176, %v730, 0.0
  %v1281 = vadd.f32 %v1279, %v1280
  %v1282 = vsel %vm1176, %v732, 0.0
  %v1283 = vadd.f32 %v1281, %v1282
  %v1284 = vsel %vm1176, %v735, 0.0
  %v1285 = vadd.f32 %v1283, %v1284
  %v1286 = vsel %vm1176, %v737, 0.0
  %v1287 = vadd.f32 %v1285, %v1286
  %v1288 = vsel %vm1176, %v740, 0.0
  %v1289 = vadd.f32 %v1287, %v1288
  %v1290 = vsel %vm1176, %v742, 0.0
  %v1291 = vadd.f32 %v1289, %v1290
  %v1292 = vsel %vm1176, %v745, 0.0
  %v1293 = vadd.f32 %v1291, %v1292
  %v1294 = vsel %vm1176, %v747, 0.0
  %v1295 = vadd.f32 %v1293, %v1294
  %v1296 = vsel %vm1176, %v750, 0.0
  %v1297 = vadd.f32 %v1295, %v1296
  %v1298 = vsel %vm1176, %v752, 0.0
  %v1299 = vadd.f32 %v1297, %v1298
  %v1300 = vsel %vm1176, %v755, 0.0
  %v1301 = vadd.f32 %v1299, %v1300
  %v1302 = vsel %vm1176, %v757, 0.0
  %v1303 = vadd.f32 %v1301, %v1302
  %v1304 = vsel %vm1176, %v760, 0.0
  %v1305 = vadd.f32 %v1303, %v1304
  %v1306 = vsel %vm1176, %v762, 0.0
  %v1307 = vadd.f32 %v1305, %v1306
  %v1308 = vsel %vm1176, %v765, 0.0
  %v1309 = vadd.f32 %v1307, %v1308
  %v1310 = vsel %vm1176, %v767, 0.0
  %v1311 = vadd.f32 %v1309, %v1310
  %v1312 = vsel %vm1176, %v770, 0.0
  %v1313 = vadd.f32 %v1311, %v1312
  %v1314 = vsel %vm1176, %v772, 0.0
  %v1315 = vadd.f32 %v1313, %v1314
  %v1316 = vsel %vm1176, %v775, 0.0
  %v1317 = vadd.f32 %v1315, %v1316
  %v1318 = vsel %vm1176, %v777, 0.0
  %v1319 = vadd.f32 %v1317, %v1318
  %v1320 = vsel %vm1176, %v780, 0.0
  %v1321 = vadd.f32 %v1319, %v1320
  %v1322 = vsel %vm1176, %v782, 0.0
  %v1323 = vadd.f32 %v1321, %v1322
  %v1324 = vsel %vm1176, %v785, 0.0
  %v1325 = vadd.f32 %v1323, %v1324
  %v1326 = vsel %vm1176, %v787, 0.0
  %v1327 = vadd.f32 %v1325, %v1326
  %v1328 = vsel %vm1176, %v790, 0.0
  %v1329 = vadd.f32 %v1327, %v1328
  %v1330 = vsel %vm1176, %v792, 0.0
  %v1331 = vadd.f32 %v1329, %v1330
  %v1332 = vsel %vm1176, %v795, 0.0
  %v1333 = vadd.f32 %v1331, %v1332
  %v1334 = vsel %vm1176, %v797, 0.0
  %v1335 = vadd.f32 %v1333, %v1334
  %v1336 = vsel %vm1176, %v800, 0.0
  %v1337 = vadd.f32 %v1335, %v1336
  %v1338 = vsel %vm1176, %v802, 0.0
  %v1339 = vadd.f32 %v1337, %v1338
  %v1340 = vsel %vm1176, %v805, 0.0
  %v1341 = vadd.f32 %v1339, %v1340
  %v1342 = vsel %vm1176, %v807, 0.0
  %v1343 = vadd.f32 %v1341, %v1342
  %v1344 = vsel %vm1176, %v810, 0.0
  %v1345 = vadd.f32 %v1343, %v1344
  %v1346 = vsel %vm1176, %v812, 0.0
  %v1347 = vadd.f32 %v1345, %v1346
  %v1348 = vsel %vm1176, %v815, 0.0
  %v1349 = vadd.f32 %v1347, %v1348
  %v1350 = vsel %vm1176, %v817, 0.0
  %v1351 = vadd.f32 %v1349, %v1350
  %v1352 = vsel %vm1176, %v820, 0.0
  %v1353 = vadd.f32 %v1351, %v1352
  %v1354 = vsel %vm1176, %v822, 0.0
  %v1355 = vadd.f32 %v1353, %v1354
  %v1356 = vsel %vm1176, %v825, 0.0
  %v1357 = vadd.f32 %v1355, %v1356
  %v1358 = vsel %vm1176, %v827, 0.0
  %v1359 = vadd.f32 %v1357, %v1358
  %v1360 = vsel %vm1176, %v830, 0.0
  %v1361 = vadd.f32 %v1359, %v1360
  %v1362 = vsel %vm1176, %v832, 0.0
  %v1363 = vadd.f32 %v1361, %v1362
  %v1364 = vsel %vm1176, %v835, 0.0
  %v1365 = vadd.f32 %v1363, %v1364
  %v1366 = vsel %vm1176, %v837, 0.0
  %v1367 = vadd.f32 %v1365, %v1366
  %v1368 = vsel %vm1176, %v840, 0.0
  %v1369 = vadd.f32 %v1367, %v1368
  %v1370 = vsel %vm1176, %v842, 0.0
  %v1371 = vadd.f32 %v1369, %v1370
  %v1372 = vsel %vm1176, %v845, 0.0
  %v1373 = vadd.f32 %v1371, %v1372
  %v1374 = vsel %vm1176, %v847, 0.0
  %v1375 = vadd.f32 %v1373, %v1374
  %v1376 = vsel %vm1176, %v850, 0.0
  %v1377 = vadd.f32 %v1375, %v1376
  %v1378 = vsel %vm1176, %v852, 0.0
  %v1379 = vadd.f32 %v1377, %v1378
  %v1380 = vsel %vm1176, %v855, 0.0
  %v1381 = vadd.f32 %v1379, %v1380
  %v1382 = vsel %vm1176, %v857, 0.0
  %v1383 = vadd.f32 %v1381, %v1382
  %v1384 = vsel %vm1176, %v860, 0.0
  %v1385 = vadd.f32 %v1383, %v1384
  %v1386 = vsel %vm1176, %v862, 0.0
  %v1387 = vadd.f32 %v1385, %v1386
  %v1388 = vsel %vm1176, %v865, 0.0
  %v1389 = vadd.f32 %v1387, %v1388
  %v1390 = vsel %vm1176, %v867, 0.0
  %v1391 = vadd.f32 %v1389, %v1390
  %v1392 = vsel %vm1176, %v870, 0.0
  %v1393 = vadd.f32 %v1391, %v1392
  %v1394 = vsel %vm1176, %v872, 0.0
  %v1395 = vadd.f32 %v1393, %v1394
  %v1396 = vsel %vm1176, %v875, 0.0
  %v1397 = vadd.f32 %v1395, %v1396
  %v1398 = vsel %vm1176, %v877, 0.0
  %v1399 = vadd.f32 %v1397, %v1398
  %v1400 = vsel %vm1176, %v880, 0.0
  %v1401 = vadd.f32 %v1399, %v1400
  %v1402 = vsel %vm1176, %v882, 0.0
  %v1403 = vadd.f32 %v1401, %v1402
  %v1404 = vsel %vm1176, %v885, 0.0
  %v1405 = vadd.f32 %v1403, %v1404
  %v1406 = vsel %vm1176, %v887, 0.0
  %v1407 = vadd.f32 %v1405, %v1406
  %v1408 = vsel %vm1176, %v890, 0.0
  %v1409 = vadd.f32 %v1407, %v1408
  %v1410 = vsel %vm1176, %v892, 0.0
  %v1411 = vadd.f32 %v1409, %v1410
  %v1412 = vsel %vm1176, %v895, 0.0
  %v1413 = vadd.f32 %v1411, %v1412
  %v1414 = vsel %vm1176, %v897, 0.0
  %v1415 = vadd.f32 %v1413, %v1414
  %v1416 = vsel %vm1176, %v900, 0.0
  %v1417 = vadd.f32 %v1415, %v1416
  %v1418 = vsel %vm1176, %v902, 0.0
  %v1419 = vadd.f32 %v1417, %v1418
  %v1420 = vsel %vm1176, %v905, 0.0
  %v1421 = vadd.f32 %v1419, %v1420
  %v1422 = vsel %vm1176, %v907, 0.0
  %v1423 = vadd.f32 %v1421, %v1422
  %v1424 = vsel %vm1176, %v910, 0.0
  %v1425 = vadd.f32 %v1423, %v1424
  %v1426 = vsel %vm1176, %v912, 0.0
  %v1427 = vadd.f32 %v1425, %v1426
  %v1428 = vsel %vm1176, %v915, 0.0
  %v1429 = vadd.f32 %v1427, %v1428
  %v1430 = vsel %vm1176, %v917, 0.0
  %v1431 = vadd.f32 %v1429, %v1430
  %v1432 = vrot.slane %v1431, 4
  %v1433 = vadd.f32 %v1431, %v1432
  %v1434 = vrot.slane %v1433, 2
  %v1435 = vadd.f32 %v1433, %v1434
  %v1436 = vrot.slane %v1435, 1
  %v1437 = vadd.f32 %v1435, %v1436
  %v1438 = vmul.f32 %v600, %v600
  %v1439 = vmul.f32 %v602, %v602
  %v1440 = vmul.f32 %v605, %v605
  %v1441 = vmul.f32 %v607, %v607
  %v1442 = vmul.f32 %v610, %v610
  %v1443 = vmul.f32 %v612, %v612
  %v1444 = vmul.f32 %v615, %v615
  %v1445 = vmul.f32 %v617, %v617
  %v1446 = vmul.f32 %v620, %v620
  %v1447 = vmul.f32 %v622, %v622
  %v1448 = vmul.f32 %v625, %v625
  %v1449 = vmul.f32 %v627, %v627
  %v1450 = vmul.f32 %v630, %v630
  %v1451 = vmul.f32 %v632, %v632
  %v1452 = vmul.f32 %v635, %v635
  %v1453 = vmul.f32 %v637, %v637
  %v1454 = vmul.f32 %v640, %v640
  %v1455 = vmul.f32 %v642, %v642
  %v1456 = vmul.f32 %v645, %v645
  %v1457 = vmul.f32 %v647, %v647
  %v1458 = vmul.f32 %v650, %v650
  %v1459 = vmul.f32 %v652, %v652
  %v1460 = vmul.f32 %v655, %v655
  %v1461 = vmul.f32 %v657, %v657
  %v1462 = vmul.f32 %v660, %v660
  %v1463 = vmul.f32 %v662, %v662
  %v1464 = vmul.f32 %v665, %v665
  %v1465 = vmul.f32 %v667, %v667
  %v1466 = vmul.f32 %v670, %v670
  %v1467 = vmul.f32 %v672, %v672
  %v1468 = vmul.f32 %v675, %v675
  %v1469 = vmul.f32 %v677, %v677
  %v1470 = vmul.f32 %v680, %v680
  %v1471 = vmul.f32 %v682, %v682
  %v1472 = vmul.f32 %v685, %v685
  %v1473 = vmul.f32 %v687, %v687
  %v1474 = vmul.f32 %v690, %v690
  %v1475 = vmul.f32 %v692, %v692
  %v1476 = vmul.f32 %v695, %v695
  %v1477 = vmul.f32 %v697, %v697
  %v1478 = vmul.f32 %v700, %v700
  %v1479 = vmul.f32 %v702, %v702
  %v1480 = vmul.f32 %v705, %v705
  %v1481 = vmul.f32 %v707, %v707
  %v1482 = vmul.f32 %v710, %v710
  %v1483 = vmul.f32 %v712, %v712
  %v1484 = vmul.f32 %v715, %v715
  %v1485 = vmul.f32 %v717, %v717
  %v1486 = vmul.f32 %v720, %v720
  %v1487 = vmul.f32 %v722, %v722
  %v1488 = vmul.f32 %v725, %v725
  %v1489 = vmul.f32 %v727, %v727
  %v1490 = vmul.f32 %v730, %v730
  %v1491 = vmul.f32 %v732, %v732
  %v1492 = vmul.f32 %v735, %v735
  %v1493 = vmul.f32 %v737, %v737
  %v1494 = vmul.f32 %v740, %v740
  %v1495 = vmul.f32 %v742, %v742
  %v1496 = vmul.f32 %v745, %v745
  %v1497 = vmul.f32 %v747, %v747
  %v1498 = vmul.f32 %v750, %v750
  %v1499 = vmul.f32 %v752, %v752
  %v1500 = vmul.f32 %v755, %v755
  %v1501 = vmul.f32 %v757, %v757
  %v1502 = vmul.f32 %v760, %v760
  %v1503 = vmul.f32 %v762, %v762
  %v1504 = vmul.f32 %v765, %v765
  %v1505 = vmul.f32 %v767, %v767
  %v1506 = vmul.f32 %v770, %v770
  %v1507 = vmul.f32 %v772, %v772
  %v1508 = vmul.f32 %v775, %v775
  %v1509 = vmul.f32 %v777, %v777
  %v1510 = vmul.f32 %v780, %v780
  %v1511 = vmul.f32 %v782, %v782
  %v1512 = vmul.f32 %v785, %v785
  %v1513 = vmul.f32 %v787, %v787
  %v1514 = vmul.f32 %v790, %v790
  %v1515 = vmul.f32 %v792, %v792
  %v1516 = vmul.f32 %v795, %v795
  %v1517 = vmul.f32 %v797, %v797
  %v1518 = vmul.f32 %v800, %v800
  %v1519 = vmul.f32 %v802, %v802
  %v1520 = vmul.f32 %v805, %v805
  %v1521 = vmul.f32 %v807, %v807
  %v1522 = vmul.f32 %v810, %v810
  %v1523 = vmul.f32 %v812, %v812
  %v1524 = vmul.f32 %v815, %v815
  %v1525 = vmul.f32 %v817, %v817
  %v1526 = vmul.f32 %v820, %v820
  %v1527 = vmul.f32 %v822, %v822
  %v1528 = vmul.f32 %v825, %v825
  %v1529 = vmul.f32 %v827, %v827
  %v1530 = vmul.f32 %v830, %v830
  %v1531 = vmul.f32 %v832, %v832
  %v1532 = vmul.f32 %v835, %v835
  %v1533 = vmul.f32 %v837, %v837
  %v1534 = vmul.f32 %v840, %v840
  %v1535 = vmul.f32 %v842, %v842
  %v1536 = vmul.f32 %v845, %v845
  %v1537 = vmul.f32 %v847, %v847
  %v1538 = vmul.f32 %v850, %v850
  %v1539 = vmul.f32 %v852, %v852
  %v1540 = vmul.f32 %v855, %v855
  %v1541 = vmul.f32 %v857, %v857
  %v1542 = vmul.f32 %v860, %v860
  %v1543 = vmul.f32 %v862, %v862
  %v1544 = vmul.f32 %v865, %v865
  %v1545 = vmul.f32 %v867, %v867
  %v1546 = vmul.f32 %v870, %v870
  %v1547 = vmul.f32 %v872, %v872
  %v1548 = vmul.f32 %v875, %v875
  %v1549 = vmul.f32 %v877, %v877
  %v1550 = vmul.f32 %v880, %v880
  %v1551 = vmul.f32 %v882, %v882
  %v1552 = vmul.f32 %v885, %v885
  %v1553 = vmul.f32 %v887, %v887
  %v1554 = vmul.f32 %v890, %v890
  %v1555 = vmul.f32 %v892, %v892
  %v1556 = vmul.f32 %v895, %v895
  %v1557 = vmul.f32 %v897, %v897
  %v1558 = vmul.f32 %v900, %v900
  %v1559 = vmul.f32 %v902, %v902
  %v1560 = vmul.f32 %v905, %v905
  %v1561 = vmul.f32 %v907, %v907
  %v1562 = vmul.f32 %v910, %v910
  %v1563 = vmul.f32 %v912, %v912
  %v1564 = vmul.f32 %v915, %v915
  %v1565 = vmul.f32 %v917, %v917
  %v1566 = vsel %vm1176, %v1438, 0.0
  %v1567 = vsel %vm1176, %v1439, 0.0
  %v1568 = vadd.f32 %v1566, %v1567
  %v1569 = vsel %vm1176, %v1440, 0.0
  %v1570 = vadd.f32 %v1568, %v1569
  %v1571 = vsel %vm1176, %v1441, 0.0
  %v1572 = vadd.f32 %v1570, %v1571
  %v1573 = vsel %vm1176, %v1442, 0.0
  %v1574 = vadd.f32 %v1572, %v1573
  %v1575 = vsel %vm1176, %v1443, 0.0
  %v1576 = vadd.f32 %v1574, %v1575
  %v1577 = vsel %vm1176, %v1444, 0.0
  %v1578 = vadd.f32 %v1576, %v1577
  %v1579 = vsel %vm1176, %v1445, 0.0
  %v1580 = vadd.f32 %v1578, %v1579
  %v1581 = vsel %vm1176, %v1446, 0.0
  %v1582 = vadd.f32 %v1580, %v1581
  %v1583 = vsel %vm1176, %v1447, 0.0
  %v1584 = vadd.f32 %v1582, %v1583
  %v1585 = vsel %vm1176, %v1448, 0.0
  %v1586 = vadd.f32 %v1584, %v1585
  %v1587 = vsel %vm1176, %v1449, 0.0
  %v1588 = vadd.f32 %v1586, %v1587
  %v1589 = vsel %vm1176, %v1450, 0.0
  %v1590 = vadd.f32 %v1588, %v1589
  %v1591 = vsel %vm1176, %v1451, 0.0
  %v1592 = vadd.f32 %v1590, %v1591
  %v1593 = vsel %vm1176, %v1452, 0.0
  %v1594 = vadd.f32 %v1592, %v1593
  %v1595 = vsel %vm1176, %v1453, 0.0
  %v1596 = vadd.f32 %v1594, %v1595
  %v1597 = vsel %vm1176, %v1454, 0.0
  %v1598 = vadd.f32 %v1596, %v1597
  %v1599 = vsel %vm1176, %v1455, 0.0
  %v1600 = vadd.f32 %v1598, %v1599
  %v1601 = vsel %vm1176, %v1456, 0.0
  %v1602 = vadd.f32 %v1600, %v1601
  %v1603 = vsel %vm1176, %v1457, 0.0
  %v1604 = vadd.f32 %v1602, %v1603
  %v1605 = vsel %vm1176, %v1458, 0.0
  %v1606 = vadd.f32 %v1604, %v1605
  %v1607 = vsel %vm1176, %v1459, 0.0
  %v1608 = vadd.f32 %v1606, %v1607
  %v1609 = vsel %vm1176, %v1460, 0.0
  %v1610 = vadd.f32 %v1608, %v1609
  %v1611 = vsel %vm1176, %v1461, 0.0
  %v1612 = vadd.f32 %v1610, %v1611
  %v1613 = vsel %vm1176, %v1462, 0.0
  %v1614 = vadd.f32 %v1612, %v1613
  %v1615 = vsel %vm1176, %v1463, 0.0
  %v1616 = vadd.f32 %v1614, %v1615
  %v1617 = vsel %vm1176, %v1464, 0.0
  %v1618 = vadd.f32 %v1616, %v1617
  %v1619 = vsel %vm1176, %v1465, 0.0
  %v1620 = vadd.f32 %v1618, %v1619
  %v1621 = vsel %vm1176, %v1466, 0.0
  %v1622 = vadd.f32 %v1620, %v1621
  %v1623 = vsel %vm1176, %v1467, 0.0
  %v1624 = vadd.f32 %v1622, %v1623
  %v1625 = vsel %vm1176, %v1468, 0.0
  %v1626 = vadd.f32 %v1624, %v1625
  %v1627 = vsel %vm1176, %v1469, 0.0
  %v1628 = vadd.f32 %v1626, %v1627
  %v1629 = vsel %vm1176, %v1470, 0.0
  %v1630 = vadd.f32 %v1628, %v1629
  %v1631 = vsel %vm1176, %v1471, 0.0
  %v1632 = vadd.f32 %v1630, %v1631
  %v1633 = vsel %vm1176, %v1472, 0.0
  %v1634 = vadd.f32 %v1632, %v1633
  %v1635 = vsel %vm1176, %v1473, 0.0
  %v1636 = vadd.f32 %v1634, %v1635
  %v1637 = vsel %vm1176, %v1474, 0.0
  %v1638 = vadd.f32 %v1636, %v1637
  %v1639 = vsel %vm1176, %v1475, 0.0
  %v1640 = vadd.f32 %v1638, %v1639
  %v1641 = vsel %vm1176, %v1476, 0.0
  %v1642 = vadd.f32 %v1640, %v1641
  %v1643 = vsel %vm1176, %v1477, 0.0
  %v1644 = vadd.f32 %v1642, %v1643
  %v1645 = vsel %vm1176, %v1478, 0.0
  %v1646 = vadd.f32 %v1644, %v1645
  %v1647 = vsel %vm1176, %v1479, 0.0
  %v1648 = vadd.f32 %v1646, %v1647
  %v1649 = vsel %vm1176, %v1480, 0.0
  %v1650 = vadd.f32 %v1648, %v1649
  %v1651 = vsel %vm1176, %v1481, 0.0
  %v1652 = vadd.f32 %v1650, %v1651
  %v1653 = vsel %vm1176, %v1482, 0.0
  %v1654 = vadd.f32 %v1652, %v1653
  %v1655 = vsel %vm1176, %v1483, 0.0
  %v1656 = vadd.f32 %v1654, %v1655
  %v1657 = vsel %vm1176, %v1484, 0.0
  %v1658 = vadd.f32 %v1656, %v1657
  %v1659 = vsel %vm1176, %v1485, 0.0
  %v1660 = vadd.f32 %v1658, %v1659
  %v1661 = vsel %vm1176, %v1486, 0.0
  %v1662 = vadd.f32 %v1660, %v1661
  %v1663 = vsel %vm1176, %v1487, 0.0
  %v1664 = vadd.f32 %v1662, %v1663
  %v1665 = vsel %vm1176, %v1488, 0.0
  %v1666 = vadd.f32 %v1664, %v1665
  %v1667 = vsel %vm1176, %v1489, 0.0
  %v1668 = vadd.f32 %v1666, %v1667
  %v1669 = vsel %vm1176, %v1490, 0.0
  %v1670 = vadd.f32 %v1668, %v1669
  %v1671 = vsel %vm1176, %v1491, 0.0
  %v1672 = vadd.f32 %v1670, %v1671
  %v1673 = vsel %vm1176, %v1492, 0.0
  %v1674 = vadd.f32 %v1672, %v1673
  %v1675 = vsel %vm1176, %v1493, 0.0
  %v1676 = vadd.f32 %v1674, %v1675
  %v1677 = vsel %vm1176, %v1494, 0.0
  %v1678 = vadd.f32 %v1676, %v1677
  %v1679 = vsel %vm1176, %v1495, 0.0
  %v1680 = vadd.f32 %v1678, %v1679
  %v1681 = vsel %vm1176, %v1496, 0.0
  %v1682 = vadd.f32 %v1680, %v1681
  %v1683 = vsel %vm1176, %v1497, 0.0
  %v1684 = vadd.f32 %v1682, %v1683
  %v1685 = vsel %vm1176, %v1498, 0.0
  %v1686 = vadd.f32 %v1684, %v1685
  %v1687 = vsel %vm1176, %v1499, 0.0
  %v1688 = vadd.f32 %v1686, %v1687
  %v1689 = vsel %vm1176, %v1500, 0.0
  %v1690 = vadd.f32 %v1688, %v1689
  %v1691 = vsel %vm1176, %v1501, 0.0
  %v1692 = vadd.f32 %v1690, %v1691
  %v1693 = vsel %vm1176, %v1502, 0.0
  %v1694 = vadd.f32 %v1692, %v1693
  %v1695 = vsel %vm1176, %v1503, 0.0
  %v1696 = vadd.f32 %v1694, %v1695
  %v1697 = vsel %vm1176, %v1504, 0.0
  %v1698 = vadd.f32 %v1696, %v1697
  %v1699 = vsel %vm1176, %v1505, 0.0
  %v1700 = vadd.f32 %v1698, %v1699
  %v1701 = vsel %vm1176, %v1506, 0.0
  %v1702 = vadd.f32 %v1700, %v1701
  %v1703 = vsel %vm1176, %v1507, 0.0
  %v1704 = vadd.f32 %v1702, %v1703
  %v1705 = vsel %vm1176, %v1508, 0.0
  %v1706 = vadd.f32 %v1704, %v1705
  %v1707 = vsel %vm1176, %v1509, 0.0
  %v1708 = vadd.f32 %v1706, %v1707
  %v1709 = vsel %vm1176, %v1510, 0.0
  %v1710 = vadd.f32 %v1708, %v1709
  %v1711 = vsel %vm1176, %v1511, 0.0
  %v1712 = vadd.f32 %v1710, %v1711
  %v1713 = vsel %vm1176, %v1512, 0.0
  %v1714 = vadd.f32 %v1712, %v1713
  %v1715 = vsel %vm1176, %v1513, 0.0
  %v1716 = vadd.f32 %v1714, %v1715
  %v1717 = vsel %vm1176, %v1514, 0.0
  %v1718 = vadd.f32 %v1716, %v1717
  %v1719 = vsel %vm1176, %v1515, 0.0
  %v1720 = vadd.f32 %v1718, %v1719
  %v1721 = vsel %vm1176, %v1516, 0.0
  %v1722 = vadd.f32 %v1720, %v1721
  %v1723 = vsel %vm1176, %v1517, 0.0
  %v1724 = vadd.f32 %v1722, %v1723
  %v1725 = vsel %vm1176, %v1518, 0.0
  %v1726 = vadd.f32 %v1724, %v1725
  %v1727 = vsel %vm1176, %v1519, 0.0
  %v1728 = vadd.f32 %v1726, %v1727
  %v1729 = vsel %vm1176, %v1520, 0.0
  %v1730 = vadd.f32 %v1728, %v1729
  %v1731 = vsel %vm1176, %v1521, 0.0
  %v1732 = vadd.f32 %v1730, %v1731
  %v1733 = vsel %vm1176, %v1522, 0.0
  %v1734 = vadd.f32 %v1732, %v1733
  %v1735 = vsel %vm1176, %v1523, 0.0
  %v1736 = vadd.f32 %v1734, %v1735
  %v1737 = vsel %vm1176, %v1524, 0.0
  %v1738 = vadd.f32 %v1736, %v1737
  %v1739 = vsel %vm1176, %v1525, 0.0
  %v1740 = vadd.f32 %v1738, %v1739
  %v1741 = vsel %vm1176, %v1526, 0.0
  %v1742 = vadd.f32 %v1740, %v1741
  %v1743 = vsel %vm1176, %v1527, 0.0
  %v1744 = vadd.f32 %v1742, %v1743
  %v1745 = vsel %vm1176, %v1528, 0.0
  %v1746 = vadd.f32 %v1744, %v1745
  %v1747 = vsel %vm1176, %v1529, 0.0
  %v1748 = vadd.f32 %v1746, %v1747
  %v1749 = vsel %vm1176, %v1530, 0.0
  %v1750 = vadd.f32 %v1748, %v1749
  %v1751 = vsel %vm1176, %v1531, 0.0
  %v1752 = vadd.f32 %v1750, %v1751
  %v1753 = vsel %vm1176, %v1532, 0.0
  %v1754 = vadd.f32 %v1752, %v1753
  %v1755 = vsel %vm1176, %v1533, 0.0
  %v1756 = vadd.f32 %v1754, %v1755
  %v1757 = vsel %vm1176, %v1534, 0.0
  %v1758 = vadd.f32 %v1756, %v1757
  %v1759 = vsel %vm1176, %v1535, 0.0
  %v1760 = vadd.f32 %v1758, %v1759
  %v1761 = vsel %vm1176, %v1536, 0.0
  %v1762 = vadd.f32 %v1760, %v1761
  %v1763 = vsel %vm1176, %v1537, 0.0
  %v1764 = vadd.f32 %v1762, %v1763
  %v1765 = vsel %vm1176, %v1538, 0.0
  %v1766 = vadd.f32 %v1764, %v1765
  %v1767 = vsel %vm1176, %v1539, 0.0
  %v1768 = vadd.f32 %v1766, %v1767
  %v1769 = vsel %vm1176, %v1540, 0.0
  %v1770 = vadd.f32 %v1768, %v1769
  %v1771 = vsel %vm1176, %v1541, 0.0
  %v1772 = vadd.f32 %v1770, %v1771
  %v1773 = vsel %vm1176, %v1542, 0.0
  %v1774 = vadd.f32 %v1772, %v1773
  %v1775 = vsel %vm1176, %v1543, 0.0
  %v1776 = vadd.f32 %v1774, %v1775
  %v1777 = vsel %vm1176, %v1544, 0.0
  %v1778 = vadd.f32 %v1776, %v1777
  %v1779 = vsel %vm1176, %v1545, 0.0
  %v1780 = vadd.f32 %v1778, %v1779
  %v1781 = vsel %vm1176, %v1546, 0.0
  %v1782 = vadd.f32 %v1780, %v1781
  %v1783 = vsel %vm1176, %v1547, 0.0
  %v1784 = vadd.f32 %v1782, %v1783
  %v1785 = vsel %vm1176, %v1548, 0.0
  %v1786 = vadd.f32 %v1784, %v1785
  %v1787 = vsel %vm1176, %v1549, 0.0
  %v1788 = vadd.f32 %v1786, %v1787
  %v1789 = vsel %vm1176, %v1550, 0.0
  %v1790 = vadd.f32 %v1788, %v1789
  %v1791 = vsel %vm1176, %v1551, 0.0
  %v1792 = vadd.f32 %v1790, %v1791
  %v1793 = vsel %vm1176, %v1552, 0.0
  %v1794 = vadd.f32 %v1792, %v1793
  %v1795 = vsel %vm1176, %v1553, 0.0
  %v1796 = vadd.f32 %v1794, %v1795
  %v1797 = vsel %vm1176, %v1554, 0.0
  %v1798 = vadd.f32 %v1796, %v1797
  %v1799 = vsel %vm1176, %v1555, 0.0
  %v1800 = vadd.f32 %v1798, %v1799
  %v1801 = vsel %vm1176, %v1556, 0.0
  %v1802 = vadd.f32 %v1800, %v1801
  %v1803 = vsel %vm1176, %v1557, 0.0
  %v1804 = vadd.f32 %v1802, %v1803
  %v1805 = vsel %vm1176, %v1558, 0.0
  %v1806 = vadd.f32 %v1804, %v1805
  %v1807 = vsel %vm1176, %v1559, 0.0
  %v1808 = vadd.f32 %v1806, %v1807
  %v1809 = vsel %vm1176, %v1560, 0.0
  %v1810 = vadd.f32 %v1808, %v1809
  %v1811 = vsel %vm1176, %v1561, 0.0
  %v1812 = vadd.f32 %v1810, %v1811
  %v1813 = vsel %vm1176, %v1562, 0.0
  %v1814 = vadd.f32 %v1812, %v1813
  %v1815 = vsel %vm1176, %v1563, 0.0
  %v1816 = vadd.f32 %v1814, %v1815
  %v1817 = vsel %vm1176, %v1564, 0.0
  %v1818 = vadd.f32 %v1816, %v1817
  %v1819 = vsel %vm1176, %v1565, 0.0
  %v1820 = vadd.f32 %v1818, %v1819
  %v1821 = vrot.slane %v1820, 4
  %v1822 = vadd.f32 %v1820, %v1821
  %v1823 = vrot.slane %v1822, 2
  %v1824 = vadd.f32 %v1822, %v1823
  %v1825 = vrot.slane %v1824, 1
  %v1826 = vadd.f32 %v1824, %v1825
  %vm1827 = vcmask 57344
  %1828 = vst.msk [vmem:[%s3] sm:$0x1] %vm1827, %v1437
  %1829 = vst.msk [vmem:[%s4] sm:$0x1] %vm1827, %v1826
  // Predicated region
  $region10: #{conv_block_forward.4} parent=0 // pred_check
    _
  $region11: #{conv_block_forward.4} parent=0 // pred_check_branch
    %1831 = sbr.rel (0) target = $region13
  $region12: #{conv_block_forward.4} parent=0 // pred_region
    _
  $region13: #{conv_block_forward.4} parent=0 // pred_fallthru
    _
  // Predicated region
  $region14: #{conv_block_forward.4} parent=0 // pred_check
    _
  $region15: #{conv_block_forward.4} parent=0 // pred_check_branch
    %1833 = sbr.rel (0) target = $region17
  $region16: #{conv_block_forward.4} parent=0 // pred_region
    _
  $region17: #{conv_block_forward.4} parent=0 // pred_fallthru
    _
  // Predicated region
  $region18: #{conv_block_forward.4} parent=0 // pred_check
    _
  $region19: #{conv_block_forward.4} parent=0 // pred_check_branch
    %1835 = sbr.rel (0) target = $region21
  $region20: #{conv_block_forward.4} parent=0 // pred_region
    _
  $region21: #{conv_block_forward.4} parent=0 // pred_fallthru
    _
  // Predicated region
  $region22: #{conv_block_forward.4} parent=0 // pred_check
    _
  $region23: #{conv_block_forward.4} parent=0 // pred_check_branch
    %1837 = sbr.rel (0) target = $region25
  $region24: #{conv_block_forward.4} parent=0 // pred_region
    _
  $region25: #{conv_block_forward.4} parent=0 // pred_fallthru
    _
  // Predicated region
  $region26: #{conv_block_forward.4} parent=0 // pred_check
    _
  $region27: #{conv_block_forward.4} parent=0 // pred_check_branch
    %1839 = sbr.rel (0) target = $region29
  $region28: #{conv_block_forward.4} parent=0 // pred_region
    _
  $region29: #{conv_block_forward.4} parent=0 // pred_fallthru
    _
  // Predicated region
  $region30: #{conv_block_forward.4} parent=0 // pred_check
    _
  $region31: #{conv_block_forward.4} parent=0 // pred_check_branch
    %1841 = sbr.rel (0) target = $region33
  $region32: #{conv_block_forward.4} parent=0 // pred_region
    _
  $region33: #{conv_block_forward.4} parent=0 // pred_fallthru
    _

// kernel: conv_block_forward.6
$region0: #{conv_block_forward.6}
  #allocation0 [shape = 'u32[]', space=smem, size = 0x4, offset = 0x4, fixed_abs, tag = 'smem constant byte address 0x4 - core index']
  #allocation1 [shape = 'u32[72,128]{1,0:T(1,128)}', space=vmem, size = 0x9000, scoped, tag = 'internal scratch']
  %s0 = inlined_call_operand.vmem [shape: bf16[1024,256], index: 0, kind: input, shape index: {}]
  %s1 = inlined_call_operand.vmem [shape: bf16[256,8], index: 1, kind: input, shape index: {}]
  %s2 = inlined_call_operand.vmem [shape: bf16[1024,8], index: 2, kind: output, shape index: {0}]
  %s3 = inlined_call_operand.vmem [shape: f32[1,1,8], index: 3, kind: output, shape index: {1}]
  %s4 = inlined_call_operand.vmem [shape: f32[1,1,8], index: 4, kind: output, shape index: {2}]
  %5 = xla_tuple %s2, %s3, %s4
  %s6 = sld [smem:[#allocation0]]
  $region34: #{conv_block_forward.6} parent=0
    _
  %s8 = ssub.s32 1, %s6
  %s9 = scalar_select 0, %s8, %s6
  // Predicated region
  $region2: #{conv_block_forward.6} parent=0 // pred_check
    _
  $region3: #{conv_block_forward.6} parent=0 // pred_check_branch
    %11 = sbr.rel (0) target = $region5
  $region4: #{conv_block_forward.6} parent=0 // pred_region
    _
  $region5: #{conv_block_forward.6} parent=0 // pred_fallthru
    _
  // Predicated region
  $region6: #{conv_block_forward.6} parent=0 // pred_check
    _
  $region7: #{conv_block_forward.6} parent=0 // pred_check_branch
    %13 = sbr.rel (0) target = $region9
  $region8: #{conv_block_forward.6} parent=0 // pred_region
    _
  $region9: #{conv_block_forward.6} parent=0 // pred_fallthru
    _
  %v14 = vld [vmem:[%s0] sm:$0xff]
  %v15 = vld [vmem:[%s0 + $0x8] sm:$0xff]
  %v16 = vld [vmem:[%s0 + $0x10] sm:$0xff]
  %v17 = vld [vmem:[%s0 + $0x18] sm:$0xff]
  %v18 = vld [vmem:[%s0 + $0x20] sm:$0xff]
  %v19 = vld [vmem:[%s0 + $0x28] sm:$0xff]
  %v20 = vld [vmem:[%s0 + $0x30] sm:$0xff]
  %v21 = vld [vmem:[%s0 + $0x38] sm:$0xff]
  %v22 = vld [vmem:[%s0 + $0x40] sm:$0xff]
  %v23 = vld [vmem:[%s0 + $0x48] sm:$0xff]
  %v24 = vld [vmem:[%s0 + $0x50] sm:$0xff]
  %v25 = vld [vmem:[%s0 + $0x58] sm:$0xff]
  %v26 = vld [vmem:[%s0 + $0x60] sm:$0xff]
  %v27 = vld [vmem:[%s0 + $0x68] sm:$0xff]
  %v28 = vld [vmem:[%s0 + $0x70] sm:$0xff]
  %v29 = vld [vmem:[%s0 + $0x78] sm:$0xff]
  %v30 = vld [vmem:[%s0 + $0x80] sm:$0xff]
  %v31 = vld [vmem:[%s0 + $0x88] sm:$0xff]
  %v32 = vld [vmem:[%s0 + $0x90] sm:$0xff]
  %v33 = vld [vmem:[%s0 + $0x98] sm:$0xff]
  %v34 = vld [vmem:[%s0 + $0xa0] sm:$0xff]
  %v35 = vld [vmem:[%s0 + $0xa8] sm:$0xff]
  %v36 = vld [vmem:[%s0 + $0xb0] sm:$0xff]
  %v37 = vld [vmem:[%s0 + $0xb8] sm:$0xff]
  %v38 = vld [vmem:[%s0 + $0xc0] sm:$0xff]
  %v39 = vld [vmem:[%s0 + $0xc8] sm:$0xff]
  %v40 = vld [vmem:[%s0 + $0xd0] sm:$0xff]
  %v41 = vld [vmem:[%s0 + $0xd8] sm:$0xff]
  %v42 = vld [vmem:[%s0 + $0xe0] sm:$0xff]
  %v43 = vld [vmem:[%s0 + $0xe8] sm:$0xff]
  %v44 = vld [vmem:[%s0 + $0xf0] sm:$0xff]
  %v45 = vld [vmem:[%s0 + $0xf8] sm:$0xff]
  %v46 = vld [vmem:[%s0 + $0x100] sm:$0xff]
  %v47 = vld [vmem:[%s0 + $0x108] sm:$0xff]
  %v48 = vld [vmem:[%s0 + $0x110] sm:$0xff]
  %v49 = vld [vmem:[%s0 + $0x118] sm:$0xff]
  %v50 = vld [vmem:[%s0 + $0x120] sm:$0xff]
  %v51 = vld [vmem:[%s0 + $0x128] sm:$0xff]
  %v52 = vld [vmem:[%s0 + $0x130] sm:$0xff]
  %v53 = vld [vmem:[%s0 + $0x138] sm:$0xff]
  %v54 = vld [vmem:[%s0 + $0x140] sm:$0xff]
  %v55 = vld [vmem:[%s0 + $0x148] sm:$0xff]
  %v56 = vld [vmem:[%s0 + $0x150] sm:$0xff]
  %v57 = vld [vmem:[%s0 + $0x158] sm:$0xff]
  %v58 = vld [vmem:[%s0 + $0x160] sm:$0xff]
  %v59 = vld [vmem:[%s0 + $0x168] sm:$0xff]
  %v60 = vld [vmem:[%s0 + $0x170] sm:$0xff]
  %v61 = vld [vmem:[%s0 + $0x178] sm:$0xff]
  %v62 = vld [vmem:[%s0 + $0x180] sm:$0xff]
  %v63 = vld [vmem:[%s0 + $0x188] sm:$0xff]
  %v64 = vld [vmem:[%s0 + $0x190] sm:$0xff]
  %v65 = vld [vmem:[%s0 + $0x198] sm:$0xff]
  %v66 = vld [vmem:[%s0 + $0x1a0] sm:$0xff]
  %v67 = vld [vmem:[%s0 + $0x1a8] sm:$0xff]
  %v68 = vld [vmem:[%s0 + $0x1b0] sm:$0xff]
  %v69 = vld [vmem:[%s0 + $0x1b8] sm:$0xff]
  %v70 = vld [vmem:[%s0 + $0x1c0] sm:$0xff]
  %v71 = vld [vmem:[%s0 + $0x1c8] sm:$0xff]
  %v72 = vld [vmem:[%s0 + $0x1d0] sm:$0xff]
  %v73 = vld [vmem:[%s0 + $0x1d8] sm:$0xff]
  %v74 = vld [vmem:[%s0 + $0x1e0] sm:$0xff]
  %v75 = vld [vmem:[%s0 + $0x1e8] sm:$0xff]
  %v76 = vld [vmem:[%s0 + $0x1f0] sm:$0xff]
  %v77 = vld [vmem:[%s0 + $0x1f8] sm:$0xff]
  %v78 = vld [vmem:[%s0 + $0x200] sm:$0xff]
  %v79 = vld [vmem:[%s0 + $0x208] sm:$0xff]
  %v80 = vld [vmem:[%s0 + $0x210] sm:$0xff]
  %v81 = vld [vmem:[%s0 + $0x218] sm:$0xff]
  %v82 = vld [vmem:[%s0 + $0x220] sm:$0xff]
  %v83 = vld [vmem:[%s0 + $0x228] sm:$0xff]
  %v84 = vld [vmem:[%s0 + $0x230] sm:$0xff]
  %v85 = vld [vmem:[%s0 + $0x238] sm:$0xff]
  %v86 = vld [vmem:[%s0 + $0x240] sm:$0xff]
  %v87 = vld [vmem:[%s0 + $0x248] sm:$0xff]
  %v88 = vld [vmem:[%s0 + $0x250] sm:$0xff]
  %v89 = vld [vmem:[%s0 + $0x258] sm:$0xff]
  %v90 = vld [vmem:[%s0 + $0x260] sm:$0xff]
  %v91 = vld [vmem:[%s0 + $0x268] sm:$0xff]
  %v92 = vld [vmem:[%s0 + $0x270] sm:$0xff]
  %v93 = vld [vmem:[%s0 + $0x278] sm:$0xff]
  %v94 = vld [vmem:[%s0 + $0x280] sm:$0xff]
  %v95 = vld [vmem:[%s0 + $0x288] sm:$0xff]
  %v96 = vld [vmem:[%s0 + $0x290] sm:$0xff]
  %v97 = vld [vmem:[%s0 + $0x298] sm:$0xff]
  %v98 = vld [vmem:[%s0 + $0x2a0] sm:$0xff]
  %v99 = vld [vmem:[%s0 + $0x2a8] sm:$0xff]
  %v100 = vld [vmem:[%s0 + $0x2b0] sm:$0xff]
  %v101 = vld [vmem:[%s0 + $0x2b8] sm:$0xff]
  %v102 = vld [vmem:[%s0 + $0x2c0] sm:$0xff]
  %v103 = vld [vmem:[%s0 + $0x2c8] sm:$0xff]
  %v104 = vld [vmem:[%s0 + $0x2d0] sm:$0xff]
  %v105 = vld [vmem:[%s0 + $0x2d8] sm:$0xff]
  %v106 = vld [vmem:[%s0 + $0x2e0] sm:$0xff]
  %v107 = vld [vmem:[%s0 + $0x2e8] sm:$0xff]
  %v108 = vld [vmem:[%s0 + $0x2f0] sm:$0xff]
  %v109 = vld [vmem:[%s0 + $0x2f8] sm:$0xff]
  %v110 = vld [vmem:[%s0 + $0x300] sm:$0xff]
  %v111 = vld [vmem:[%s0 + $0x308] sm:$0xff]
  %v112 = vld [vmem:[%s0 + $0x310] sm:$0xff]
  %v113 = vld [vmem:[%s0 + $0x318] sm:$0xff]
  %v114 = vld [vmem:[%s0 + $0x320] sm:$0xff]
  %v115 = vld [vmem:[%s0 + $0x328] sm:$0xff]
  %v116 = vld [vmem:[%s0 + $0x330] sm:$0xff]
  %v117 = vld [vmem:[%s0 + $0x338] sm:$0xff]
  %v118 = vld [vmem:[%s0 + $0x340] sm:$0xff]
  %v119 = vld [vmem:[%s0 + $0x348] sm:$0xff]
  %v120 = vld [vmem:[%s0 + $0x350] sm:$0xff]
  %v121 = vld [vmem:[%s0 + $0x358] sm:$0xff]
  %v122 = vld [vmem:[%s0 + $0x360] sm:$0xff]
  %v123 = vld [vmem:[%s0 + $0x368] sm:$0xff]
  %v124 = vld [vmem:[%s0 + $0x370] sm:$0xff]
  %v125 = vld [vmem:[%s0 + $0x378] sm:$0xff]
  %v126 = vld [vmem:[%s0 + $0x380] sm:$0xff]
  %v127 = vld [vmem:[%s0 + $0x388] sm:$0xff]
  %v128 = vld [vmem:[%s0 + $0x390] sm:$0xff]
  %v129 = vld [vmem:[%s0 + $0x398] sm:$0xff]
  %v130 = vld [vmem:[%s0 + $0x3a0] sm:$0xff]
  %v131 = vld [vmem:[%s0 + $0x3a8] sm:$0xff]
  %v132 = vld [vmem:[%s0 + $0x3b0] sm:$0xff]
  %v133 = vld [vmem:[%s0 + $0x3b8] sm:$0xff]
  %v134 = vld [vmem:[%s0 + $0x3c0] sm:$0xff]
  %v135 = vld [vmem:[%s0 + $0x3c8] sm:$0xff]
  %v136 = vld [vmem:[%s0 + $0x3d0] sm:$0xff]
  %v137 = vld [vmem:[%s0 + $0x3d8] sm:$0xff]
  %v138 = vld [vmem:[%s0 + $0x3e0] sm:$0xff]
  %v139 = vld [vmem:[%s0 + $0x3e8] sm:$0xff]
  %v140 = vld [vmem:[%s0 + $0x3f0] sm:$0xff]
  %v141 = vld [vmem:[%s0 + $0x3f8] sm:$0xff]
  %v142 = vld [vmem:[%s1] sm:$0xf]
  %v143 = vld [vmem:[%s1 + $0x4] sm:$0xf]
  %v144 = vld [vmem:[%s1 + $0x8] sm:$0xf]
  %v145 = vld [vmem:[%s1 + $0xc] sm:$0xf]
  %v146 = vld [vmem:[%s1 + $0x10] sm:$0xf]
  %v147 = vld [vmem:[%s1 + $0x14] sm:$0xf]
  %v148 = vld [vmem:[%s1 + $0x18] sm:$0xf]
  %v149 = vld [vmem:[%s1 + $0x1c] sm:$0xf]
  %v150 = vld [vmem:[%s1 + $0x20] sm:$0xf]
  %v151 = vld [vmem:[%s1 + $0x24] sm:$0xf]
  %v152 = vld [vmem:[%s1 + $0x28] sm:$0xf]
  %v153 = vld [vmem:[%s1 + $0x2c] sm:$0xf]
  %v154 = vld [vmem:[%s1 + $0x30] sm:$0xf]
  %v155 = vld [vmem:[%s1 + $0x34] sm:$0xf]
  %v156 = vld [vmem:[%s1 + $0x38] sm:$0xf]
  %v157 = vld [vmem:[%s1 + $0x3c] sm:$0xf]
  %v158 = vld [vmem:[%s1 + $0x40] sm:$0xf]
  %v159 = vld [vmem:[%s1 + $0x44] sm:$0xf]
  %v160 = vld [vmem:[%s1 + $0x48] sm:$0xf]
  %v161 = vld [vmem:[%s1 + $0x4c] sm:$0xf]
  %v162 = vld [vmem:[%s1 + $0x50] sm:$0xf]
  %v163 = vld [vmem:[%s1 + $0x54] sm:$0xf]
  %v164 = vld [vmem:[%s1 + $0x58] sm:$0xf]
  %v165 = vld [vmem:[%s1 + $0x5c] sm:$0xf]
  %v166 = vld [vmem:[%s1 + $0x60] sm:$0xf]
  %v167 = vld [vmem:[%s1 + $0x64] sm:$0xf]
  %v168 = vld [vmem:[%s1 + $0x68] sm:$0xf]
  %v169 = vld [vmem:[%s1 + $0x6c] sm:$0xf]
  %v170 = vld [vmem:[%s1 + $0x70] sm:$0xf]
  %v171 = vld [vmem:[%s1 + $0x74] sm:$0xf]
  %v172 = vld [vmem:[%s1 + $0x78] sm:$0xf]
  %v173 = vld [vmem:[%s1 + $0x7c] sm:$0xf]
  %v302 = vunpack.c.l.b16 %v14
  %v303 = vunpack.c.h.b16 %v14
  %v304 = vunpack.c.l.b16 %v15
  %v305 = vunpack.c.h.b16 %v15
  %v306 = vunpack.c.l.b16 %v16
  %v307 = vunpack.c.h.b16 %v16
  %v308 = vunpack.c.l.b16 %v17
  %v309 = vunpack.c.h.b16 %v17
  %v310 = vunpack.c.l.b16 %v18
  %v311 = vunpack.c.h.b16 %v18
  %v312 = vunpack.c.l.b16 %v19
  %v313 = vunpack.c.h.b16 %v19
  %v314 = vunpack.c.l.b16 %v20
  %v315 = vunpack.c.h.b16 %v20
  %v316 = vunpack.c.l.b16 %v21
  %v317 = vunpack.c.h.b16 %v21
  %v318 = vunpack.c.l.b16 %v22
  %v319 = vunpack.c.h.b16 %v22
  %v320 = vunpack.c.l.b16 %v23
  %v321 = vunpack.c.h.b16 %v23
  %v322 = vunpack.c.l.b16 %v24
  %v323 = vunpack.c.h.b16 %v24
  %v324 = vunpack.c.l.b16 %v25
  %v325 = vunpack.c.h.b16 %v25
  %v326 = vunpack.c.l.b16 %v26
  %v327 = vunpack.c.h.b16 %v26
  %v328 = vunpack.c.l.b16 %v27
  %v329 = vunpack.c.h.b16 %v27
  %v330 = vunpack.c.l.b16 %v28
  %v331 = vunpack.c.h.b16 %v28
  %v332 = vunpack.c.l.b16 %v29
  %v333 = vunpack.c.h.b16 %v29
  %v334 = vunpack.c.l.b16 %v30
  %v335 = vunpack.c.h.b16 %v30
  %v336 = vunpack.c.l.b16 %v31
  %v337 = vunpack.c.h.b16 %v31
  %v338 = vunpack.c.l.b16 %v32
  %v339 = vunpack.c.h.b16 %v32
  %v340 = vunpack.c.l.b16 %v33
  %v341 = vunpack.c.h.b16 %v33
  %v342 = vunpack.c.l.b16 %v34
  %v343 = vunpack.c.h.b16 %v34
  %v344 = vunpack.c.l.b16 %v35
  %v345 = vunpack.c.h.b16 %v35
  %v346 = vunpack.c.l.b16 %v36
  %v347 = vunpack.c.h.b16 %v36
  %v348 = vunpack.c.l.b16 %v37
  %v349 = vunpack.c.h.b16 %v37
  %v350 = vunpack.c.l.b16 %v38
  %v351 = vunpack.c.h.b16 %v38
  %v352 = vunpack.c.l.b16 %v39
  %v353 = vunpack.c.h.b16 %v39
  %v354 = vunpack.c.l.b16 %v40
  %v355 = vunpack.c.h.b16 %v40
  %v356 = vunpack.c.l.b16 %v41
  %v357 = vunpack.c.h.b16 %v41
  %v358 = vunpack.c.l.b16 %v42
  %v359 = vunpack.c.h.b16 %v42
  %v360 = vunpack.c.l.b16 %v43
  %v361 = vunpack.c.h.b16 %v43
  %v362 = vunpack.c.l.b16 %v44
  %v363 = vunpack.c.h.b16 %v44
  %v364 = vunpack.c.l.b16 %v45
  %v365 = vunpack.c.h.b16 %v45
  %v366 = vunpack.c.l.b16 %v46
  %v367 = vunpack.c.h.b16 %v46
  %v368 = vunpack.c.l.b16 %v47
  %v369 = vunpack.c.h.b16 %v47
  %v370 = vunpack.c.l.b16 %v48
  %v371 = vunpack.c.h.b16 %v48
  %v372 = vunpack.c.l.b16 %v49
  %v373 = vunpack.c.h.b16 %v49
  %v374 = vunpack.c.l.b16 %v50
  %v375 = vunpack.c.h.b16 %v50
  %v376 = vunpack.c.l.b16 %v51
  %v377 = vunpack.c.h.b16 %v51
  %v378 = vunpack.c.l.b16 %v52
  %v379 = vunpack.c.h.b16 %v52
  %v380 = vunpack.c.l.b16 %v53
  %v381 = vunpack.c.h.b16 %v53
  %v382 = vunpack.c.l.b16 %v54
  %v383 = vunpack.c.h.b16 %v54
  %v384 = vunpack.c.l.b16 %v55
  %v385 = vunpack.c.h.b16 %v55
  %v386 = vunpack.c.l.b16 %v56
  %v387 = vunpack.c.h.b16 %v56
  %v388 = vunpack.c.l.b16 %v57
  %v389 = vunpack.c.h.b16 %v57
  %v390 = vunpack.c.l.b16 %v58
  %v391 = vunpack.c.h.b16 %v58
  %v392 = vunpack.c.l.b16 %v59
  %v393 = vunpack.c.h.b16 %v59
  %v394 = vunpack.c.l.b16 %v60
  %v395 = vunpack.c.h.b16 %v60
  %v396 = vunpack.c.l.b16 %v61
  %v397 = vunpack.c.h.b16 %v61
  %v398 = vunpack.c.l.b16 %v62
  %v399 = vunpack.c.h.b16 %v62
  %v400 = vunpack.c.l.b16 %v63
  %v401 = vunpack.c.h.b16 %v63
  %v402 = vunpack.c.l.b16 %v64
  %v403 = vunpack.c.h.b16 %v64
  %v404 = vunpack.c.l.b16 %v65
  %v405 = vunpack.c.h.b16 %v65
  %v406 = vunpack.c.l.b16 %v66
  %v407 = vunpack.c.h.b16 %v66
  %v408 = vunpack.c.l.b16 %v67
  %v409 = vunpack.c.h.b16 %v67
  %v410 = vunpack.c.l.b16 %v68
  %v411 = vunpack.c.h.b16 %v68
  %v412 = vunpack.c.l.b16 %v69
  %v413 = vunpack.c.h.b16 %v69
  %v414 = vunpack.c.l.b16 %v70
  %v415 = vunpack.c.h.b16 %v70
  %v416 = vunpack.c.l.b16 %v71
  %v417 = vunpack.c.h.b16 %v71
  %v418 = vunpack.c.l.b16 %v72
  %v419 = vunpack.c.h.b16 %v72
  %v420 = vunpack.c.l.b16 %v73
  %v421 = vunpack.c.h.b16 %v73
  %v422 = vunpack.c.l.b16 %v74
  %v423 = vunpack.c.h.b16 %v74
  %v424 = vunpack.c.l.b16 %v75
  %v425 = vunpack.c.h.b16 %v75
  %v426 = vunpack.c.l.b16 %v76
  %v427 = vunpack.c.h.b16 %v76
  %v428 = vunpack.c.l.b16 %v77
  %v429 = vunpack.c.h.b16 %v77
  %v430 = vunpack.c.l.b16 %v78
  %v431 = vunpack.c.h.b16 %v78
  %v432 = vunpack.c.l.b16 %v79
  %v433 = vunpack.c.h.b16 %v79
  %v434 = vunpack.c.l.b16 %v80
  %v435 = vunpack.c.h.b16 %v80
  %v436 = vunpack.c.l.b16 %v81
  %v437 = vunpack.c.h.b16 %v81
  %v438 = vunpack.c.l.b16 %v82
  %v439 = vunpack.c.h.b16 %v82
  %v440 = vunpack.c.l.b16 %v83
  %v441 = vunpack.c.h.b16 %v83
  %v442 = vunpack.c.l.b16 %v84
  %v443 = vunpack.c.h.b16 %v84
  %v444 = vunpack.c.l.b16 %v85
  %v445 = vunpack.c.h.b16 %v85
  %v446 = vunpack.c.l.b16 %v86
  %v447 = vunpack.c.h.b16 %v86
  %v448 = vunpack.c.l.b16 %v87
  %v449 = vunpack.c.h.b16 %v87
  %v450 = vunpack.c.l.b16 %v88
  %v451 = vunpack.c.h.b16 %v88
  %v452 = vunpack.c.l.b16 %v89
  %v453 = vunpack.c.h.b16 %v89
  %v454 = vunpack.c.l.b16 %v90
  %v455 = vunpack.c.h.b16 %v90
  %v456 = vunpack.c.l.b16 %v91
  %v457 = vunpack.c.h.b16 %v91
  %v458 = vunpack.c.l.b16 %v92
  %v459 = vunpack.c.h.b16 %v92
  %v460 = vunpack.c.l.b16 %v93
  %v461 = vunpack.c.h.b16 %v93
  %v462 = vunpack.c.l.b16 %v94
  %v463 = vunpack.c.h.b16 %v94
  %v464 = vunpack.c.l.b16 %v95
  %v465 = vunpack.c.h.b16 %v95
  %v466 = vunpack.c.l.b16 %v96
  %v467 = vunpack.c.h.b16 %v96
  %v468 = vunpack.c.l.b16 %v97
  %v469 = vunpack.c.h.b16 %v97
  %v470 = vunpack.c.l.b16 %v98
  %v471 = vunpack.c.h.b16 %v98
  %v472 = vunpack.c.l.b16 %v99
  %v473 = vunpack.c.h.b16 %v99
  %v474 = vunpack.c.l.b16 %v100
  %v475 = vunpack.c.h.b16 %v100
  %v476 = vunpack.c.l.b16 %v101
  %v477 = vunpack.c.h.b16 %v101
  %v478 = vunpack.c.l.b16 %v102
  %v479 = vunpack.c.h.b16 %v102
  %v480 = vunpack.c.l.b16 %v103
  %v481 = vunpack.c.h.b16 %v103
  %v482 = vunpack.c.l.b16 %v104
  %v483 = vunpack.c.h.b16 %v104
  %v484 = vunpack.c.l.b16 %v105
  %v485 = vunpack.c.h.b16 %v105
  %v486 = vunpack.c.l.b16 %v106
  %v487 = vunpack.c.h.b16 %v106
  %v488 = vunpack.c.l.b16 %v107
  %v489 = vunpack.c.h.b16 %v107
  %v490 = vunpack.c.l.b16 %v108
  %v491 = vunpack.c.h.b16 %v108
  %v492 = vunpack.c.l.b16 %v109
  %v493 = vunpack.c.h.b16 %v109
  %v494 = vunpack.c.l.b16 %v110
  %v495 = vunpack.c.h.b16 %v110
  %v496 = vunpack.c.l.b16 %v111
  %v497 = vunpack.c.h.b16 %v111
  %v498 = vunpack.c.l.b16 %v112
  %v499 = vunpack.c.h.b16 %v112
  %v500 = vunpack.c.l.b16 %v113
  %v501 = vunpack.c.h.b16 %v113
  %v502 = vunpack.c.l.b16 %v114
  %v503 = vunpack.c.h.b16 %v114
  %v504 = vunpack.c.l.b16 %v115
  %v505 = vunpack.c.h.b16 %v115
  %v506 = vunpack.c.l.b16 %v116
  %v507 = vunpack.c.h.b16 %v116
  %v508 = vunpack.c.l.b16 %v117
  %v509 = vunpack.c.h.b16 %v117
  %v510 = vunpack.c.l.b16 %v118
  %v511 = vunpack.c.h.b16 %v118
  %v512 = vunpack.c.l.b16 %v119
  %v513 = vunpack.c.h.b16 %v119
  %v514 = vunpack.c.l.b16 %v120
  %v515 = vunpack.c.h.b16 %v120
  %v516 = vunpack.c.l.b16 %v121
  %v517 = vunpack.c.h.b16 %v121
  %v518 = vunpack.c.l.b16 %v122
  %v519 = vunpack.c.h.b16 %v122
  %v520 = vunpack.c.l.b16 %v123
  %v521 = vunpack.c.h.b16 %v123
  %v522 = vunpack.c.l.b16 %v124
  %v523 = vunpack.c.h.b16 %v124
  %v524 = vunpack.c.l.b16 %v125
  %v525 = vunpack.c.h.b16 %v125
  %v526 = vunpack.c.l.b16 %v126
  %v527 = vunpack.c.h.b16 %v126
  %v528 = vunpack.c.l.b16 %v127
  %v529 = vunpack.c.h.b16 %v127
  %v530 = vunpack.c.l.b16 %v128
  %v531 = vunpack.c.h.b16 %v128
  %v532 = vunpack.c.l.b16 %v129
  %v533 = vunpack.c.h.b16 %v129
  %v534 = vunpack.c.l.b16 %v130
  %v535 = vunpack.c.h.b16 %v130
  %v536 = vunpack.c.l.b16 %v131
  %v537 = vunpack.c.h.b16 %v131
  %v538 = vunpack.c.l.b16 %v132
  %v539 = vunpack.c.h.b16 %v132
  %v540 = vunpack.c.l.b16 %v133
  %v541 = vunpack.c.h.b16 %v133
  %v542 = vunpack.c.l.b16 %v134
  %v543 = vunpack.c.h.b16 %v134
  %v544 = vunpack.c.l.b16 %v135
  %v545 = vunpack.c.h.b16 %v135
  %v546 = vunpack.c.l.b16 %v136
  %v547 = vunpack.c.h.b16 %v136
  %v548 = vunpack.c.l.b16 %v137
  %v549 = vunpack.c.h.b16 %v137
  %v550 = vunpack.c.l.b16 %v138
  %v551 = vunpack.c.h.b16 %v138
  %v552 = vunpack.c.l.b16 %v139
  %v553 = vunpack.c.h.b16 %v139
  %v554 = vunpack.c.l.b16 %v140
  %v555 = vunpack.c.h.b16 %v140
  %v556 = vunpack.c.l.b16 %v141
  %v557 = vunpack.c.h.b16 %v141
  %v558 = vpack.c.b16 %v304, %v302
  %v559 = vpack.c.b16 %v305, %v303
  %v560 = vpack.c.b16 %v308, %v306
  %v561 = vpack.c.b16 %v309, %v307
  %v562 = vpack.c.b16 %v312, %v310
  %v563 = vpack.c.b16 %v313, %v311
  %v564 = vpack.c.b16 %v316, %v314
  %v565 = vpack.c.b16 %v317, %v315
  %v566 = vpack.c.b16 %v320, %v318
  %v567 = vpack.c.b16 %v321, %v319
  %v568 = vpack.c.b16 %v324, %v322
  %v569 = vpack.c.b16 %v325, %v323
  %v570 = vpack.c.b16 %v328, %v326
  %v571 = vpack.c.b16 %v329, %v327
  %v572 = vpack.c.b16 %v332, %v330
  %v573 = vpack.c.b16 %v333, %v331
  %v574 = vpack.c.b16 %v336, %v334
  %v575 = vpack.c.b16 %v337, %v335
  %v576 = vpack.c.b16 %v340, %v338
  %v577 = vpack.c.b16 %v341, %v339
  %v578 = vpack.c.b16 %v344, %v342
  %v579 = vpack.c.b16 %v345, %v343
  %v580 = vpack.c.b16 %v348, %v346
  %v581 = vpack.c.b16 %v349, %v347
  %v582 = vpack.c.b16 %v352, %v350
  %v583 = vpack.c.b16 %v353, %v351
  %v584 = vpack.c.b16 %v356, %v354
  %v585 = vpack.c.b16 %v357, %v355
  %v586 = vpack.c.b16 %v360, %v358
  %v587 = vpack.c.b16 %v361, %v359
  %v588 = vpack.c.b16 %v364, %v362
  %v589 = vpack.c.b16 %v365, %v363
  %v590 = vpack.c.b16 %v368, %v366
  %v591 = vpack.c.b16 %v369, %v367
  %v592 = vpack.c.b16 %v372, %v370
  %v593 = vpack.c.b16 %v373, %v371
  %v594 = vpack.c.b16 %v376, %v374
  %v595 = vpack.c.b16 %v377, %v375
  %v596 = vpack.c.b16 %v380, %v378
  %v597 = vpack.c.b16 %v381, %v379
  %v598 = vpack.c.b16 %v384, %v382
  %v599 = vpack.c.b16 %v385, %v383
  %v600 = vpack.c.b16 %v388, %v386
  %v601 = vpack.c.b16 %v389, %v387
  %v602 = vpack.c.b16 %v392, %v390
  %v603 = vpack.c.b16 %v393, %v391
  %v604 = vpack.c.b16 %v396, %v394
  %v605 = vpack.c.b16 %v397, %v395
  %v606 = vpack.c.b16 %v400, %v398
  %v607 = vpack.c.b16 %v401, %v399
  %v608 = vpack.c.b16 %v404, %v402
  %v609 = vpack.c.b16 %v405, %v403
  %v610 = vpack.c.b16 %v408, %v406
  %v611 = vpack.c.b16 %v409, %v407
  %v612 = vpack.c.b16 %v412, %v410
  %v613 = vpack.c.b16 %v413, %v411
  %v614 = vpack.c.b16 %v416, %v414
  %v615 = vpack.c.b16 %v417, %v415
  %v616 = vpack.c.b16 %v420, %v418
  %v617 = vpack.c.b16 %v421, %v419
  %v618 = vpack.c.b16 %v424, %v422
  %v619 = vpack.c.b16 %v425, %v423
  %v620 = vpack.c.b16 %v428, %v426
  %v621 = vpack.c.b16 %v429, %v427
  %v622 = vpack.c.b16 %v432, %v430
  %v623 = vpack.c.b16 %v433, %v431
  %v624 = vpack.c.b16 %v436, %v434
  %v625 = vpack.c.b16 %v437, %v435
  %v626 = vpack.c.b16 %v440, %v438
  %v627 = vpack.c.b16 %v441, %v439
  %v628 = vpack.c.b16 %v444, %v442
  %v629 = vpack.c.b16 %v445, %v443
  %v630 = vpack.c.b16 %v448, %v446
  %v631 = vpack.c.b16 %v449, %v447
  %v632 = vpack.c.b16 %v452, %v450
  %v633 = vpack.c.b16 %v453, %v451
  %v634 = vpack.c.b16 %v456, %v454
  %v635 = vpack.c.b16 %v457, %v455
  %v636 = vpack.c.b16 %v460, %v458
  %v637 = vpack.c.b16 %v461, %v459
  %v638 = vpack.c.b16 %v464, %v462
  %v639 = vpack.c.b16 %v465, %v463
  %v640 = vpack.c.b16 %v468, %v466
  %v641 = vpack.c.b16 %v469, %v467
  %v642 = vpack.c.b16 %v472, %v470
  %v643 = vpack.c.b16 %v473, %v471
  %v644 = vpack.c.b16 %v476, %v474
  %v645 = vpack.c.b16 %v477, %v475
  %v646 = vpack.c.b16 %v480, %v478
  %v647 = vpack.c.b16 %v481, %v479
  %v648 = vpack.c.b16 %v484, %v482
  %v649 = vpack.c.b16 %v485, %v483
  %v650 = vpack.c.b16 %v488, %v486
  %v651 = vpack.c.b16 %v489, %v487
  %v652 = vpack.c.b16 %v492, %v490
  %v653 = vpack.c.b16 %v493, %v491
  %v654 = vpack.c.b16 %v496, %v494
  %v655 = vpack.c.b16 %v497, %v495
  %v656 = vpack.c.b16 %v500, %v498
  %v657 = vpack.c.b16 %v501, %v499
  %v658 = vpack.c.b16 %v504, %v502
  %v659 = vpack.c.b16 %v505, %v503
  %v660 = vpack.c.b16 %v508, %v506
  %v661 = vpack.c.b16 %v509, %v507
  %v662 = vpack.c.b16 %v512, %v510
  %v663 = vpack.c.b16 %v513, %v511
  %v664 = vpack.c.b16 %v516, %v514
  %v665 = vpack.c.b16 %v517, %v515
  %v666 = vpack.c.b16 %v520, %v518
  %v667 = vpack.c.b16 %v521, %v519
  %v668 = vpack.c.b16 %v524, %v522
  %v669 = vpack.c.b16 %v525, %v523
  %v670 = vpack.c.b16 %v528, %v526
  %v671 = vpack.c.b16 %v529, %v527
  %v672 = vpack.c.b16 %v532, %v530
  %v673 = vpack.c.b16 %v533, %v531
  %v674 = vpack.c.b16 %v536, %v534
  %v675 = vpack.c.b16 %v537, %v535
  %v676 = vpack.c.b16 %v540, %v538
  %v677 = vpack.c.b16 %v541, %v539
  %v678 = vpack.c.b16 %v544, %v542
  %v679 = vpack.c.b16 %v545, %v543
  %v680 = vpack.c.b16 %v548, %v546
  %v681 = vpack.c.b16 %v549, %v547
  %v682 = vpack.c.b16 %v552, %v550
  %v683 = vpack.c.b16 %v553, %v551
  %v684 = vpack.c.b16 %v556, %v554
  %v685 = vpack.c.b16 %v557, %v555
  %v846 = vunpack.c.l.b16 %v142
  %v847 = vunpack.c.l.b16 %v143
  %v848 = vunpack.c.l.b16 %v144
  %v849 = vunpack.c.l.b16 %v145
  %v850 = vunpack.c.l.b16 %v146
  %v851 = vunpack.c.l.b16 %v147
  %v852 = vunpack.c.l.b16 %v148
  %v853 = vunpack.c.l.b16 %v149
  %v854 = vunpack.c.l.b16 %v150
  %v855 = vunpack.c.l.b16 %v151
  %v856 = vunpack.c.l.b16 %v152
  %v857 = vunpack.c.l.b16 %v153
  %v858 = vunpack.c.l.b16 %v154
  %v859 = vunpack.c.l.b16 %v155
  %v860 = vunpack.c.l.b16 %v156
  %v861 = vunpack.c.l.b16 %v157
  %v862 = vunpack.c.l.b16 %v158
  %v863 = vunpack.c.l.b16 %v159
  %v864 = vunpack.c.l.b16 %v160
  %v865 = vunpack.c.l.b16 %v161
  %v866 = vunpack.c.l.b16 %v162
  %v867 = vunpack.c.l.b16 %v163
  %v868 = vunpack.c.l.b16 %v164
  %v869 = vunpack.c.l.b16 %v165
  %v870 = vunpack.c.l.b16 %v166
  %v871 = vunpack.c.l.b16 %v167
  %v872 = vunpack.c.l.b16 %v168
  %v873 = vunpack.c.l.b16 %v169
  %v874 = vunpack.c.l.b16 %v170
  %v875 = vunpack.c.l.b16 %v171
  %v876 = vunpack.c.l.b16 %v172
  %v877 = vunpack.c.l.b16 %v173
  %v878 = vpack.c.b16 %v847, %v846
  %v879 = vpack.c.b16 %v849, %v848
  %v880 = vpack.c.b16 %v851, %v850
  %v881 = vpack.c.b16 %v853, %v852
  %v882 = vpack.c.b16 %v855, %v854
  %v883 = vpack.c.b16 %v857, %v856
  %v884 = vpack.c.b16 %v859, %v858
  %v885 = vpack.c.b16 %v861, %v860
  %v886 = vpack.c.b16 %v863, %v862
  %v887 = vpack.c.b16 %v865, %v864
  %v888 = vpack.c.b16 %v867, %v866
  %v889 = vpack.c.b16 %v869, %v868
  %v890 = vpack.c.b16 %v871, %v870
  %v891 = vpack.c.b16 %v873, %v872
  %v892 = vpack.c.b16 %v875, %v874
  %v893 = vpack.c.b16 %v877, %v876
  %910 = vmatpush.bf16.msra.mxu0 %v885
  %911 = vmatpush.bf16.msra.mxu0 %v884
  %912 = vmatpush.bf16.msra.mxu0 %v883
  %913 = vmatpush.bf16.msra.mxu0 %v882
  %914 = vmatpush.bf16.msra.mxu0 %v881
  %915 = vmatpush.bf16.msra.mxu0 %v880
  %916 = vmatpush.bf16.msra.mxu0 %v879
  %917 = vmatpush.bf16.msra.mxu0 %v878
  %918 = vmatmul.bf16.gmra.mxu0 %v558
  %v919 = vpop.f32.mrf.mxu0
  %v920 = vadd.f32 0.0, %v919
  %v921 = vpop.f32.mrf.mxu0
  %v922 = vadd.f32 0.0, %v921
  %923 = vmatmul.bf16.gmra.mxu0 %v560
  %v924 = vpop.f32.mrf.mxu0
  %v925 = vadd.f32 0.0, %v924
  %v926 = vpop.f32.mrf.mxu0
  %v927 = vadd.f32 0.0, %v926
  %928 = vmatmul.bf16.gmra.mxu0 %v562
  %v929 = vpop.f32.mrf.mxu0
  %v930 = vadd.f32 0.0, %v929
  %v931 = vpop.f32.mrf.mxu0
  %v932 = vadd.f32 0.0, %v931
  %933 = vmatmul.bf16.gmra.mxu0 %v564
  %v934 = vpop.f32.mrf.mxu0
  %v935 = vadd.f32 0.0, %v934
  %v936 = vpop.f32.mrf.mxu0
  %v937 = vadd.f32 0.0, %v936
  %938 = vmatmul.bf16.gmra.mxu0 %v566
  %v939 = vpop.f32.mrf.mxu0
  %v940 = vadd.f32 0.0, %v939
  %v941 = vpop.f32.mrf.mxu0
  %v942 = vadd.f32 0.0, %v941
  %943 = vmatmul.bf16.gmra.mxu0 %v568
  %v944 = vpop.f32.mrf.mxu0
  %v945 = vadd.f32 0.0, %v944
  %v946 = vpop.f32.mrf.mxu0
  %v947 = vadd.f32 0.0, %v946
  %948 = vmatmul.bf16.gmra.mxu0 %v570
  %v949 = vpop.f32.mrf.mxu0
  %v950 = vadd.f32 0.0, %v949
  %v951 = vpop.f32.mrf.mxu0
  %v952 = vadd.f32 0.0, %v951
  %953 = vmatmul.bf16.gmra.mxu0 %v572
  %v954 = vpop.f32.mrf.mxu0
  %v955 = vadd.f32 0.0, %v954
  %v956 = vpop.f32.mrf.mxu0
  %v957 = vadd.f32 0.0, %v956
  %958 = vmatmul.bf16.gmra.mxu0 %v574
  %v959 = vpop.f32.mrf.mxu0
  %v960 = vadd.f32 0.0, %v959
  %v961 = vpop.f32.mrf.mxu0
  %v962 = vadd.f32 0.0, %v961
  %963 = vmatmul.bf16.gmra.mxu0 %v576
  %v964 = vpop.f32.mrf.mxu0
  %v965 = vadd.f32 0.0, %v964
  %v966 = vpop.f32.mrf.mxu0
  %v967 = vadd.f32 0.0, %v966
  %968 = vmatmul.bf16.gmra.mxu0 %v578
  %v969 = vpop.f32.mrf.mxu0
  %v970 = vadd.f32 0.0, %v969
  %v971 = vpop.f32.mrf.mxu0
  %v972 = vadd.f32 0.0, %v971
  %973 = vmatmul.bf16.gmra.mxu0 %v580
  %v974 = vpop.f32.mrf.mxu0
  %v975 = vadd.f32 0.0, %v974
  %v976 = vpop.f32.mrf.mxu0
  %v977 = vadd.f32 0.0, %v976
  %978 = vmatmul.bf16.gmra.mxu0 %v582
  %v979 = vpop.f32.mrf.mxu0
  %v980 = vadd.f32 0.0, %v979
  %v981 = vpop.f32.mrf.mxu0
  %v982 = vadd.f32 0.0, %v981
  %983 = vmatmul.bf16.gmra.mxu0 %v584
  %v984 = vpop.f32.mrf.mxu0
  %v985 = vadd.f32 0.0, %v984
  %v986 = vpop.f32.mrf.mxu0
  %v987 = vadd.f32 0.0, %v986
  %988 = vmatmul.bf16.gmra.mxu0 %v586
  %v989 = vpop.f32.mrf.mxu0
  %v990 = vadd.f32 0.0, %v989
  %v991 = vpop.f32.mrf.mxu0
  %v992 = vadd.f32 0.0, %v991
  %993 = vmatmul.bf16.gmra.mxu0 %v588
  %v994 = vpop.f32.mrf.mxu0
  %v995 = vadd.f32 0.0, %v994
  %v996 = vpop.f32.mrf.mxu0
  %v997 = vadd.f32 0.0, %v996
  %998 = vmatmul.bf16.gmra.mxu0 %v590
  %v999 = vpop.f32.mrf.mxu0
  %v1000 = vadd.f32 0.0, %v999
  %v1001 = vpop.f32.mrf.mxu0
  %v1002 = vadd.f32 0.0, %v1001
  %1003 = vmatmul.bf16.gmra.mxu0 %v592
  %v1004 = vpop.f32.mrf.mxu0
  %v1005 = vadd.f32 0.0, %v1004
  %v1006 = vpop.f32.mrf.mxu0
  %v1007 = vadd.f32 0.0, %v1006
  %1008 = vmatmul.bf16.gmra.mxu0 %v594
  %v1009 = vpop.f32.mrf.mxu0
  %v1010 = vadd.f32 0.0, %v1009
  %v1011 = vpop.f32.mrf.mxu0
  %v1012 = vadd.f32 0.0, %v1011
  %1013 = vmatmul.bf16.gmra.mxu0 %v596
  %v1014 = vpop.f32.mrf.mxu0
  %v1015 = vadd.f32 0.0, %v1014
  %v1016 = vpop.f32.mrf.mxu0
  %v1017 = vadd.f32 0.0, %v1016
  %1018 = vmatmul.bf16.gmra.mxu0 %v598
  %v1019 = vpop.f32.mrf.mxu0
  %v1020 = vadd.f32 0.0, %v1019
  %v1021 = vpop.f32.mrf.mxu0
  %v1022 = vadd.f32 0.0, %v1021
  %1023 = vmatmul.bf16.gmra.mxu0 %v600
  %v1024 = vpop.f32.mrf.mxu0
  %v1025 = vadd.f32 0.0, %v1024
  %v1026 = vpop.f32.mrf.mxu0
  %v1027 = vadd.f32 0.0, %v1026
  %1028 = vmatmul.bf16.gmra.mxu0 %v602
  %v1029 = vpop.f32.mrf.mxu0
  %v1030 = vadd.f32 0.0, %v1029
  %v1031 = vpop.f32.mrf.mxu0
  %v1032 = vadd.f32 0.0, %v1031
  %1033 = vmatmul.bf16.gmra.mxu0 %v604
  %v1034 = vpop.f32.mrf.mxu0
  %v1035 = vadd.f32 0.0, %v1034
  %v1036 = vpop.f32.mrf.mxu0
  %v1037 = vadd.f32 0.0, %v1036
  %1038 = vmatmul.bf16.gmra.mxu0 %v606
  %v1039 = vpop.f32.mrf.mxu0
  %v1040 = vadd.f32 0.0, %v1039
  %v1041 = vpop.f32.mrf.mxu0
  %v1042 = vadd.f32 0.0, %v1041
  %1043 = vmatmul.bf16.gmra.mxu0 %v608
  %v1044 = vpop.f32.mrf.mxu0
  %v1045 = vadd.f32 0.0, %v1044
  %v1046 = vpop.f32.mrf.mxu0
  %v1047 = vadd.f32 0.0, %v1046
  %1048 = vmatmul.bf16.gmra.mxu0 %v610
  %v1049 = vpop.f32.mrf.mxu0
  %v1050 = vadd.f32 0.0, %v1049
  %v1051 = vpop.f32.mrf.mxu0
  %v1052 = vadd.f32 0.0, %v1051
  %1053 = vmatmul.bf16.gmra.mxu0 %v612
  %v1054 = vpop.f32.mrf.mxu0
  %v1055 = vadd.f32 0.0, %v1054
  %v1056 = vpop.f32.mrf.mxu0
  %v1057 = vadd.f32 0.0, %v1056
  %1058 = vmatmul.bf16.gmra.mxu0 %v614
  %v1059 = vpop.f32.mrf.mxu0
  %v1060 = vadd.f32 0.0, %v1059
  %v1061 = vpop.f32.mrf.mxu0
  %v1062 = vadd.f32 0.0, %v1061
  %1063 = vmatmul.bf16.gmra.mxu0 %v616
  %v1064 = vpop.f32.mrf.mxu0
  %v1065 = vadd.f32 0.0, %v1064
  %v1066 = vpop.f32.mrf.mxu0
  %v1067 = vadd.f32 0.0, %v1066
  %1068 = vmatmul.bf16.gmra.mxu0 %v618
  %v1069 = vpop.f32.mrf.mxu0
  %v1070 = vadd.f32 0.0, %v1069
  %v1071 = vpop.f32.mrf.mxu0
  %v1072 = vadd.f32 0.0, %v1071
  %1073 = vmatmul.bf16.gmra.mxu0 %v620
  %v1074 = vpop.f32.mrf.mxu0
  %v1075 = vadd.f32 0.0, %v1074
  %v1076 = vpop.f32.mrf.mxu0
  %v1077 = vadd.f32 0.0, %v1076
  %1078 = vmatmul.bf16.gmra.mxu0 %v622
  %v1079 = vpop.f32.mrf.mxu0
  %v1080 = vadd.f32 0.0, %v1079
  %v1081 = vpop.f32.mrf.mxu0
  %v1082 = vadd.f32 0.0, %v1081
  %1083 = vmatmul.bf16.gmra.mxu0 %v624
  %v1084 = vpop.f32.mrf.mxu0
  %v1085 = vadd.f32 0.0, %v1084
  %v1086 = vpop.f32.mrf.mxu0
  %v1087 = vadd.f32 0.0, %v1086
  %1088 = vmatmul.bf16.gmra.mxu0 %v626
  %v1089 = vpop.f32.mrf.mxu0
  %v1090 = vadd.f32 0.0, %v1089
  %v1091 = vpop.f32.mrf.mxu0
  %v1092 = vadd.f32 0.0, %v1091
  %1093 = vmatmul.bf16.gmra.mxu0 %v628
  %v1094 = vpop.f32.mrf.mxu0
  %v1095 = vadd.f32 0.0, %v1094
  %v1096 = vpop.f32.mrf.mxu0
  %v1097 = vadd.f32 0.0, %v1096
  %1098 = vmatmul.bf16.gmra.mxu0 %v630
  %v1099 = vpop.f32.mrf.mxu0
  %v1100 = vadd.f32 0.0, %v1099
  %v1101 = vpop.f32.mrf.mxu0
  %v1102 = vadd.f32 0.0, %v1101
  %1103 = vmatmul.bf16.gmra.mxu0 %v632
  %v1104 = vpop.f32.mrf.mxu0
  %v1105 = vadd.f32 0.0, %v1104
  %v1106 = vpop.f32.mrf.mxu0
  %v1107 = vadd.f32 0.0, %v1106
  %1108 = vmatmul.bf16.gmra.mxu0 %v634
  %v1109 = vpop.f32.mrf.mxu0
  %v1110 = vadd.f32 0.0, %v1109
  %v1111 = vpop.f32.mrf.mxu0
  %v1112 = vadd.f32 0.0, %v1111
  %1113 = vmatmul.bf16.gmra.mxu0 %v636
  %v1114 = vpop.f32.mrf.mxu0
  %v1115 = vadd.f32 0.0, %v1114
  %v1116 = vpop.f32.mrf.mxu0
  %v1117 = vadd.f32 0.0, %v1116
  %1118 = vmatmul.bf16.gmra.mxu0 %v638
  %v1119 = vpop.f32.mrf.mxu0
  %v1120 = vadd.f32 0.0, %v1119
  %v1121 = vpop.f32.mrf.mxu0
  %v1122 = vadd.f32 0.0, %v1121
  %1123 = vmatmul.bf16.gmra.mxu0 %v640
  %v1124 = vpop.f32.mrf.mxu0
  %v1125 = vadd.f32 0.0, %v1124
  %v1126 = vpop.f32.mrf.mxu0
  %v1127 = vadd.f32 0.0, %v1126
  %1128 = vmatmul.bf16.gmra.mxu0 %v642
  %v1129 = vpop.f32.mrf.mxu0
  %v1130 = vadd.f32 0.0, %v1129
  %v1131 = vpop.f32.mrf.mxu0
  %v1132 = vadd.f32 0.0, %v1131
  %1133 = vmatmul.bf16.gmra.mxu0 %v644
  %v1134 = vpop.f32.mrf.mxu0
  %v1135 = vadd.f32 0.0, %v1134
  %v1136 = vpop.f32.mrf.mxu0
  %v1137 = vadd.f32 0.0, %v1136
  %1138 = vmatmul.bf16.gmra.mxu0 %v646
  %v1139 = vpop.f32.mrf.mxu0
  %v1140 = vadd.f32 0.0, %v1139
  %v1141 = vpop.f32.mrf.mxu0
  %v1142 = vadd.f32 0.0, %v1141
  %1143 = vmatmul.bf16.gmra.mxu0 %v648
  %v1144 = vpop.f32.mrf.mxu0
  %v1145 = vadd.f32 0.0, %v1144
  %v1146 = vpop.f32.mrf.mxu0
  %v1147 = vadd.f32 0.0, %v1146
  %1148 = vmatmul.bf16.gmra.mxu0 %v650
  %v1149 = vpop.f32.mrf.mxu0
  %v1150 = vadd.f32 0.0, %v1149
  %v1151 = vpop.f32.mrf.mxu0
  %v1152 = vadd.f32 0.0, %v1151
  %1153 = vmatmul.bf16.gmra.mxu0 %v652
  %v1154 = vpop.f32.mrf.mxu0
  %v1155 = vadd.f32 0.0, %v1154
  %v1156 = vpop.f32.mrf.mxu0
  %v1157 = vadd.f32 0.0, %v1156
  %1158 = vmatmul.bf16.gmra.mxu0 %v654
  %v1159 = vpop.f32.mrf.mxu0
  %v1160 = vadd.f32 0.0, %v1159
  %v1161 = vpop.f32.mrf.mxu0
  %v1162 = vadd.f32 0.0, %v1161
  %1163 = vmatmul.bf16.gmra.mxu0 %v656
  %v1164 = vpop.f32.mrf.mxu0
  %v1165 = vadd.f32 0.0, %v1164
  %v1166 = vpop.f32.mrf.mxu0
  %v1167 = vadd.f32 0.0, %v1166
  %1168 = vmatmul.bf16.gmra.mxu0 %v658
  %v1169 = vpop.f32.mrf.mxu0
  %v1170 = vadd.f32 0.0, %v1169
  %v1171 = vpop.f32.mrf.mxu0
  %v1172 = vadd.f32 0.0, %v1171
  %1173 = vmatmul.bf16.gmra.mxu0 %v660
  %v1174 = vpop.f32.mrf.mxu0
  %v1175 = vadd.f32 0.0, %v1174
  %v1176 = vpop.f32.mrf.mxu0
  %v1177 = vadd.f32 0.0, %v1176
  %1178 = vmatmul.bf16.gmra.mxu0 %v662
  %v1179 = vpop.f32.mrf.mxu0
  %v1180 = vadd.f32 0.0, %v1179
  %v1181 = vpop.f32.mrf.mxu0
  %v1182 = vadd.f32 0.0, %v1181
  %1183 = vmatmul.bf16.gmra.mxu0 %v664
  %v1184 = vpop.f32.mrf.mxu0
  %v1185 = vadd.f32 0.0, %v1184
  %v1186 = vpop.f32.mrf.mxu0
  %v1187 = vadd.f32 0.0, %v1186
  %1188 = vmatmul.bf16.gmra.mxu0 %v666
  %v1189 = vpop.f32.mrf.mxu0
  %v1190 = vadd.f32 0.0, %v1189
  %v1191 = vpop.f32.mrf.mxu0
  %v1192 = vadd.f32 0.0, %v1191
  %1193 = vmatmul.bf16.gmra.mxu0 %v668
  %v1194 = vpop.f32.mrf.mxu0
  %v1195 = vadd.f32 0.0, %v1194
  %v1196 = vpop.f32.mrf.mxu0
  %v1197 = vadd.f32 0.0, %v1196
  %1198 = vmatmul.bf16.gmra.mxu0 %v670
  %v1199 = vpop.f32.mrf.mxu0
  %v1200 = vadd.f32 0.0, %v1199
  %v1201 = vpop.f32.mrf.mxu0
  %v1202 = vadd.f32 0.0, %v1201
  %1203 = vmatmul.bf16.gmra.mxu0 %v672
  %v1204 = vpop.f32.mrf.mxu0
  %v1205 = vadd.f32 0.0, %v1204
  %v1206 = vpop.f32.mrf.mxu0
  %v1207 = vadd.f32 0.0, %v1206
  %1208 = vmatmul.bf16.gmra.mxu0 %v674
  %v1209 = vpop.f32.mrf.mxu0
  %v1210 = vadd.f32 0.0, %v1209
  %v1211 = vpop.f32.mrf.mxu0
  %v1212 = vadd.f32 0.0, %v1211
  %1213 = vmatmul.bf16.gmra.mxu0 %v676
  %v1214 = vpop.f32.mrf.mxu0
  %v1215 = vadd.f32 0.0, %v1214
  %v1216 = vpop.f32.mrf.mxu0
  %v1217 = vadd.f32 0.0, %v1216
  %1218 = vmatmul.bf16.gmra.mxu0 %v678
  %v1219 = vpop.f32.mrf.mxu0
  %v1220 = vadd.f32 0.0, %v1219
  %v1221 = vpop.f32.mrf.mxu0
  %v1222 = vadd.f32 0.0, %v1221
  %1223 = vmatmul.bf16.gmra.mxu0 %v680
  %v1224 = vpop.f32.mrf.mxu0
  %v1225 = vadd.f32 0.0, %v1224
  %v1226 = vpop.f32.mrf.mxu0
  %v1227 = vadd.f32 0.0, %v1226
  %1228 = vmatmul.bf16.gmra.mxu0 %v682
  %v1229 = vpop.f32.mrf.mxu0
  %v1230 = vadd.f32 0.0, %v1229
  %v1231 = vpop.f32.mrf.mxu0
  %v1232 = vadd.f32 0.0, %v1231
  %1233 = vmatmul.bf16.gmra.mxu0 %v684
  %v1234 = vpop.f32.mrf.mxu0
  %v1235 = vadd.f32 0.0, %v1234
  %v1236 = vpop.f32.mrf.mxu0
  %v1237 = vadd.f32 0.0, %v1236
  %1238 = vdwg.mxu0
  %1239 = vmatpush.bf16.msra.mxu0 %v893
  %1240 = vmatpush.bf16.msra.mxu0 %v892
  %1241 = vmatpush.bf16.msra.mxu0 %v891
  %1242 = vmatpush.bf16.msra.mxu0 %v890
  %1243 = vmatpush.bf16.msra.mxu0 %v889
  %1244 = vmatpush.bf16.msra.mxu0 %v888
  %1245 = vmatpush.bf16.msra.mxu0 %v887
  %1246 = vmatpush.bf16.msra.mxu0 %v886
  %1247 = vmatmul.bf16.gmra.mxu0 %v559
  %v1248 = vpop.f32.mrf.mxu0
  %v1249 = vadd.f32 %v920, %v1248
  %v1250 = vpop.f32.mrf.mxu0
  %v1251 = vadd.f32 %v922, %v1250
  %1252 = vmatmul.bf16.gmra.mxu0 %v561
  %v1253 = vpop.f32.mrf.mxu0
  %v1254 = vadd.f32 %v925, %v1253
  %v1255 = vpop.f32.mrf.mxu0
  %v1256 = vadd.f32 %v927, %v1255
  %1257 = vmatmul.bf16.gmra.mxu0 %v563
  %v1258 = vpop.f32.mrf.mxu0
  %v1259 = vadd.f32 %v930, %v1258
  %v1260 = vpop.f32.mrf.mxu0
  %v1261 = vadd.f32 %v932, %v1260
  %1262 = vmatmul.bf16.gmra.mxu0 %v565
  %v1263 = vpop.f32.mrf.mxu0
  %v1264 = vadd.f32 %v935, %v1263
  %v1265 = vpop.f32.mrf.mxu0
  %v1266 = vadd.f32 %v937, %v1265
  %1267 = vmatmul.bf16.gmra.mxu0 %v567
  %v1268 = vpop.f32.mrf.mxu0
  %v1269 = vadd.f32 %v940, %v1268
  %v1270 = vpop.f32.mrf.mxu0
  %v1271 = vadd.f32 %v942, %v1270
  %1272 = vmatmul.bf16.gmra.mxu0 %v569
  %v1273 = vpop.f32.mrf.mxu0
  %v1274 = vadd.f32 %v945, %v1273
  %v1275 = vpop.f32.mrf.mxu0
  %v1276 = vadd.f32 %v947, %v1275
  %1277 = vmatmul.bf16.gmra.mxu0 %v571
  %v1278 = vpop.f32.mrf.mxu0
  %v1279 = vadd.f32 %v950, %v1278
  %v1280 = vpop.f32.mrf.mxu0
  %v1281 = vadd.f32 %v952, %v1280
  %1282 = vmatmul.bf16.gmra.mxu0 %v573
  %v1283 = vpop.f32.mrf.mxu0
  %v1284 = vadd.f32 %v955, %v1283
  %v1285 = vpop.f32.mrf.mxu0
  %v1286 = vadd.f32 %v957, %v1285
  %1287 = vmatmul.bf16.gmra.mxu0 %v575
  %v1288 = vpop.f32.mrf.mxu0
  %v1289 = vadd.f32 %v960, %v1288
  %v1290 = vpop.f32.mrf.mxu0
  %v1291 = vadd.f32 %v962, %v1290
  %1292 = vmatmul.bf16.gmra.mxu0 %v577
  %v1293 = vpop.f32.mrf.mxu0
  %v1294 = vadd.f32 %v965, %v1293
  %v1295 = vpop.f32.mrf.mxu0
  %v1296 = vadd.f32 %v967, %v1295
  %1297 = vmatmul.bf16.gmra.mxu0 %v579
  %v1298 = vpop.f32.mrf.mxu0
  %v1299 = vadd.f32 %v970, %v1298
  %v1300 = vpop.f32.mrf.mxu0
  %v1301 = vadd.f32 %v972, %v1300
  %1302 = vmatmul.bf16.gmra.mxu0 %v581
  %v1303 = vpop.f32.mrf.mxu0
  %v1304 = vadd.f32 %v975, %v1303
  %v1305 = vpop.f32.mrf.mxu0
  %v1306 = vadd.f32 %v977, %v1305
  %1307 = vmatmul.bf16.gmra.mxu0 %v583
  %v1308 = vpop.f32.mrf.mxu0
  %v1309 = vadd.f32 %v980, %v1308
  %v1310 = vpop.f32.mrf.mxu0
  %v1311 = vadd.f32 %v982, %v1310
  %1312 = vmatmul.bf16.gmra.mxu0 %v585
  %v1313 = vpop.f32.mrf.mxu0
  %v1314 = vadd.f32 %v985, %v1313
  %v1315 = vpop.f32.mrf.mxu0
  %v1316 = vadd.f32 %v987, %v1315
  %1317 = vmatmul.bf16.gmra.mxu0 %v587
  %v1318 = vpop.f32.mrf.mxu0
  %v1319 = vadd.f32 %v990, %v1318
  %v1320 = vpop.f32.mrf.mxu0
  %v1321 = vadd.f32 %v992, %v1320
  %1322 = vmatmul.bf16.gmra.mxu0 %v589
  %v1323 = vpop.f32.mrf.mxu0
  %v1324 = vadd.f32 %v995, %v1323
  %v1325 = vpop.f32.mrf.mxu0
  %v1326 = vadd.f32 %v997, %v1325
  %1327 = vmatmul.bf16.gmra.mxu0 %v591
  %v1328 = vpop.f32.mrf.mxu0
  %v1329 = vadd.f32 %v1000, %v1328
  %v1330 = vpop.f32.mrf.mxu0
  %v1331 = vadd.f32 %v1002, %v1330
  %1332 = vmatmul.bf16.gmra.mxu0 %v593
  %v1333 = vpop.f32.mrf.mxu0
  %v1334 = vadd.f32 %v1005, %v1333
  %v1335 = vpop.f32.mrf.mxu0
  %v1336 = vadd.f32 %v1007, %v1335
  %1337 = vmatmul.bf16.gmra.mxu0 %v595
  %v1338 = vpop.f32.mrf.mxu0
  %v1339 = vadd.f32 %v1010, %v1338
  %v1340 = vpop.f32.mrf.mxu0
  %v1341 = vadd.f32 %v1012, %v1340
  %1342 = vmatmul.bf16.gmra.mxu0 %v597
  %v1343 = vpop.f32.mrf.mxu0
  %v1344 = vadd.f32 %v1015, %v1343
  %v1345 = vpop.f32.mrf.mxu0
  %v1346 = vadd.f32 %v1017, %v1345
  %1347 = vmatmul.bf16.gmra.mxu0 %v599
  %v1348 = vpop.f32.mrf.mxu0
  %v1349 = vadd.f32 %v1020, %v1348
  %v1350 = vpop.f32.mrf.mxu0
  %v1351 = vadd.f32 %v1022, %v1350
  %1352 = vmatmul.bf16.gmra.mxu0 %v601
  %v1353 = vpop.f32.mrf.mxu0
  %v1354 = vadd.f32 %v1025, %v1353
  %v1355 = vpop.f32.mrf.mxu0
  %v1356 = vadd.f32 %v1027, %v1355
  %1357 = vmatmul.bf16.gmra.mxu0 %v603
  %v1358 = vpop.f32.mrf.mxu0
  %v1359 = vadd.f32 %v1030, %v1358
  %v1360 = vpop.f32.mrf.mxu0
  %v1361 = vadd.f32 %v1032, %v1360
  %1362 = vmatmul.bf16.gmra.mxu0 %v605
  %v1363 = vpop.f32.mrf.mxu0
  %v1364 = vadd.f32 %v1035, %v1363
  %v1365 = vpop.f32.mrf.mxu0
  %v1366 = vadd.f32 %v1037, %v1365
  %1367 = vmatmul.bf16.gmra.mxu0 %v607
  %v1368 = vpop.f32.mrf.mxu0
  %v1369 = vadd.f32 %v1040, %v1368
  %v1370 = vpop.f32.mrf.mxu0
  %v1371 = vadd.f32 %v1042, %v1370
  %1372 = vmatmul.bf16.gmra.mxu0 %v609
  %v1373 = vpop.f32.mrf.mxu0
  %v1374 = vadd.f32 %v1045, %v1373
  %v1375 = vpop.f32.mrf.mxu0
  %v1376 = vadd.f32 %v1047, %v1375
  %1377 = vmatmul.bf16.gmra.mxu0 %v611
  %v1378 = vpop.f32.mrf.mxu0
  %v1379 = vadd.f32 %v1050, %v1378
  %v1380 = vpop.f32.mrf.mxu0
  %v1381 = vadd.f32 %v1052, %v1380
  %1382 = vmatmul.bf16.gmra.mxu0 %v613
  %v1383 = vpop.f32.mrf.mxu0
  %v1384 = vadd.f32 %v1055, %v1383
  %v1385 = vpop.f32.mrf.mxu0
  %v1386 = vadd.f32 %v1057, %v1385
  %1387 = vmatmul.bf16.gmra.mxu0 %v615
  %v1388 = vpop.f32.mrf.mxu0
  %v1389 = vadd.f32 %v1060, %v1388
  %v1390 = vpop.f32.mrf.mxu0
  %v1391 = vadd.f32 %v1062, %v1390
  %1392 = vmatmul.bf16.gmra.mxu0 %v617
  %v1393 = vpop.f32.mrf.mxu0
  %v1394 = vadd.f32 %v1065, %v1393
  %v1395 = vpop.f32.mrf.mxu0
  %v1396 = vadd.f32 %v1067, %v1395
  %1397 = vmatmul.bf16.gmra.mxu0 %v619
  %v1398 = vpop.f32.mrf.mxu0
  %v1399 = vadd.f32 %v1070, %v1398
  %v1400 = vpop.f32.mrf.mxu0
  %v1401 = vadd.f32 %v1072, %v1400
  %1402 = vmatmul.bf16.gmra.mxu0 %v621
  %v1403 = vpop.f32.mrf.mxu0
  %v1404 = vadd.f32 %v1075, %v1403
  %v1405 = vpop.f32.mrf.mxu0
  %v1406 = vadd.f32 %v1077, %v1405
  %1407 = vmatmul.bf16.gmra.mxu0 %v623
  %v1408 = vpop.f32.mrf.mxu0
  %v1409 = vadd.f32 %v1080, %v1408
  %v1410 = vpop.f32.mrf.mxu0
  %v1411 = vadd.f32 %v1082, %v1410
  %1412 = vmatmul.bf16.gmra.mxu0 %v625
  %v1413 = vpop.f32.mrf.mxu0
  %v1414 = vadd.f32 %v1085, %v1413
  %v1415 = vpop.f32.mrf.mxu0
  %v1416 = vadd.f32 %v1087, %v1415
  %1417 = vmatmul.bf16.gmra.mxu0 %v627
  %v1418 = vpop.f32.mrf.mxu0
  %v1419 = vadd.f32 %v1090, %v1418
  %v1420 = vpop.f32.mrf.mxu0
  %v1421 = vadd.f32 %v1092, %v1420
  %1422 = vmatmul.bf16.gmra.mxu0 %v629
  %v1423 = vpop.f32.mrf.mxu0
  %v1424 = vadd.f32 %v1095, %v1423
  %v1425 = vpop.f32.mrf.mxu0
  %v1426 = vadd.f32 %v1097, %v1425
  %1427 = vmatmul.bf16.gmra.mxu0 %v631
  %v1428 = vpop.f32.mrf.mxu0
  %v1429 = vadd.f32 %v1100, %v1428
  %v1430 = vpop.f32.mrf.mxu0
  %v1431 = vadd.f32 %v1102, %v1430
  %1432 = vmatmul.bf16.gmra.mxu0 %v633
  %v1433 = vpop.f32.mrf.mxu0
  %v1434 = vadd.f32 %v1105, %v1433
  %v1435 = vpop.f32.mrf.mxu0
  %v1436 = vadd.f32 %v1107, %v1435
  %1437 = vmatmul.bf16.gmra.mxu0 %v635
  %v1438 = vpop.f32.mrf.mxu0
  %v1439 = vadd.f32 %v1110, %v1438
  %v1440 = vpop.f32.mrf.mxu0
  %v1441 = vadd.f32 %v1112, %v1440
  %1442 = vmatmul.bf16.gmra.mxu0 %v637
  %v1443 = vpop.f32.mrf.mxu0
  %v1444 = vadd.f32 %v1115, %v1443
  %v1445 = vpop.f32.mrf.mxu0
  %v1446 = vadd.f32 %v1117, %v1445
  %1447 = vmatmul.bf16.gmra.mxu0 %v639
  %v1448 = vpop.f32.mrf.mxu0
  %v1449 = vadd.f32 %v1120, %v1448
  %v1450 = vpop.f32.mrf.mxu0
  %v1451 = vadd.f32 %v1122, %v1450
  %1452 = vmatmul.bf16.gmra.mxu0 %v641
  %v1453 = vpop.f32.mrf.mxu0
  %v1454 = vadd.f32 %v1125, %v1453
  %v1455 = vpop.f32.mrf.mxu0
  %v1456 = vadd.f32 %v1127, %v1455
  %1457 = vmatmul.bf16.gmra.mxu0 %v643
  %v1458 = vpop.f32.mrf.mxu0
  %v1459 = vadd.f32 %v1130, %v1458
  %v1460 = vpop.f32.mrf.mxu0
  %v1461 = vadd.f32 %v1132, %v1460
  %1462 = vmatmul.bf16.gmra.mxu0 %v645
  %v1463 = vpop.f32.mrf.mxu0
  %v1464 = vadd.f32 %v1135, %v1463
  %v1465 = vpop.f32.mrf.mxu0
  %v1466 = vadd.f32 %v1137, %v1465
  %1467 = vmatmul.bf16.gmra.mxu0 %v647
  %v1468 = vpop.f32.mrf.mxu0
  %v1469 = vadd.f32 %v1140, %v1468
  %v1470 = vpop.f32.mrf.mxu0
  %v1471 = vadd.f32 %v1142, %v1470
  %1472 = vmatmul.bf16.gmra.mxu0 %v649
  %v1473 = vpop.f32.mrf.mxu0
  %v1474 = vadd.f32 %v1145, %v1473
  %v1475 = vpop.f32.mrf.mxu0
  %v1476 = vadd.f32 %v1147, %v1475
  %1477 = vmatmul.bf16.gmra.mxu0 %v651
  %v1478 = vpop.f32.mrf.mxu0
  %v1479 = vadd.f32 %v1150, %v1478
  %v1480 = vpop.f32.mrf.mxu0
  %v1481 = vadd.f32 %v1152, %v1480
  %1482 = vmatmul.bf16.gmra.mxu0 %v653
  %v1483 = vpop.f32.mrf.mxu0
  %v1484 = vadd.f32 %v1155, %v1483
  %v1485 = vpop.f32.mrf.mxu0
  %v1486 = vadd.f32 %v1157, %v1485
  %1487 = vmatmul.bf16.gmra.mxu0 %v655
  %v1488 = vpop.f32.mrf.mxu0
  %v1489 = vadd.f32 %v1160, %v1488
  %v1490 = vpop.f32.mrf.mxu0
  %v1491 = vadd.f32 %v1162, %v1490
  %1492 = vmatmul.bf16.gmra.mxu0 %v657
  %v1493 = vpop.f32.mrf.mxu0
  %v1494 = vadd.f32 %v1165, %v1493
  %v1495 = vpop.f32.mrf.mxu0
  %v1496 = vadd.f32 %v1167, %v1495
  %1497 = vmatmul.bf16.gmra.mxu0 %v659
  %v1498 = vpop.f32.mrf.mxu0
  %v1499 = vadd.f32 %v1170, %v1498
  %v1500 = vpop.f32.mrf.mxu0
  %v1501 = vadd.f32 %v1172, %v1500
  %1502 = vmatmul.bf16.gmra.mxu0 %v661
  %v1503 = vpop.f32.mrf.mxu0
  %v1504 = vadd.f32 %v1175, %v1503
  %v1505 = vpop.f32.mrf.mxu0
  %v1506 = vadd.f32 %v1177, %v1505
  %1507 = vmatmul.bf16.gmra.mxu0 %v663
  %v1508 = vpop.f32.mrf.mxu0
  %v1509 = vadd.f32 %v1180, %v1508
  %v1510 = vpop.f32.mrf.mxu0
  %v1511 = vadd.f32 %v1182, %v1510
  %1512 = vmatmul.bf16.gmra.mxu0 %v665
  %v1513 = vpop.f32.mrf.mxu0
  %v1514 = vadd.f32 %v1185, %v1513
  %v1515 = vpop.f32.mrf.mxu0
  %v1516 = vadd.f32 %v1187, %v1515
  %1517 = vmatmul.bf16.gmra.mxu0 %v667
  %v1518 = vpop.f32.mrf.mxu0
  %v1519 = vadd.f32 %v1190, %v1518
  %v1520 = vpop.f32.mrf.mxu0
  %v1521 = vadd.f32 %v1192, %v1520
  %1522 = vmatmul.bf16.gmra.mxu0 %v669
  %v1523 = vpop.f32.mrf.mxu0
  %v1524 = vadd.f32 %v1195, %v1523
  %v1525 = vpop.f32.mrf.mxu0
  %v1526 = vadd.f32 %v1197, %v1525
  %1527 = vmatmul.bf16.gmra.mxu0 %v671
  %v1528 = vpop.f32.mrf.mxu0
  %v1529 = vadd.f32 %v1200, %v1528
  %v1530 = vpop.f32.mrf.mxu0
  %v1531 = vadd.f32 %v1202, %v1530
  %1532 = vmatmul.bf16.gmra.mxu0 %v673
  %v1533 = vpop.f32.mrf.mxu0
  %v1534 = vadd.f32 %v1205, %v1533
  %v1535 = vpop.f32.mrf.mxu0
  %v1536 = vadd.f32 %v1207, %v1535
  %1537 = vmatmul.bf16.gmra.mxu0 %v675
  %v1538 = vpop.f32.mrf.mxu0
  %v1539 = vadd.f32 %v1210, %v1538
  %v1540 = vpop.f32.mrf.mxu0
  %v1541 = vadd.f32 %v1212, %v1540
  %1542 = vmatmul.bf16.gmra.mxu0 %v677
  %v1543 = vpop.f32.mrf.mxu0
  %v1544 = vadd.f32 %v1215, %v1543
  %v1545 = vpop.f32.mrf.mxu0
  %v1546 = vadd.f32 %v1217, %v1545
  %1547 = vmatmul.bf16.gmra.mxu0 %v679
  %v1548 = vpop.f32.mrf.mxu0
  %v1549 = vadd.f32 %v1220, %v1548
  %v1550 = vpop.f32.mrf.mxu0
  %v1551 = vadd.f32 %v1222, %v1550
  %1552 = vmatmul.bf16.gmra.mxu0 %v681
  %v1553 = vpop.f32.mrf.mxu0
  %v1554 = vadd.f32 %v1225, %v1553
  %v1555 = vpop.f32.mrf.mxu0
  %v1556 = vadd.f32 %v1227, %v1555
  %1557 = vmatmul.bf16.gmra.mxu0 %v683
  %v1558 = vpop.f32.mrf.mxu0
  %v1559 = vadd.f32 %v1230, %v1558
  %v1560 = vpop.f32.mrf.mxu0
  %v1561 = vadd.f32 %v1232, %v1560
  %1562 = vmatmul.bf16.gmra.mxu0 %v685
  %v1563 = vpop.f32.mrf.mxu0
  %v1564 = vadd.f32 %v1235, %v1563
  %v1565 = vpop.f32.mrf.mxu0
  %v1566 = vadd.f32 %v1237, %v1565
  %1567 = vdwg.mxu0
  %v1568 = vpack.c.bf16 %v1249, %v1249
  %v1569 = vpack.c.bf16 %v1251, %v1251
  %v1570 = vpack.c.bf16 %v1254, %v1254
  %v1571 = vpack.c.bf16 %v1256, %v1256
  %v1572 = vpack.c.bf16 %v1259, %v1259
  %v1573 = vpack.c.bf16 %v1261, %v1261
  %v1574 = vpack.c.bf16 %v1264, %v1264
  %v1575 = vpack.c.bf16 %v1266, %v1266
  %v1576 = vpack.c.bf16 %v1269, %v1269
  %v1577 = vpack.c.bf16 %v1271, %v1271
  %v1578 = vpack.c.bf16 %v1274, %v1274
  %v1579 = vpack.c.bf16 %v1276, %v1276
  %v1580 = vpack.c.bf16 %v1279, %v1279
  %v1581 = vpack.c.bf16 %v1281, %v1281
  %v1582 = vpack.c.bf16 %v1284, %v1284
  %v1583 = vpack.c.bf16 %v1286, %v1286
  %v1584 = vpack.c.bf16 %v1289, %v1289
  %v1585 = vpack.c.bf16 %v1291, %v1291
  %v1586 = vpack.c.bf16 %v1294, %v1294
  %v1587 = vpack.c.bf16 %v1296, %v1296
  %v1588 = vpack.c.bf16 %v1299, %v1299
  %v1589 = vpack.c.bf16 %v1301, %v1301
  %v1590 = vpack.c.bf16 %v1304, %v1304
  %v1591 = vpack.c.bf16 %v1306, %v1306
  %v1592 = vpack.c.bf16 %v1309, %v1309
  %v1593 = vpack.c.bf16 %v1311, %v1311
  %v1594 = vpack.c.bf16 %v1314, %v1314
  %v1595 = vpack.c.bf16 %v1316, %v1316
  %v1596 = vpack.c.bf16 %v1319, %v1319
  %v1597 = vpack.c.bf16 %v1321, %v1321
  %v1598 = vpack.c.bf16 %v1324, %v1324
  %v1599 = vpack.c.bf16 %v1326, %v1326
  %v1600 = vpack.c.bf16 %v1329, %v1329
  %v1601 = vpack.c.bf16 %v1331, %v1331
  %v1602 = vpack.c.bf16 %v1334, %v1334
  %v1603 = vpack.c.bf16 %v1336, %v1336
  %v1604 = vpack.c.bf16 %v1339, %v1339
  %v1605 = vpack.c.bf16 %v1341, %v1341
  %v1606 = vpack.c.bf16 %v1344, %v1344
  %v1607 = vpack.c.bf16 %v1346, %v1346
  %v1608 = vpack.c.bf16 %v1349, %v1349
  %v1609 = vpack.c.bf16 %v1351, %v1351
  %v1610 = vpack.c.bf16 %v1354, %v1354
  %v1611 = vpack.c.bf16 %v1356, %v1356
  %v1612 = vpack.c.bf16 %v1359, %v1359
  %v1613 = vpack.c.bf16 %v1361, %v1361
  %v1614 = vpack.c.bf16 %v1364, %v1364
  %v1615 = vpack.c.bf16 %v1366, %v1366
  %v1616 = vpack.c.bf16 %v1369, %v1369
  %v1617 = vpack.c.bf16 %v1371, %v1371
  %v1618 = vpack.c.bf16 %v1374, %v1374
  %v1619 = vpack.c.bf16 %v1376, %v1376
  %v1620 = vpack.c.bf16 %v1379, %v1379
  %v1621 = vpack.c.bf16 %v1381, %v1381
  %v1622 = vpack.c.bf16 %v1384, %v1384
  %v1623 = vpack.c.bf16 %v1386, %v1386
  %v1624 = vpack.c.bf16 %v1389, %v1389
  %v1625 = vpack.c.bf16 %v1391, %v1391
  %v1626 = vpack.c.bf16 %v1394, %v1394
  %v1627 = vpack.c.bf16 %v1396, %v1396
  %v1628 = vpack.c.bf16 %v1399, %v1399
  %v1629 = vpack.c.bf16 %v1401, %v1401
  %v1630 = vpack.c.bf16 %v1404, %v1404
  %v1631 = vpack.c.bf16 %v1406, %v1406
  %v1632 = vpack.c.bf16 %v1409, %v1409
  %v1633 = vpack.c.bf16 %v1411, %v1411
  %v1634 = vpack.c.bf16 %v1414, %v1414
  %v1635 = vpack.c.bf16 %v1416, %v1416
  %v1636 = vpack.c.bf16 %v1419, %v1419
  %v1637 = vpack.c.bf16 %v1421, %v1421
  %v1638 = vpack.c.bf16 %v1424, %v1424
  %v1639 = vpack.c.bf16 %v1426, %v1426
  %v1640 = vpack.c.bf16 %v1429, %v1429
  %v1641 = vpack.c.bf16 %v1431, %v1431
  %v1642 = vpack.c.bf16 %v1434, %v1434
  %v1643 = vpack.c.bf16 %v1436, %v1436
  %v1644 = vpack.c.bf16 %v1439, %v1439
  %v1645 = vpack.c.bf16 %v1441, %v1441
  %v1646 = vpack.c.bf16 %v1444, %v1444
  %v1647 = vpack.c.bf16 %v1446, %v1446
  %v1648 = vpack.c.bf16 %v1449, %v1449
  %v1649 = vpack.c.bf16 %v1451, %v1451
  %v1650 = vpack.c.bf16 %v1454, %v1454
  %v1651 = vpack.c.bf16 %v1456, %v1456
  %v1652 = vpack.c.bf16 %v1459, %v1459
  %v1653 = vpack.c.bf16 %v1461, %v1461
  %v1654 = vpack.c.bf16 %v1464, %v1464
  %v1655 = vpack.c.bf16 %v1466, %v1466
  %v1656 = vpack.c.bf16 %v1469, %v1469
  %v1657 = vpack.c.bf16 %v1471, %v1471
  %v1658 = vpack.c.bf16 %v1474, %v1474
  %v1659 = vpack.c.bf16 %v1476, %v1476
  %v1660 = vpack.c.bf16 %v1479, %v1479
  %v1661 = vpack.c.bf16 %v1481, %v1481
  %v1662 = vpack.c.bf16 %v1484, %v1484
  %v1663 = vpack.c.bf16 %v1486, %v1486
  %v1664 = vpack.c.bf16 %v1489, %v1489
  %v1665 = vpack.c.bf16 %v1491, %v1491
  %v1666 = vpack.c.bf16 %v1494, %v1494
  %v1667 = vpack.c.bf16 %v1496, %v1496
  %v1668 = vpack.c.bf16 %v1499, %v1499
  %v1669 = vpack.c.bf16 %v1501, %v1501
  %v1670 = vpack.c.bf16 %v1504, %v1504
  %v1671 = vpack.c.bf16 %v1506, %v1506
  %v1672 = vpack.c.bf16 %v1509, %v1509
  %v1673 = vpack.c.bf16 %v1511, %v1511
  %v1674 = vpack.c.bf16 %v1514, %v1514
  %v1675 = vpack.c.bf16 %v1516, %v1516
  %v1676 = vpack.c.bf16 %v1519, %v1519
  %v1677 = vpack.c.bf16 %v1521, %v1521
  %v1678 = vpack.c.bf16 %v1524, %v1524
  %v1679 = vpack.c.bf16 %v1526, %v1526
  %v1680 = vpack.c.bf16 %v1529, %v1529
  %v1681 = vpack.c.bf16 %v1531, %v1531
  %v1682 = vpack.c.bf16 %v1534, %v1534
  %v1683 = vpack.c.bf16 %v1536, %v1536
  %v1684 = vpack.c.bf16 %v1539, %v1539
  %v1685 = vpack.c.bf16 %v1541, %v1541
  %v1686 = vpack.c.bf16 %v1544, %v1544
  %v1687 = vpack.c.bf16 %v1546, %v1546
  %v1688 = vpack.c.bf16 %v1549, %v1549
  %v1689 = vpack.c.bf16 %v1551, %v1551
  %v1690 = vpack.c.bf16 %v1554, %v1554
  %v1691 = vpack.c.bf16 %v1556, %v1556
  %v1692 = vpack.c.bf16 %v1559, %v1559
  %v1693 = vpack.c.bf16 %v1561, %v1561
  %v1694 = vpack.c.bf16 %v1564, %v1564
  %v1695 = vpack.c.bf16 %v1566, %v1566
  %vm1696 = vcmask 60416
  %1697 = vst.msk [vmem:[%s2] sm:$0xf] %vm1696, %v1568
  %1698 = vst.msk [vmem:[%s2 + $0x4] sm:$0xf] %vm1696, %v1569
  %1699 = vst.msk [vmem:[%s2 + $0x8] sm:$0xf] %vm1696, %v1570
  %1700 = vst.msk [vmem:[%s2 + $0xc] sm:$0xf] %vm1696, %v1571
  %1701 = vst.msk [vmem:[%s2 + $0x10] sm:$0xf] %vm1696, %v1572
  %1702 = vst.msk [vmem:[%s2 + $0x14] sm:$0xf] %vm1696, %v1573
  %1703 = vst.msk [vmem:[%s2 + $0x18] sm:$0xf] %vm1696, %v1574
  %1704 = vst.msk [vmem:[%s2 + $0x1c] sm:$0xf] %vm1696, %v1575
  %1705 = vst.msk [vmem:[%s2 + $0x20] sm:$0xf] %vm1696, %v1576
  %1706 = vst.msk [vmem:[%s2 + $0x24] sm:$0xf] %vm1696, %v1577
  %1707 = vst.msk [vmem:[%s2 + $0x28] sm:$0xf] %vm1696, %v1578
  %1708 = vst.msk [vmem:[%s2 + $0x2c] sm:$0xf] %vm1696, %v1579
  %1709 = vst.msk [vmem:[%s2 + $0x30] sm:$0xf] %vm1696, %v1580
  %1710 = vst.msk [vmem:[%s2 + $0x34] sm:$0xf] %vm1696, %v1581
  %1711 = vst.msk [vmem:[%s2 + $0x38] sm:$0xf] %vm1696, %v1582
  %1712 = vst.msk [vmem:[%s2 + $0x3c] sm:$0xf] %vm1696, %v1583
  %1713 = vst.msk [vmem:[%s2 + $0x40] sm:$0xf] %vm1696, %v1584
  %1714 = vst.msk [vmem:[%s2 + $0x44] sm:$0xf] %vm1696, %v1585
  %1715 = vst.msk [vmem:[%s2 + $0x48] sm:$0xf] %vm1696, %v1586
  %1716 = vst.msk [vmem:[%s2 + $0x4c] sm:$0xf] %vm1696, %v1587
  %1717 = vst.msk [vmem:[%s2 + $0x50] sm:$0xf] %vm1696, %v1588
  %1718 = vst.msk [vmem:[%s2 + $0x54] sm:$0xf] %vm1696, %v1589
  %1719 = vst.msk [vmem:[%s2 + $0x58] sm:$0xf] %vm1696, %v1590
  %1720 = vst.msk [vmem:[%s2 + $0x5c] sm:$0xf] %vm1696, %v1591
  %1721 = vst.msk [vmem:[%s2 + $0x60] sm:$0xf] %vm1696, %v1592
  %1722 = vst.msk [vmem:[%s2 + $0x64] sm:$0xf] %vm1696, %v1593
  %1723 = vst.msk [vmem:[%s2 + $0x68] sm:$0xf] %vm1696, %v1594
  %1724 = vst.msk [vmem:[%s2 + $0x6c] sm:$0xf] %vm1696, %v1595
  %1725 = vst.msk [vmem:[%s2 + $0x70] sm:$0xf] %vm1696, %v1596
  %1726 = vst.msk [vmem:[%s2 + $0x74] sm:$0xf] %vm1696, %v1597
  %1727 = vst.msk [vmem:[%s2 + $0x78] sm:$0xf] %vm1696, %v1598
  %1728 = vst.msk [vmem:[%s2 + $0x7c] sm:$0xf] %vm1696, %v1599
  %1729 = vst.msk [vmem:[%s2 + $0x80] sm:$0xf] %vm1696, %v1600
  %1730 = vst.msk [vmem:[%s2 + $0x84] sm:$0xf] %vm1696, %v1601
  %1731 = vst.msk [vmem:[%s2 + $0x88] sm:$0xf] %vm1696, %v1602
  %1732 = vst.msk [vmem:[%s2 + $0x8c] sm:$0xf] %vm1696, %v1603
  %1733 = vst.msk [vmem:[%s2 + $0x90] sm:$0xf] %vm1696, %v1604
  %1734 = vst.msk [vmem:[%s2 + $0x94] sm:$0xf] %vm1696, %v1605
  %1735 = vst.msk [vmem:[%s2 + $0x98] sm:$0xf] %vm1696, %v1606
  %1736 = vst.msk [vmem:[%s2 + $0x9c] sm:$0xf] %vm1696, %v1607
  %1737 = vst.msk [vmem:[%s2 + $0xa0] sm:$0xf] %vm1696, %v1608
  %1738 = vst.msk [vmem:[%s2 + $0xa4] sm:$0xf] %vm1696, %v1609
  %1739 = vst.msk [vmem:[%s2 + $0xa8] sm:$0xf] %vm1696, %v1610
  %1740 = vst.msk [vmem:[%s2 + $0xac] sm:$0xf] %vm1696, %v1611
  %1741 = vst.msk [vmem:[%s2 + $0xb0] sm:$0xf] %vm1696, %v1612
  %1742 = vst.msk [vmem:[%s2 + $0xb4] sm:$0xf] %vm1696, %v1613
  %1743 = vst.msk [vmem:[%s2 + $0xb8] sm:$0xf] %vm1696, %v1614
  %1744 = vst.msk [vmem:[%s2 + $0xbc] sm:$0xf] %vm1696, %v1615
  %1745 = vst.msk [vmem:[%s2 + $0xc0] sm:$0xf] %vm1696, %v1616
  %1746 = vst.msk [vmem:[%s2 + $0xc4] sm:$0xf] %vm1696, %v1617
  %1747 = vst.msk [vmem:[%s2 + $0xc8] sm:$0xf] %vm1696, %v1618
  %1748 = vst.msk [vmem:[%s2 + $0xcc] sm:$0xf] %vm1696, %v1619
  %1749 = vst.msk [vmem:[%s2 + $0xd0] sm:$0xf] %vm1696, %v1620
  %1750 = vst.msk [vmem:[%s2 + $0xd4] sm:$0xf] %vm1696, %v1621
  %1751 = vst.msk [vmem:[%s2 + $0xd8] sm:$0xf] %vm1696, %v1622
  %1752 = vst.msk [vmem:[%s2 + $0xdc] sm:$0xf] %vm1696, %v1623
  %1753 = vst.msk [vmem:[%s2 + $0xe0] sm:$0xf] %vm1696, %v1624
  %1754 = vst.msk [vmem:[%s2 + $0xe4] sm:$0xf] %vm1696, %v1625
  %1755 = vst.msk [vmem:[%s2 + $0xe8] sm:$0xf] %vm1696, %v1626
  %1756 = vst.msk [vmem:[%s2 + $0xec] sm:$0xf] %vm1696, %v1627
  %1757 = vst.msk [vmem:[%s2 + $0xf0] sm:$0xf] %vm1696, %v1628
  %1758 = vst.msk [vmem:[%s2 + $0xf4] sm:$0xf] %vm1696, %v1629
  %1759 = vst.msk [vmem:[%s2 + $0xf8] sm:$0xf] %vm1696, %v1630
  %1760 = vst.msk [vmem:[%s2 + $0xfc] sm:$0xf] %vm1696, %v1631
  %1761 = vst.msk [vmem:[%s2 + $0x100] sm:$0xf] %vm1696, %v1632
  %1762 = vst.msk [vmem:[%s2 + $0x104] sm:$0xf] %vm1696, %v1633
  %1763 = vst.msk [vmem:[%s2 + $0x108] sm:$0xf] %vm1696, %v1634
  %1764 = vst.msk [vmem:[%s2 + $0x10c] sm:$0xf] %vm1696, %v1635
  %1765 = vst.msk [vmem:[%s2 + $0x110] sm:$0xf] %vm1696, %v1636
  %1766 = vst.msk [vmem:[%s2 + $0x114] sm:$0xf] %vm1696, %v1637
  %1767 = vst.msk [vmem:[%s2 + $0x118] sm:$0xf] %vm1696, %v1638
  %1768 = vst.msk [vmem:[%s2 + $0x11c] sm:$0xf] %vm1696, %v1639
  %1769 = vst.msk [vmem:[%s2 + $0x120] sm:$0xf] %vm1696, %v1640
  %1770 = vst.msk [vmem:[%s2 + $0x124] sm:$0xf] %vm1696, %v1641
  %1771 = vst.msk [vmem:[%s2 + $0x128] sm:$0xf] %vm1696, %v1642
  %1772 = vst.msk [vmem:[%s2 + $0x12c] sm:$0xf] %vm1696, %v1643
  %1773 = vst.msk [vmem:[%s2 + $0x130] sm:$0xf] %vm1696, %v1644
  %1774 = vst.msk [vmem:[%s2 + $0x134] sm:$0xf] %vm1696, %v1645
  %1775 = vst.msk [vmem:[%s2 + $0x138] sm:$0xf] %vm1696, %v1646
  %1776 = vst.msk [vmem:[%s2 + $0x13c] sm:$0xf] %vm1696, %v1647
  %1777 = vst.msk [vmem:[%s2 + $0x140] sm:$0xf] %vm1696, %v1648
  %1778 = vst.msk [vmem:[%s2 + $0x144] sm:$0xf] %vm1696, %v1649
  %1779 = vst.msk [vmem:[%s2 + $0x148] sm:$0xf] %vm1696, %v1650
  %1780 = vst.msk [vmem:[%s2 + $0x14c] sm:$0xf] %vm1696, %v1651
  %1781 = vst.msk [vmem:[%s2 + $0x150] sm:$0xf] %vm1696, %v1652
  %1782 = vst.msk [vmem:[%s2 + $0x154] sm:$0xf] %vm1696, %v1653
  %1783 = vst.msk [vmem:[%s2 + $0x158] sm:$0xf] %vm1696, %v1654
  %1784 = vst.msk [vmem:[%s2 + $0x15c] sm:$0xf] %vm1696, %v1655
  %1785 = vst.msk [vmem:[%s2 + $0x160] sm:$0xf] %vm1696, %v1656
  %1786 = vst.msk [vmem:[%s2 + $0x164] sm:$0xf] %vm1696, %v1657
  %1787 = vst.msk [vmem:[%s2 + $0x168] sm:$0xf] %vm1696, %v1658
  %1788 = vst.msk [vmem:[%s2 + $0x16c] sm:$0xf] %vm1696, %v1659
  %1789 = vst.msk [vmem:[%s2 + $0x170] sm:$0xf] %vm1696, %v1660
  %1790 = vst.msk [vmem:[%s2 + $0x174] sm:$0xf] %vm1696, %v1661
  %1791 = vst.msk [vmem:[%s2 + $0x178] sm:$0xf] %vm1696, %v1662
  %1792 = vst.msk [vmem:[%s2 + $0x17c] sm:$0xf] %vm1696, %v1663
  %1793 = vst.msk [vmem:[%s2 + $0x180] sm:$0xf] %vm1696, %v1664
  %1794 = vst.msk [vmem:[%s2 + $0x184] sm:$0xf] %vm1696, %v1665
  %1795 = vst.msk [vmem:[%s2 + $0x188] sm:$0xf] %vm1696, %v1666
  %1796 = vst.msk [vmem:[%s2 + $0x18c] sm:$0xf] %vm1696, %v1667
  %1797 = vst.msk [vmem:[%s2 + $0x190] sm:$0xf] %vm1696, %v1668
  %1798 = vst.msk [vmem:[%s2 + $0x194] sm:$0xf] %vm1696, %v1669
  %1799 = vst.msk [vmem:[%s2 + $0x198] sm:$0xf] %vm1696, %v1670
  %1800 = vst.msk [vmem:[%s2 + $0x19c] sm:$0xf] %vm1696, %v1671
  %1801 = vst.msk [vmem:[%s2 + $0x1a0] sm:$0xf] %vm1696, %v1672
  %1802 = vst.msk [vmem:[%s2 + $0x1a4] sm:$0xf] %vm1696, %v1673
  %1803 = vst.msk [vmem:[%s2 + $0x1a8] sm:$0xf] %vm1696, %v1674
  %1804 = vst.msk [vmem:[%s2 + $0x1ac] sm:$0xf] %vm1696, %v1675
  %1805 = vst.msk [vmem:[%s2 + $0x1b0] sm:$0xf] %vm1696, %v1676
  %1806 = vst.msk [vmem:[%s2 + $0x1b4] sm:$0xf] %vm1696, %v1677
  %1807 = vst.msk [vmem:[%s2 + $0x1b8] sm:$0xf] %vm1696, %v1678
  %1808 = vst.msk [vmem:[%s2 + $0x1bc] sm:$0xf] %vm1696, %v1679
  %1809 = vst.msk [vmem:[%s2 + $0x1c0] sm:$0xf] %vm1696, %v1680
  %1810 = vst.msk [vmem:[%s2 + $0x1c4] sm:$0xf] %vm1696, %v1681
  %1811 = vst.msk [vmem:[%s2 + $0x1c8] sm:$0xf] %vm1696, %v1682
  %1812 = vst.msk [vmem:[%s2 + $0x1cc] sm:$0xf] %vm1696, %v1683
  %1813 = vst.msk [vmem:[%s2 + $0x1d0] sm:$0xf] %vm1696, %v1684
  %1814 = vst.msk [vmem:[%s2 + $0x1d4] sm:$0xf] %vm1696, %v1685
  %1815 = vst.msk [vmem:[%s2 + $0x1d8] sm:$0xf] %vm1696, %v1686
  %1816 = vst.msk [vmem:[%s2 + $0x1dc] sm:$0xf] %vm1696, %v1687
  %1817 = vst.msk [vmem:[%s2 + $0x1e0] sm:$0xf] %vm1696, %v1688
  %1818 = vst.msk [vmem:[%s2 + $0x1e4] sm:$0xf] %vm1696, %v1689
  %1819 = vst.msk [vmem:[%s2 + $0x1e8] sm:$0xf] %vm1696, %v1690
  %1820 = vst.msk [vmem:[%s2 + $0x1ec] sm:$0xf] %vm1696, %v1691
  %1821 = vst.msk [vmem:[%s2 + $0x1f0] sm:$0xf] %vm1696, %v1692
  %1822 = vst.msk [vmem:[%s2 + $0x1f4] sm:$0xf] %vm1696, %v1693
  %1823 = vst.msk [vmem:[%s2 + $0x1f8] sm:$0xf] %vm1696, %v1694
  %1824 = vst.msk [vmem:[%s2 + $0x1fc] sm:$0xf] %vm1696, %v1695
  %vm1825 = vcmask 64512
  %v1826 = vsel %vm1825, %v1249, 0.0
  %v1827 = vsel %vm1825, %v1251, 0.0
  %v1828 = vadd.f32 %v1826, %v1827
  %v1829 = vsel %vm1825, %v1254, 0.0
  %v1830 = vadd.f32 %v1828, %v1829
  %v1831 = vsel %vm1825, %v1256, 0.0
  %v1832 = vadd.f32 %v1830, %v1831
  %v1833 = vsel %vm1825, %v1259, 0.0
  %v1834 = vadd.f32 %v1832, %v1833
  %v1835 = vsel %vm1825, %v1261, 0.0
  %v1836 = vadd.f32 %v1834, %v1835
  %v1837 = vsel %vm1825, %v1264, 0.0
  %v1838 = vadd.f32 %v1836, %v1837
  %v1839 = vsel %vm1825, %v1266, 0.0
  %v1840 = vadd.f32 %v1838, %v1839
  %v1841 = vsel %vm1825, %v1269, 0.0
  %v1842 = vadd.f32 %v1840, %v1841
  %v1843 = vsel %vm1825, %v1271, 0.0
  %v1844 = vadd.f32 %v1842, %v1843
  %v1845 = vsel %vm1825, %v1274, 0.0
  %v1846 = vadd.f32 %v1844, %v1845
  %v1847 = vsel %vm1825, %v1276, 0.0
  %v1848 = vadd.f32 %v1846, %v1847
  %v1849 = vsel %vm1825, %v1279, 0.0
  %v1850 = vadd.f32 %v1848, %v1849
  %v1851 = vsel %vm1825, %v1281, 0.0
  %v1852 = vadd.f32 %v1850, %v1851
  %v1853 = vsel %vm1825, %v1284, 0.0
  %v1854 = vadd.f32 %v1852, %v1853
  %v1855 = vsel %vm1825, %v1286, 0.0
  %v1856 = vadd.f32 %v1854, %v1855
  %v1857 = vsel %vm1825, %v1289, 0.0
  %v1858 = vadd.f32 %v1856, %v1857
  %v1859 = vsel %vm1825, %v1291, 0.0
  %v1860 = vadd.f32 %v1858, %v1859
  %v1861 = vsel %vm1825, %v1294, 0.0
  %v1862 = vadd.f32 %v1860, %v1861
  %v1863 = vsel %vm1825, %v1296, 0.0
  %v1864 = vadd.f32 %v1862, %v1863
  %v1865 = vsel %vm1825, %v1299, 0.0
  %v1866 = vadd.f32 %v1864, %v1865
  %v1867 = vsel %vm1825, %v1301, 0.0
  %v1868 = vadd.f32 %v1866, %v1867
  %v1869 = vsel %vm1825, %v1304, 0.0
  %v1870 = vadd.f32 %v1868, %v1869
  %v1871 = vsel %vm1825, %v1306, 0.0
  %v1872 = vadd.f32 %v1870, %v1871
  %v1873 = vsel %vm1825, %v1309, 0.0
  %v1874 = vadd.f32 %v1872, %v1873
  %v1875 = vsel %vm1825, %v1311, 0.0
  %v1876 = vadd.f32 %v1874, %v1875
  %v1877 = vsel %vm1825, %v1314, 0.0
  %v1878 = vadd.f32 %v1876, %v1877
  %v1879 = vsel %vm1825, %v1316, 0.0
  %v1880 = vadd.f32 %v1878, %v1879
  %v1881 = vsel %vm1825, %v1319, 0.0
  %v1882 = vadd.f32 %v1880, %v1881
  %v1883 = vsel %vm1825, %v1321, 0.0
  %v1884 = vadd.f32 %v1882, %v1883
  %v1885 = vsel %vm1825, %v1324, 0.0
  %v1886 = vadd.f32 %v1884, %v1885
  %v1887 = vsel %vm1825, %v1326, 0.0
  %v1888 = vadd.f32 %v1886, %v1887
  %v1889 = vsel %vm1825, %v1329, 0.0
  %v1890 = vadd.f32 %v1888, %v1889
  %v1891 = vsel %vm1825, %v1331, 0.0
  %v1892 = vadd.f32 %v1890, %v1891
  %v1893 = vsel %vm1825, %v1334, 0.0
  %v1894 = vadd.f32 %v1892, %v1893
  %v1895 = vsel %vm1825, %v1336, 0.0
  %v1896 = vadd.f32 %v1894, %v1895
  %v1897 = vsel %vm1825, %v1339, 0.0
  %v1898 = vadd.f32 %v1896, %v1897
  %v1899 = vsel %vm1825, %v1341, 0.0
  %v1900 = vadd.f32 %v1898, %v1899
  %v1901 = vsel %vm1825, %v1344, 0.0
  %v1902 = vadd.f32 %v1900, %v1901
  %v1903 = vsel %vm1825, %v1346, 0.0
  %v1904 = vadd.f32 %v1902, %v1903
  %v1905 = vsel %vm1825, %v1349, 0.0
  %v1906 = vadd.f32 %v1904, %v1905
  %v1907 = vsel %vm1825, %v1351, 0.0
  %v1908 = vadd.f32 %v1906, %v1907
  %v1909 = vsel %vm1825, %v1354, 0.0
  %v1910 = vadd.f32 %v1908, %v1909
  %v1911 = vsel %vm1825, %v1356, 0.0
  %v1912 = vadd.f32 %v1910, %v1911
  %v1913 = vsel %vm1825, %v1359, 0.0
  %v1914 = vadd.f32 %v1912, %v1913
  %v1915 = vsel %vm1825, %v1361, 0.0
  %v1916 = vadd.f32 %v1914, %v1915
  %v1917 = vsel %vm1825, %v1364, 0.0
  %v1918 = vadd.f32 %v1916, %v1917
  %v1919 = vsel %vm1825, %v1366, 0.0
  %v1920 = vadd.f32 %v1918, %v1919
  %v1921 = vsel %vm1825, %v1369, 0.0
  %v1922 = vadd.f32 %v1920, %v1921
  %v1923 = vsel %vm1825, %v1371, 0.0
  %v1924 = vadd.f32 %v1922, %v1923
  %v1925 = vsel %vm1825, %v1374, 0.0
  %v1926 = vadd.f32 %v1924, %v1925
  %v1927 = vsel %vm1825, %v1376, 0.0
  %v1928 = vadd.f32 %v1926, %v1927
  %v1929 = vsel %vm1825, %v1379, 0.0
  %v1930 = vadd.f32 %v1928, %v1929
  %v1931 = vsel %vm1825, %v1381, 0.0
  %v1932 = vadd.f32 %v1930, %v1931
  %v1933 = vsel %vm1825, %v1384, 0.0
  %v1934 = vadd.f32 %v1932, %v1933
  %v1935 = vsel %vm1825, %v1386, 0.0
  %v1936 = vadd.f32 %v1934, %v1935
  %v1937 = vsel %vm1825, %v1389, 0.0
  %v1938 = vadd.f32 %v1936, %v1937
  %v1939 = vsel %vm1825, %v1391, 0.0
  %v1940 = vadd.f32 %v1938, %v1939
  %v1941 = vsel %vm1825, %v1394, 0.0
  %v1942 = vadd.f32 %v1940, %v1941
  %v1943 = vsel %vm1825, %v1396, 0.0
  %v1944 = vadd.f32 %v1942, %v1943
  %v1945 = vsel %vm1825, %v1399, 0.0
  %v1946 = vadd.f32 %v1944, %v1945
  %v1947 = vsel %vm1825, %v1401, 0.0
  %v1948 = vadd.f32 %v1946, %v1947
  %v1949 = vsel %vm1825, %v1404, 0.0
  %v1950 = vadd.f32 %v1948, %v1949
  %v1951 = vsel %vm1825, %v1406, 0.0
  %v1952 = vadd.f32 %v1950, %v1951
  %v1953 = vsel %vm1825, %v1409, 0.0
  %v1954 = vadd.f32 %v1952, %v1953
  %v1955 = vsel %vm1825, %v1411, 0.0
  %v1956 = vadd.f32 %v1954, %v1955
  %v1957 = vsel %vm1825, %v1414, 0.0
  %v1958 = vadd.f32 %v1956, %v1957
  %v1959 = vsel %vm1825, %v1416, 0.0
  %v1960 = vadd.f32 %v1958, %v1959
  %v1961 = vsel %vm1825, %v1419, 0.0
  %v1962 = vadd.f32 %v1960, %v1961
  %v1963 = vsel %vm1825, %v1421, 0.0
  %v1964 = vadd.f32 %v1962, %v1963
  %v1965 = vsel %vm1825, %v1424, 0.0
  %v1966 = vadd.f32 %v1964, %v1965
  %v1967 = vsel %vm1825, %v1426, 0.0
  %v1968 = vadd.f32 %v1966, %v1967
  %v1969 = vsel %vm1825, %v1429, 0.0
  %v1970 = vadd.f32 %v1968, %v1969
  %v1971 = vsel %vm1825, %v1431, 0.0
  %v1972 = vadd.f32 %v1970, %v1971
  %v1973 = vsel %vm1825, %v1434, 0.0
  %v1974 = vadd.f32 %v1972, %v1973
  %v1975 = vsel %vm1825, %v1436, 0.0
  %v1976 = vadd.f32 %v1974, %v1975
  %v1977 = vsel %vm1825, %v1439, 0.0
  %v1978 = vadd.f32 %v1976, %v1977
  %v1979 = vsel %vm1825, %v1441, 0.0
  %v1980 = vadd.f32 %v1978, %v1979
  %v1981 = vsel %vm1825, %v1444, 0.0
  %v1982 = vadd.f32 %v1980, %v1981
  %v1983 = vsel %vm1825, %v1446, 0.0
  %v1984 = vadd.f32 %v1982, %v1983
  %v1985 = vsel %vm1825, %v1449, 0.0
  %v1986 = vadd.f32 %v1984, %v1985
  %v1987 = vsel %vm1825, %v1451, 0.0
  %v1988 = vadd.f32 %v1986, %v1987
  %v1989 = vsel %vm1825, %v1454, 0.0
  %v1990 = vadd.f32 %v1988, %v1989
  %v1991 = vsel %vm1825, %v1456, 0.0
  %v1992 = vadd.f32 %v1990, %v1991
  %v1993 = vsel %vm1825, %v1459, 0.0
  %v1994 = vadd.f32 %v1992, %v1993
  %v1995 = vsel %vm1825, %v1461, 0.0
  %v1996 = vadd.f32 %v1994, %v1995
  %v1997 = vsel %vm1825, %v1464, 0.0
  %v1998 = vadd.f32 %v1996, %v1997
  %v1999 = vsel %vm1825, %v1466, 0.0
  %v2000 = vadd.f32 %v1998, %v1999
  %v2001 = vsel %vm1825, %v1469, 0.0
  %v2002 = vadd.f32 %v2000, %v2001
  %v2003 = vsel %vm1825, %v1471, 0.0
  %v2004 = vadd.f32 %v2002, %v2003
  %v2005 = vsel %vm1825, %v1474, 0.0
  %v2006 = vadd.f32 %v2004, %v2005
  %v2007 = vsel %vm1825, %v1476, 0.0
  %v2008 = vadd.f32 %v2006, %v2007
  %v2009 = vsel %vm1825, %v1479, 0.0
  %v2010 = vadd.f32 %v2008, %v2009
  %v2011 = vsel %vm1825, %v1481, 0.0
  %v2012 = vadd.f32 %v2010, %v2011
  %v2013 = vsel %vm1825, %v1484, 0.0
  %v2014 = vadd.f32 %v2012, %v2013
  %v2015 = vsel %vm1825, %v1486, 0.0
  %v2016 = vadd.f32 %v2014, %v2015
  %v2017 = vsel %vm1825, %v1489, 0.0
  %v2018 = vadd.f32 %v2016, %v2017
  %v2019 = vsel %vm1825, %v1491, 0.0
  %v2020 = vadd.f32 %v2018, %v2019
  %v2021 = vsel %vm1825, %v1494, 0.0
  %v2022 = vadd.f32 %v2020, %v2021
  %v2023 = vsel %vm1825, %v1496, 0.0
  %v2024 = vadd.f32 %v2022, %v2023
  %v2025 = vsel %vm1825, %v1499, 0.0
  %v2026 = vadd.f32 %v2024, %v2025
  %v2027 = vsel %vm1825, %v1501, 0.0
  %v2028 = vadd.f32 %v2026, %v2027
  %v2029 = vsel %vm1825, %v1504, 0.0
  %v2030 = vadd.f32 %v2028, %v2029
  %v2031 = vsel %vm1825, %v1506, 0.0
  %v2032 = vadd.f32 %v2030, %v2031
  %v2033 = vsel %vm1825, %v1509, 0.0
  %v2034 = vadd.f32 %v2032, %v2033
  %v2035 = vsel %vm1825, %v1511, 0.0
  %v2036 = vadd.f32 %v2034, %v2035
  %v2037 = vsel %vm1825, %v1514, 0.0
  %v2038 = vadd.f32 %v2036, %v2037
  %v2039 = vsel %vm1825, %v1516, 0.0
  %v2040 = vadd.f32 %v2038, %v2039
  %v2041 = vsel %vm1825, %v1519, 0.0
  %v2042 = vadd.f32 %v2040, %v2041
  %v2043 = vsel %vm1825, %v1521, 0.0
  %v2044 = vadd.f32 %v2042, %v2043
  %v2045 = vsel %vm1825, %v1524, 0.0
  %v2046 = vadd.f32 %v2044, %v2045
  %v2047 = vsel %vm1825, %v1526, 0.0
  %v2048 = vadd.f32 %v2046, %v2047
  %v2049 = vsel %vm1825, %v1529, 0.0
  %v2050 = vadd.f32 %v2048, %v2049
  %v2051 = vsel %vm1825, %v1531, 0.0
  %v2052 = vadd.f32 %v2050, %v2051
  %v2053 = vsel %vm1825, %v1534, 0.0
  %v2054 = vadd.f32 %v2052, %v2053
  %v2055 = vsel %vm1825, %v1536, 0.0
  %v2056 = vadd.f32 %v2054, %v2055
  %v2057 = vsel %vm1825, %v1539, 0.0
  %v2058 = vadd.f32 %v2056, %v2057
  %v2059 = vsel %vm1825, %v1541, 0.0
  %v2060 = vadd.f32 %v2058, %v2059
  %v2061 = vsel %vm1825, %v1544, 0.0
  %v2062 = vadd.f32 %v2060, %v2061
  %v2063 = vsel %vm1825, %v1546, 0.0
  %v2064 = vadd.f32 %v2062, %v2063
  %v2065 = vsel %vm1825, %v1549, 0.0
  %v2066 = vadd.f32 %v2064, %v2065
  %v2067 = vsel %vm1825, %v1551, 0.0
  %v2068 = vadd.f32 %v2066, %v2067
  %v2069 = vsel %vm1825, %v1554, 0.0
  %v2070 = vadd.f32 %v2068, %v2069
  %v2071 = vsel %vm1825, %v1556, 0.0
  %v2072 = vadd.f32 %v2070, %v2071
  %v2073 = vsel %vm1825, %v1559, 0.0
  %v2074 = vadd.f32 %v2072, %v2073
  %v2075 = vsel %vm1825, %v1561, 0.0
  %v2076 = vadd.f32 %v2074, %v2075
  %v2077 = vsel %vm1825, %v1564, 0.0
  %v2078 = vadd.f32 %v2076, %v2077
  %v2079 = vsel %vm1825, %v1566, 0.0
  %v2080 = vadd.f32 %v2078, %v2079
  %v2081 = vrot.slane %v2080, 4
  %v2082 = vadd.f32 %v2080, %v2081
  %v2083 = vrot.slane %v2082, 2
  %v2084 = vadd.f32 %v2082, %v2083
  %v2085 = vrot.slane %v2084, 1
  %v2086 = vadd.f32 %v2084, %v2085
  %v2087 = vmul.f32 %v1249, %v1249
  %v2088 = vmul.f32 %v1251, %v1251
  %v2089 = vmul.f32 %v1254, %v1254
  %v2090 = vmul.f32 %v1256, %v1256
  %v2091 = vmul.f32 %v1259, %v1259
  %v2092 = vmul.f32 %v1261, %v1261
  %v2093 = vmul.f32 %v1264, %v1264
  %v2094 = vmul.f32 %v1266, %v1266
  %v2095 = vmul.f32 %v1269, %v1269
  %v2096 = vmul.f32 %v1271, %v1271
  %v2097 = vmul.f32 %v1274, %v1274
  %v2098 = vmul.f32 %v1276, %v1276
  %v2099 = vmul.f32 %v1279, %v1279
  %v2100 = vmul.f32 %v1281, %v1281
  %v2101 = vmul.f32 %v1284, %v1284
  %v2102 = vmul.f32 %v1286, %v1286
  %v2103 = vmul.f32 %v1289, %v1289
  %v2104 = vmul.f32 %v1291, %v1291
  %v2105 = vmul.f32 %v1294, %v1294
  %v2106 = vmul.f32 %v1296, %v1296
  %v2107 = vmul.f32 %v1299, %v1299
  %v2108 = vmul.f32 %v1301, %v1301
  %v2109 = vmul.f32 %v1304, %v1304
  %v2110 = vmul.f32 %v1306, %v1306
  %v2111 = vmul.f32 %v1309, %v1309
  %v2112 = vmul.f32 %v1311, %v1311
  %v2113 = vmul.f32 %v1314, %v1314
  %v2114 = vmul.f32 %v1316, %v1316
  %v2115 = vmul.f32 %v1319, %v1319
  %v2116 = vmul.f32 %v1321, %v1321
  %v2117 = vmul.f32 %v1324, %v1324
  %v2118 = vmul.f32 %v1326, %v1326
  %v2119 = vmul.f32 %v1329, %v1329
  %v2120 = vmul.f32 %v1331, %v1331
  %v2121 = vmul.f32 %v1334, %v1334
  %v2122 = vmul.f32 %v1336, %v1336
  %v2123 = vmul.f32 %v1339, %v1339
  %v2124 = vmul.f32 %v1341, %v1341
  %v2125 = vmul.f32 %v1344, %v1344
  %v2126 = vmul.f32 %v1346, %v1346
  %v2127 = vmul.f32 %v1349, %v1349
  %v2128 = vmul.f32 %v1351, %v1351
  %v2129 = vmul.f32 %v1354, %v1354
  %v2130 = vmul.f32 %v1356, %v1356
  %v2131 = vmul.f32 %v1359, %v1359
  %v2132 = vmul.f32 %v1361, %v1361
  %v2133 = vmul.f32 %v1364, %v1364
  %v2134 = vmul.f32 %v1366, %v1366
  %v2135 = vmul.f32 %v1369, %v1369
  %v2136 = vmul.f32 %v1371, %v1371
  %v2137 = vmul.f32 %v1374, %v1374
  %v2138 = vmul.f32 %v1376, %v1376
  %v2139 = vmul.f32 %v1379, %v1379
  %v2140 = vmul.f32 %v1381, %v1381
  %v2141 = vmul.f32 %v1384, %v1384
  %v2142 = vmul.f32 %v1386, %v1386
  %v2143 = vmul.f32 %v1389, %v1389
  %v2144 = vmul.f32 %v1391, %v1391
  %v2145 = vmul.f32 %v1394, %v1394
  %v2146 = vmul.f32 %v1396, %v1396
  %v2147 = vmul.f32 %v1399, %v1399
  %v2148 = vmul.f32 %v1401, %v1401
  %v2149 = vmul.f32 %v1404, %v1404
  %v2150 = vmul.f32 %v1406, %v1406
  %v2151 = vmul.f32 %v1409, %v1409
  %v2152 = vmul.f32 %v1411, %v1411
  %v2153 = vmul.f32 %v1414, %v1414
  %v2154 = vmul.f32 %v1416, %v1416
  %v2155 = vmul.f32 %v1419, %v1419
  %v2156 = vmul.f32 %v1421, %v1421
  %v2157 = vmul.f32 %v1424, %v1424
  %v2158 = vmul.f32 %v1426, %v1426
  %v2159 = vmul.f32 %v1429, %v1429
  %v2160 = vmul.f32 %v1431, %v1431
  %v2161 = vmul.f32 %v1434, %v1434
  %v2162 = vmul.f32 %v1436, %v1436
  %v2163 = vmul.f32 %v1439, %v1439
  %v2164 = vmul.f32 %v1441, %v1441
  %v2165 = vmul.f32 %v1444, %v1444
  %v2166 = vmul.f32 %v1446, %v1446
  %v2167 = vmul.f32 %v1449, %v1449
  %v2168 = vmul.f32 %v1451, %v1451
  %v2169 = vmul.f32 %v1454, %v1454
  %v2170 = vmul.f32 %v1456, %v1456
  %v2171 = vmul.f32 %v1459, %v1459
  %v2172 = vmul.f32 %v1461, %v1461
  %v2173 = vmul.f32 %v1464, %v1464
  %v2174 = vmul.f32 %v1466, %v1466
  %v2175 = vmul.f32 %v1469, %v1469
  %v2176 = vmul.f32 %v1471, %v1471
  %v2177 = vmul.f32 %v1474, %v1474
  %v2178 = vmul.f32 %v1476, %v1476
  %v2179 = vmul.f32 %v1479, %v1479
  %v2180 = vmul.f32 %v1481, %v1481
  %v2181 = vmul.f32 %v1484, %v1484
  %v2182 = vmul.f32 %v1486, %v1486
  %v2183 = vmul.f32 %v1489, %v1489
  %v2184 = vmul.f32 %v1491, %v1491
  %v2185 = vmul.f32 %v1494, %v1494
  %v2186 = vmul.f32 %v1496, %v1496
  %v2187 = vmul.f32 %v1499, %v1499
  %v2188 = vmul.f32 %v1501, %v1501
  %v2189 = vmul.f32 %v1504, %v1504
  %v2190 = vmul.f32 %v1506, %v1506
  %v2191 = vmul.f32 %v1509, %v1509
  %v2192 = vmul.f32 %v1511, %v1511
  %v2193 = vmul.f32 %v1514, %v1514
  %v2194 = vmul.f32 %v1516, %v1516
  %v2195 = vmul.f32 %v1519, %v1519
  %v2196 = vmul.f32 %v1521, %v1521
  %v2197 = vmul.f32 %v1524, %v1524
  %v2198 = vmul.f32 %v1526, %v1526
  %v2199 = vmul.f32 %v1529, %v1529
  %v2200 = vmul.f32 %v1531, %v1531
  %v2201 = vmul.f32 %v1534, %v1534
  %v2202 = vmul.f32 %v1536, %v1536
  %v2203 = vmul.f32 %v1539, %v1539
  %v2204 = vmul.f32 %v1541, %v1541
  %v2205 = vmul.f32 %v1544, %v1544
  %v2206 = vmul.f32 %v1546, %v1546
  %v2207 = vmul.f32 %v1549, %v1549
  %v2208 = vmul.f32 %v1551, %v1551
  %v2209 = vmul.f32 %v1554, %v1554
  %v2210 = vmul.f32 %v1556, %v1556
  %v2211 = vmul.f32 %v1559, %v1559
  %v2212 = vmul.f32 %v1561, %v1561
  %v2213 = vmul.f32 %v1564, %v1564
  %v2214 = vmul.f32 %v1566, %v1566
  %v2215 = vsel %vm1825, %v2087, 0.0
  %v2216 = vsel %vm1825, %v2088, 0.0
  %v2217 = vadd.f32 %v2215, %v2216
  %v2218 = vsel %vm1825, %v2089, 0.0
  %v2219 = vadd.f32 %v2217, %v2218
  %v2220 = vsel %vm1825, %v2090, 0.0
  %v2221 = vadd.f32 %v2219, %v2220
  %v2222 = vsel %vm1825, %v2091, 0.0
  %v2223 = vadd.f32 %v2221, %v2222
  %v2224 = vsel %vm1825, %v2092, 0.0
  %v2225 = vadd.f32 %v2223, %v2224
  %v2226 = vsel %vm1825, %v2093, 0.0
  %v2227 = vadd.f32 %v2225, %v2226
  %v2228 = vsel %vm1825, %v2094, 0.0
  %v2229 = vadd.f32 %v2227, %v2228
  %v2230 = vsel %vm1825, %v2095, 0.0
  %v2231 = vadd.f32 %v2229, %v2230
  %v2232 = vsel %vm1825, %v2096, 0.0
  %v2233 = vadd.f32 %v2231, %v2232
  %v2234 = vsel %vm1825, %v2097, 0.0
  %v2235 = vadd.f32 %v2233, %v2234
  %v2236 = vsel %vm1825, %v2098, 0.0
  %v2237 = vadd.f32 %v2235, %v2236
  %v2238 = vsel %vm1825, %v2099, 0.0
  %v2239 = vadd.f32 %v2237, %v2238
  %v2240 = vsel %vm1825, %v2100, 0.0
  %v2241 = vadd.f32 %v2239, %v2240
  %v2242 = vsel %vm1825, %v2101, 0.0
  %v2243 = vadd.f32 %v2241, %v2242
  %v2244 = vsel %vm1825, %v2102, 0.0
  %v2245 = vadd.f32 %v2243, %v2244
  %v2246 = vsel %vm1825, %v2103, 0.0
  %v2247 = vadd.f32 %v2245, %v2246
  %v2248 = vsel %vm1825, %v2104, 0.0
  %v2249 = vadd.f32 %v2247, %v2248
  %v2250 = vsel %vm1825, %v2105, 0.0
  %v2251 = vadd.f32 %v2249, %v2250
  %v2252 = vsel %vm1825, %v2106, 0.0
  %v2253 = vadd.f32 %v2251, %v2252
  %v2254 = vsel %vm1825, %v2107, 0.0
  %v2255 = vadd.f32 %v2253, %v2254
  %v2256 = vsel %vm1825, %v2108, 0.0
  %v2257 = vadd.f32 %v2255, %v2256
  %v2258 = vsel %vm1825, %v2109, 0.0
  %v2259 = vadd.f32 %v2257, %v2258
  %v2260 = vsel %vm1825, %v2110, 0.0
  %v2261 = vadd.f32 %v2259, %v2260
  %v2262 = vsel %vm1825, %v2111, 0.0
  %v2263 = vadd.f32 %v2261, %v2262
  %v2264 = vsel %vm1825, %v2112, 0.0
  %v2265 = vadd.f32 %v2263, %v2264
  %v2266 = vsel %vm1825, %v2113, 0.0
  %v2267 = vadd.f32 %v2265, %v2266
  %v2268 = vsel %vm1825, %v2114, 0.0
  %v2269 = vadd.f32 %v2267, %v2268
  %v2270 = vsel %vm1825, %v2115, 0.0
  %v2271 = vadd.f32 %v2269, %v2270
  %v2272 = vsel %vm1825, %v2116, 0.0
  %v2273 = vadd.f32 %v2271, %v2272
  %v2274 = vsel %vm1825, %v2117, 0.0
  %v2275 = vadd.f32 %v2273, %v2274
  %v2276 = vsel %vm1825, %v2118, 0.0
  %v2277 = vadd.f32 %v2275, %v2276
  %v2278 = vsel %vm1825, %v2119, 0.0
  %v2279 = vadd.f32 %v2277, %v2278
  %v2280 = vsel %vm1825, %v2120, 0.0
  %v2281 = vadd.f32 %v2279, %v2280
  %v2282 = vsel %vm1825, %v2121, 0.0
  %v2283 = vadd.f32 %v2281, %v2282
  %v2284 = vsel %vm1825, %v2122, 0.0
  %v2285 = vadd.f32 %v2283, %v2284
  %v2286 = vsel %vm1825, %v2123, 0.0
  %v2287 = vadd.f32 %v2285, %v2286
  %v2288 = vsel %vm1825, %v2124, 0.0
  %v2289 = vadd.f32 %v2287, %v2288
  %v2290 = vsel %vm1825, %v2125, 0.0
  %v2291 = vadd.f32 %v2289, %v2290
  %v2292 = vsel %vm1825, %v2126, 0.0
  %v2293 = vadd.f32 %v2291, %v2292
  %v2294 = vsel %vm1825, %v2127, 0.0
  %v2295 = vadd.f32 %v2293, %v2294
  %v2296 = vsel %vm1825, %v2128, 0.0
  %v2297 = vadd.f32 %v2295, %v2296
  %v2298 = vsel %vm1825, %v2129, 0.0
  %v2299 = vadd.f32 %v2297, %v2298
  %v2300 = vsel %vm1825, %v2130, 0.0
  %v2301 = vadd.f32 %v2299, %v2300
  %v2302 = vsel %vm1825, %v2131, 0.0
  %v2303 = vadd.f32 %v2301, %v2302
  %v2304 = vsel %vm1825, %v2132, 0.0
  %v2305 = vadd.f32 %v2303, %v2304
  %v2306 = vsel %vm1825, %v2133, 0.0
  %v2307 = vadd.f32 %v2305, %v2306
  %v2308 = vsel %vm1825, %v2134, 0.0
  %v2309 = vadd.f32 %v2307, %v2308
  %v2310 = vsel %vm1825, %v2135, 0.0
  %v2311 = vadd.f32 %v2309, %v2310
  %v2312 = vsel %vm1825, %v2136, 0.0
  %v2313 = vadd.f32 %v2311, %v2312
  %v2314 = vsel %vm1825, %v2137, 0.0
  %v2315 = vadd.f32 %v2313, %v2314
  %v2316 = vsel %vm1825, %v2138, 0.0
  %v2317 = vadd.f32 %v2315, %v2316
  %v2318 = vsel %vm1825, %v2139, 0.0
  %v2319 = vadd.f32 %v2317, %v2318
  %v2320 = vsel %vm1825, %v2140, 0.0
  %v2321 = vadd.f32 %v2319, %v2320
  %v2322 = vsel %vm1825, %v2141, 0.0
  %v2323 = vadd.f32 %v2321, %v2322
  %v2324 = vsel %vm1825, %v2142, 0.0
  %v2325 = vadd.f32 %v2323, %v2324
  %v2326 = vsel %vm1825, %v2143, 0.0
  %v2327 = vadd.f32 %v2325, %v2326
  %v2328 = vsel %vm1825, %v2144, 0.0
  %v2329 = vadd.f32 %v2327, %v2328
  %v2330 = vsel %vm1825, %v2145, 0.0
  %v2331 = vadd.f32 %v2329, %v2330
  %v2332 = vsel %vm1825, %v2146, 0.0
  %v2333 = vadd.f32 %v2331, %v2332
  %v2334 = vsel %vm1825, %v2147, 0.0
  %v2335 = vadd.f32 %v2333, %v2334
  %v2336 = vsel %vm1825, %v2148, 0.0
  %v2337 = vadd.f32 %v2335, %v2336
  %v2338 = vsel %vm1825, %v2149, 0.0
  %v2339 = vadd.f32 %v2337, %v2338
  %v2340 = vsel %vm1825, %v2150, 0.0
  %v2341 = vadd.f32 %v2339, %v2340
  %v2342 = vsel %vm1825, %v2151, 0.0
  %v2343 = vadd.f32 %v2341, %v2342
  %v2344 = vsel %vm1825, %v2152, 0.0
  %v2345 = vadd.f32 %v2343, %v2344
  %v2346 = vsel %vm1825, %v2153, 0.0
  %v2347 = vadd.f32 %v2345, %v2346
  %v2348 = vsel %vm1825, %v2154, 0.0
  %v2349 = vadd.f32 %v2347, %v2348
  %v2350 = vsel %vm1825, %v2155, 0.0
  %v2351 = vadd.f32 %v2349, %v2350
  %v2352 = vsel %vm1825, %v2156, 0.0
  %v2353 = vadd.f32 %v2351, %v2352
  %v2354 = vsel %vm1825, %v2157, 0.0
  %v2355 = vadd.f32 %v2353, %v2354
  %v2356 = vsel %vm1825, %v2158, 0.0
  %v2357 = vadd.f32 %v2355, %v2356
  %v2358 = vsel %vm1825, %v2159, 0.0
  %v2359 = vadd.f32 %v2357, %v2358
  %v2360 = vsel %vm1825, %v2160, 0.0
  %v2361 = vadd.f32 %v2359, %v2360
  %v2362 = vsel %vm1825, %v2161, 0.0
  %v2363 = vadd.f32 %v2361, %v2362
  %v2364 = vsel %vm1825, %v2162, 0.0
  %v2365 = vadd.f32 %v2363, %v2364
  %v2366 = vsel %vm1825, %v2163, 0.0
  %v2367 = vadd.f32 %v2365, %v2366
  %v2368 = vsel %vm1825, %v2164, 0.0
  %v2369 = vadd.f32 %v2367, %v2368
  %v2370 = vsel %vm1825, %v2165, 0.0
  %v2371 = vadd.f32 %v2369, %v2370
  %v2372 = vsel %vm1825, %v2166, 0.0
  %v2373 = vadd.f32 %v2371, %v2372
  %v2374 = vsel %vm1825, %v2167, 0.0
  %v2375 = vadd.f32 %v2373, %v2374
  %v2376 = vsel %vm1825, %v2168, 0.0
  %v2377 = vadd.f32 %v2375, %v2376
  %v2378 = vsel %vm1825, %v2169, 0.0
  %v2379 = vadd.f32 %v2377, %v2378
  %v2380 = vsel %vm1825, %v2170, 0.0
  %v2381 = vadd.f32 %v2379, %v2380
  %v2382 = vsel %vm1825, %v2171, 0.0
  %v2383 = vadd.f32 %v2381, %v2382
  %v2384 = vsel %vm1825, %v2172, 0.0
  %v2385 = vadd.f32 %v2383, %v2384
  %v2386 = vsel %vm1825, %v2173, 0.0
  %v2387 = vadd.f32 %v2385, %v2386
  %v2388 = vsel %vm1825, %v2174, 0.0
  %v2389 = vadd.f32 %v2387, %v2388
  %v2390 = vsel %vm1825, %v2175, 0.0
  %v2391 = vadd.f32 %v2389, %v2390
  %v2392 = vsel %vm1825, %v2176, 0.0
  %v2393 = vadd.f32 %v2391, %v2392
  %v2394 = vsel %vm1825, %v2177, 0.0
  %v2395 = vadd.f32 %v2393, %v2394
  %v2396 = vsel %vm1825, %v2178, 0.0
  %v2397 = vadd.f32 %v2395, %v2396
  %v2398 = vsel %vm1825, %v2179, 0.0
  %v2399 = vadd.f32 %v2397, %v2398
  %v2400 = vsel %vm1825, %v2180, 0.0
  %v2401 = vadd.f32 %v2399, %v2400
  %v2402 = vsel %vm1825, %v2181, 0.0
  %v2403 = vadd.f32 %v2401, %v2402
  %v2404 = vsel %vm1825, %v2182, 0.0
  %v2405 = vadd.f32 %v2403, %v2404
  %v2406 = vsel %vm1825, %v2183, 0.0
  %v2407 = vadd.f32 %v2405, %v2406
  %v2408 = vsel %vm1825, %v2184, 0.0
  %v2409 = vadd.f32 %v2407, %v2408
  %v2410 = vsel %vm1825, %v2185, 0.0
  %v2411 = vadd.f32 %v2409, %v2410
  %v2412 = vsel %vm1825, %v2186, 0.0
  %v2413 = vadd.f32 %v2411, %v2412
  %v2414 = vsel %vm1825, %v2187, 0.0
  %v2415 = vadd.f32 %v2413, %v2414
  %v2416 = vsel %vm1825, %v2188, 0.0
  %v2417 = vadd.f32 %v2415, %v2416
  %v2418 = vsel %vm1825, %v2189, 0.0
  %v2419 = vadd.f32 %v2417, %v2418
  %v2420 = vsel %vm1825, %v2190, 0.0
  %v2421 = vadd.f32 %v2419, %v2420
  %v2422 = vsel %vm1825, %v2191, 0.0
  %v2423 = vadd.f32 %v2421, %v2422
  %v2424 = vsel %vm1825, %v2192, 0.0
  %v2425 = vadd.f32 %v2423, %v2424
  %v2426 = vsel %vm1825, %v2193, 0.0
  %v2427 = vadd.f32 %v2425, %v2426
  %v2428 = vsel %vm1825, %v2194, 0.0
  %v2429 = vadd.f32 %v2427, %v2428
  %v2430 = vsel %vm1825, %v2195, 0.0
  %v2431 = vadd.f32 %v2429, %v2430
  %v2432 = vsel %vm1825, %v2196, 0.0
  %v2433 = vadd.f32 %v2431, %v2432
  %v2434 = vsel %vm1825, %v2197, 0.0
  %v2435 = vadd.f32 %v2433, %v2434
  %v2436 = vsel %vm1825, %v2198, 0.0
  %v2437 = vadd.f32 %v2435, %v2436
  %v2438 = vsel %vm1825, %v2199, 0.0
  %v2439 = vadd.f32 %v2437, %v2438
  %v2440 = vsel %vm1825, %v2200, 0.0
  %v2441 = vadd.f32 %v2439, %v2440
  %v2442 = vsel %vm1825, %v2201, 0.0
  %v2443 = vadd.f32 %v2441, %v2442
  %v2444 = vsel %vm1825, %v2202, 0.0
  %v2445 = vadd.f32 %v2443, %v2444
  %v2446 = vsel %vm1825, %v2203, 0.0
  %v2447 = vadd.f32 %v2445, %v2446
  %v2448 = vsel %vm1825, %v2204, 0.0
  %v2449 = vadd.f32 %v2447, %v2448
  %v2450 = vsel %vm1825, %v2205, 0.0
  %v2451 = vadd.f32 %v2449, %v2450
  %v2452 = vsel %vm1825, %v2206, 0.0
  %v2453 = vadd.f32 %v2451, %v2452
  %v2454 = vsel %vm1825, %v2207, 0.0
  %v2455 = vadd.f32 %v2453, %v2454
  %v2456 = vsel %vm1825, %v2208, 0.0
  %v2457 = vadd.f32 %v2455, %v2456
  %v2458 = vsel %vm1825, %v2209, 0.0
  %v2459 = vadd.f32 %v2457, %v2458
  %v2460 = vsel %vm1825, %v2210, 0.0
  %v2461 = vadd.f32 %v2459, %v2460
  %v2462 = vsel %vm1825, %v2211, 0.0
  %v2463 = vadd.f32 %v2461, %v2462
  %v2464 = vsel %vm1825, %v2212, 0.0
  %v2465 = vadd.f32 %v2463, %v2464
  %v2466 = vsel %vm1825, %v2213, 0.0
  %v2467 = vadd.f32 %v2465, %v2466
  %v2468 = vsel %vm1825, %v2214, 0.0
  %v2469 = vadd.f32 %v2467, %v2468
  %v2470 = vrot.slane %v2469, 4
  %v2471 = vadd.f32 %v2469, %v2470
  %v2472 = vrot.slane %v2471, 2
  %v2473 = vadd.f32 %v2471, %v2472
  %v2474 = vrot.slane %v2473, 1
  %v2475 = vadd.f32 %v2473, %v2474
  %vm2476 = vcmask 57344
  %2477 = vst.msk [vmem:[%s3] sm:$0x1] %vm2476, %v2086
  %2478 = vst.msk [vmem:[%s4] sm:$0x1] %vm2476, %v2475
  // Predicated region
  $region10: #{conv_block_forward.6} parent=0 // pred_check
    _
  $region11: #{conv_block_forward.6} parent=0 // pred_check_branch
    %2480 = sbr.rel (0) target = $region13
  $region12: #{conv_block_forward.6} parent=0 // pred_region
    _
  $region13: #{conv_block_forward.6} parent=0 // pred_fallthru
    _
  // Predicated region
  $region14: #{conv_block_forward.6} parent=0 // pred_check
    _
  $region15: #{conv_block_forward.6} parent=0 // pred_check_branch
    %2482 = sbr.rel (0) target = $region17
  $region16: #{conv_block_forward.6} parent=0 // pred_region
    _
  $region17: #{conv_block_forward.6} parent=0 // pred_fallthru
    _
  // Predicated region
  $region18: #{conv_block_forward.6} parent=0 // pred_check
    _
  $region19: #{conv_block_forward.6} parent=0 // pred_check_branch
    %2484 = sbr.rel (0) target = $region21
  $region20: #{conv_block_forward.6} parent=0 // pred_region
    _
  $region21: #{conv_block_forward.6} parent=0 // pred_fallthru
    _
  // Predicated region
  $region22: #{conv_block_forward.6} parent=0 // pred_check
    _
  $region23: #{conv_block_forward.6} parent=0 // pred_check_branch
    %2486 = sbr.rel (0) target = $region25
  $region24: #{conv_block_forward.6} parent=0 // pred_region
    _
  $region25: #{conv_block_forward.6} parent=0 // pred_fallthru
    _
  // Predicated region
  $region26: #{conv_block_forward.6} parent=0 // pred_check
    _
  $region27: #{conv_block_forward.6} parent=0 // pred_check_branch
    %2488 = sbr.rel (0) target = $region29
  $region28: #{conv_block_forward.6} parent=0 // pred_region
    _
  $region29: #{conv_block_forward.6} parent=0 // pred_fallthru
    _
  // Predicated region
  $region30: #{conv_block_forward.6} parent=0 // pred_check
    _
  $region31: #{conv_block_forward.6} parent=0 // pred_check_branch
    %2490 = sbr.rel (0) target = $region33
  $region32: #{conv_block_forward.6} parent=0 // pred_region
    _
  $region33: #{conv_block_forward.6} parent=0 // pred_fallthru
    _

// kernel: conv_block_forward.7
$region0: #{conv_block_forward.7}
  #allocation0 [shape = 'u32[]', space=smem, size = 0x4, offset = 0x4, fixed_abs, tag = 'smem constant byte address 0x4 - core index']
  #allocation1 [shape = 'u32[72,128]{1,0:T(1,128)}', space=vmem, size = 0x9000, scoped, tag = 'internal scratch']
  %s0 = inlined_call_operand.vmem [shape: bf16[1024,8], index: 0, kind: input, shape index: {}]
  %s1 = inlined_call_operand.vmem [shape: f32[1,8], index: 1, kind: input, shape index: {}]
  %s2 = inlined_call_operand.vmem [shape: f32[1,8], index: 2, kind: input, shape index: {}]
  %s3 = inlined_call_operand.vmem [shape: f32[1024,8], index: 3, kind: output, shape index: {}]
  %s4 = sld [smem:[#allocation0]]
  $region22: #{conv_block_forward.7} parent=0
    _
  %s6 = ssub.s32 1, %s4
  %s7 = scalar_select 0, %s6, %s4
  // Predicated region
  $region2: #{conv_block_forward.7} parent=0 // pred_check
    _
  $region3: #{conv_block_forward.7} parent=0 // pred_check_branch
    %9 = sbr.rel (0) target = $region5
  $region4: #{conv_block_forward.7} parent=0 // pred_region
    _
  $region5: #{conv_block_forward.7} parent=0 // pred_fallthru
    _
  // Predicated region
  $region6: #{conv_block_forward.7} parent=0 // pred_check
    _
  $region7: #{conv_block_forward.7} parent=0 // pred_check_branch
    %11 = sbr.rel (0) target = $region9
  $region8: #{conv_block_forward.7} parent=0 // pred_region
    _
  $region9: #{conv_block_forward.7} parent=0 // pred_fallthru
    _
  // Predicated region
  $region10: #{conv_block_forward.7} parent=0 // pred_check
    _
  $region11: #{conv_block_forward.7} parent=0 // pred_check_branch
    %13 = sbr.rel (0) target = $region13
  $region12: #{conv_block_forward.7} parent=0 // pred_region
    _
  $region13: #{conv_block_forward.7} parent=0 // pred_fallthru
    _
  %v14 = vld [vmem:[%s0] sm:$0xf]
  %v15 = vld [vmem:[%s0 + $0x4] sm:$0xf]
  %v16 = vld [vmem:[%s0 + $0x8] sm:$0xf]
  %v17 = vld [vmem:[%s0 + $0xc] sm:$0xf]
  %v18 = vld [vmem:[%s0 + $0x10] sm:$0xf]
  %v19 = vld [vmem:[%s0 + $0x14] sm:$0xf]
  %v20 = vld [vmem:[%s0 + $0x18] sm:$0xf]
  %v21 = vld [vmem:[%s0 + $0x1c] sm:$0xf]
  %v22 = vld [vmem:[%s0 + $0x20] sm:$0xf]
  %v23 = vld [vmem:[%s0 + $0x24] sm:$0xf]
  %v24 = vld [vmem:[%s0 + $0x28] sm:$0xf]
  %v25 = vld [vmem:[%s0 + $0x2c] sm:$0xf]
  %v26 = vld [vmem:[%s0 + $0x30] sm:$0xf]
  %v27 = vld [vmem:[%s0 + $0x34] sm:$0xf]
  %v28 = vld [vmem:[%s0 + $0x38] sm:$0xf]
  %v29 = vld [vmem:[%s0 + $0x3c] sm:$0xf]
  %v30 = vld [vmem:[%s0 + $0x40] sm:$0xf]
  %v31 = vld [vmem:[%s0 + $0x44] sm:$0xf]
  %v32 = vld [vmem:[%s0 + $0x48] sm:$0xf]
  %v33 = vld [vmem:[%s0 + $0x4c] sm:$0xf]
  %v34 = vld [vmem:[%s0 + $0x50] sm:$0xf]
  %v35 = vld [vmem:[%s0 + $0x54] sm:$0xf]
  %v36 = vld [vmem:[%s0 + $0x58] sm:$0xf]
  %v37 = vld [vmem:[%s0 + $0x5c] sm:$0xf]
  %v38 = vld [vmem:[%s0 + $0x60] sm:$0xf]
  %v39 = vld [vmem:[%s0 + $0x64] sm:$0xf]
  %v40 = vld [vmem:[%s0 + $0x68] sm:$0xf]
  %v41 = vld [vmem:[%s0 + $0x6c] sm:$0xf]
  %v42 = vld [vmem:[%s0 + $0x70] sm:$0xf]
  %v43 = vld [vmem:[%s0 + $0x74] sm:$0xf]
  %v44 = vld [vmem:[%s0 + $0x78] sm:$0xf]
  %v45 = vld [vmem:[%s0 + $0x7c] sm:$0xf]
  %v46 = vld [vmem:[%s0 + $0x80] sm:$0xf]
  %v47 = vld [vmem:[%s0 + $0x84] sm:$0xf]
  %v48 = vld [vmem:[%s0 + $0x88] sm:$0xf]
  %v49 = vld [vmem:[%s0 + $0x8c] sm:$0xf]
  %v50 = vld [vmem:[%s0 + $0x90] sm:$0xf]
  %v51 = vld [vmem:[%s0 + $0x94] sm:$0xf]
  %v52 = vld [vmem:[%s0 + $0x98] sm:$0xf]
  %v53 = vld [vmem:[%s0 + $0x9c] sm:$0xf]
  %v54 = vld [vmem:[%s0 + $0xa0] sm:$0xf]
  %v55 = vld [vmem:[%s0 + $0xa4] sm:$0xf]
  %v56 = vld [vmem:[%s0 + $0xa8] sm:$0xf]
  %v57 = vld [vmem:[%s0 + $0xac] sm:$0xf]
  %v58 = vld [vmem:[%s0 + $0xb0] sm:$0xf]
  %v59 = vld [vmem:[%s0 + $0xb4] sm:$0xf]
  %v60 = vld [vmem:[%s0 + $0xb8] sm:$0xf]
  %v61 = vld [vmem:[%s0 + $0xbc] sm:$0xf]
  %v62 = vld [vmem:[%s0 + $0xc0] sm:$0xf]
  %v63 = vld [vmem:[%s0 + $0xc4] sm:$0xf]
  %v64 = vld [vmem:[%s0 + $0xc8] sm:$0xf]
  %v65 = vld [vmem:[%s0 + $0xcc] sm:$0xf]
  %v66 = vld [vmem:[%s0 + $0xd0] sm:$0xf]
  %v67 = vld [vmem:[%s0 + $0xd4] sm:$0xf]
  %v68 = vld [vmem:[%s0 + $0xd8] sm:$0xf]
  %v69 = vld [vmem:[%s0 + $0xdc] sm:$0xf]
  %v70 = vld [vmem:[%s0 + $0xe0] sm:$0xf]
  %v71 = vld [vmem:[%s0 + $0xe4] sm:$0xf]
  %v72 = vld [vmem:[%s0 + $0xe8] sm:$0xf]
  %v73 = vld [vmem:[%s0 + $0xec] sm:$0xf]
  %v74 = vld [vmem:[%s0 + $0xf0] sm:$0xf]
  %v75 = vld [vmem:[%s0 + $0xf4] sm:$0xf]
  %v76 = vld [vmem:[%s0 + $0xf8] sm:$0xf]
  %v77 = vld [vmem:[%s0 + $0xfc] sm:$0xf]
  %v78 = vld [vmem:[%s0 + $0x100] sm:$0xf]
  %v79 = vld [vmem:[%s0 + $0x104] sm:$0xf]
  %v80 = vld [vmem:[%s0 + $0x108] sm:$0xf]
  %v81 = vld [vmem:[%s0 + $0x10c] sm:$0xf]
  %v82 = vld [vmem:[%s0 + $0x110] sm:$0xf]
  %v83 = vld [vmem:[%s0 + $0x114] sm:$0xf]
  %v84 = vld [vmem:[%s0 + $0x118] sm:$0xf]
  %v85 = vld [vmem:[%s0 + $0x11c] sm:$0xf]
  %v86 = vld [vmem:[%s0 + $0x120] sm:$0xf]
  %v87 = vld [vmem:[%s0 + $0x124] sm:$0xf]
  %v88 = vld [vmem:[%s0 + $0x128] sm:$0xf]
  %v89 = vld [vmem:[%s0 + $0x12c] sm:$0xf]
  %v90 = vld [vmem:[%s0 + $0x130] sm:$0xf]
  %v91 = vld [vmem:[%s0 + $0x134] sm:$0xf]
  %v92 = vld [vmem:[%s0 + $0x138] sm:$0xf]
  %v93 = vld [vmem:[%s0 + $0x13c] sm:$0xf]
  %v94 = vld [vmem:[%s0 + $0x140] sm:$0xf]
  %v95 = vld [vmem:[%s0 + $0x144] sm:$0xf]
  %v96 = vld [vmem:[%s0 + $0x148] sm:$0xf]
  %v97 = vld [vmem:[%s0 + $0x14c] sm:$0xf]
  %v98 = vld [vmem:[%s0 + $0x150] sm:$0xf]
  %v99 = vld [vmem:[%s0 + $0x154] sm:$0xf]
  %v100 = vld [vmem:[%s0 + $0x158] sm:$0xf]
  %v101 = vld [vmem:[%s0 + $0x15c] sm:$0xf]
  %v102 = vld [vmem:[%s0 + $0x160] sm:$0xf]
  %v103 = vld [vmem:[%s0 + $0x164] sm:$0xf]
  %v104 = vld [vmem:[%s0 + $0x168] sm:$0xf]
  %v105 = vld [vmem:[%s0 + $0x16c] sm:$0xf]
  %v106 = vld [vmem:[%s0 + $0x170] sm:$0xf]
  %v107 = vld [vmem:[%s0 + $0x174] sm:$0xf]
  %v108 = vld [vmem:[%s0 + $0x178] sm:$0xf]
  %v109 = vld [vmem:[%s0 + $0x17c] sm:$0xf]
  %v110 = vld [vmem:[%s0 + $0x180] sm:$0xf]
  %v111 = vld [vmem:[%s0 + $0x184] sm:$0xf]
  %v112 = vld [vmem:[%s0 + $0x188] sm:$0xf]
  %v113 = vld [vmem:[%s0 + $0x18c] sm:$0xf]
  %v114 = vld [vmem:[%s0 + $0x190] sm:$0xf]
  %v115 = vld [vmem:[%s0 + $0x194] sm:$0xf]
  %v116 = vld [vmem:[%s0 + $0x198] sm:$0xf]
  %v117 = vld [vmem:[%s0 + $0x19c] sm:$0xf]
  %v118 = vld [vmem:[%s0 + $0x1a0] sm:$0xf]
  %v119 = vld [vmem:[%s0 + $0x1a4] sm:$0xf]
  %v120 = vld [vmem:[%s0 + $0x1a8] sm:$0xf]
  %v121 = vld [vmem:[%s0 + $0x1ac] sm:$0xf]
  %v122 = vld [vmem:[%s0 + $0x1b0] sm:$0xf]
  %v123 = vld [vmem:[%s0 + $0x1b4] sm:$0xf]
  %v124 = vld [vmem:[%s0 + $0x1b8] sm:$0xf]
  %v125 = vld [vmem:[%s0 + $0x1bc] sm:$0xf]
  %v126 = vld [vmem:[%s0 + $0x1c0] sm:$0xf]
  %v127 = vld [vmem:[%s0 + $0x1c4] sm:$0xf]
  %v128 = vld [vmem:[%s0 + $0x1c8] sm:$0xf]
  %v129 = vld [vmem:[%s0 + $0x1cc] sm:$0xf]
  %v130 = vld [vmem:[%s0 + $0x1d0] sm:$0xf]
  %v131 = vld [vmem:[%s0 + $0x1d4] sm:$0xf]
  %v132 = vld [vmem:[%s0 + $0x1d8] sm:$0xf]
  %v133 = vld [vmem:[%s0 + $0x1dc] sm:$0xf]
  %v134 = vld [vmem:[%s0 + $0x1e0] sm:$0xf]
  %v135 = vld [vmem:[%s0 + $0x1e4] sm:$0xf]
  %v136 = vld [vmem:[%s0 + $0x1e8] sm:$0xf]
  %v137 = vld [vmem:[%s0 + $0x1ec] sm:$0xf]
  %v138 = vld [vmem:[%s0 + $0x1f0] sm:$0xf]
  %v139 = vld [vmem:[%s0 + $0x1f4] sm:$0xf]
  %v140 = vld [vmem:[%s0 + $0x1f8] sm:$0xf]
  %v141 = vld [vmem:[%s0 + $0x1fc] sm:$0xf]
  %v142 = vunpack.c.l.bf16 %v14
  %v143 = vunpack.c.l.bf16 %v15
  %v144 = vunpack.c.l.bf16 %v16
  %v145 = vunpack.c.l.bf16 %v17
  %v146 = vunpack.c.l.bf16 %v18
  %v147 = vunpack.c.l.bf16 %v19
  %v148 = vunpack.c.l.bf16 %v20
  %v149 = vunpack.c.l.bf16 %v21
  %v150 = vunpack.c.l.bf16 %v22
  %v151 = vunpack.c.l.bf16 %v23
  %v152 = vunpack.c.l.bf16 %v24
  %v153 = vunpack.c.l.bf16 %v25
  %v154 = vunpack.c.l.bf16 %v26
  %v155 = vunpack.c.l.bf16 %v27
  %v156 = vunpack.c.l.bf16 %v28
  %v157 = vunpack.c.l.bf16 %v29
  %v158 = vunpack.c.l.bf16 %v30
  %v159 = vunpack.c.l.bf16 %v31
  %v160 = vunpack.c.l.bf16 %v32
  %v161 = vunpack.c.l.bf16 %v33
  %v162 = vunpack.c.l.bf16 %v34
  %v163 = vunpack.c.l.bf16 %v35
  %v164 = vunpack.c.l.bf16 %v36
  %v165 = vunpack.c.l.bf16 %v37
  %v166 = vunpack.c.l.bf16 %v38
  %v167 = vunpack.c.l.bf16 %v39
  %v168 = vunpack.c.l.bf16 %v40
  %v169 = vunpack.c.l.bf16 %v41
  %v170 = vunpack.c.l.bf16 %v42
  %v171 = vunpack.c.l.bf16 %v43
  %v172 = vunpack.c.l.bf16 %v44
  %v173 = vunpack.c.l.bf16 %v45
  %v174 = vunpack.c.l.bf16 %v46
  %v175 = vunpack.c.l.bf16 %v47
  %v176 = vunpack.c.l.bf16 %v48
  %v177 = vunpack.c.l.bf16 %v49
  %v178 = vunpack.c.l.bf16 %v50
  %v179 = vunpack.c.l.bf16 %v51
  %v180 = vunpack.c.l.bf16 %v52
  %v181 = vunpack.c.l.bf16 %v53
  %v182 = vunpack.c.l.bf16 %v54
  %v183 = vunpack.c.l.bf16 %v55
  %v184 = vunpack.c.l.bf16 %v56
  %v185 = vunpack.c.l.bf16 %v57
  %v186 = vunpack.c.l.bf16 %v58
  %v187 = vunpack.c.l.bf16 %v59
  %v188 = vunpack.c.l.bf16 %v60
  %v189 = vunpack.c.l.bf16 %v61
  %v190 = vunpack.c.l.bf16 %v62
  %v191 = vunpack.c.l.bf16 %v63
  %v192 = vunpack.c.l.bf16 %v64
  %v193 = vunpack.c.l.bf16 %v65
  %v194 = vunpack.c.l.bf16 %v66
  %v195 = vunpack.c.l.bf16 %v67
  %v196 = vunpack.c.l.bf16 %v68
  %v197 = vunpack.c.l.bf16 %v69
  %v198 = vunpack.c.l.bf16 %v70
  %v199 = vunpack.c.l.bf16 %v71
  %v200 = vunpack.c.l.bf16 %v72
  %v201 = vunpack.c.l.bf16 %v73
  %v202 = vunpack.c.l.bf16 %v74
  %v203 = vunpack.c.l.bf16 %v75
  %v204 = vunpack.c.l.bf16 %v76
  %v205 = vunpack.c.l.bf16 %v77
  %v206 = vunpack.c.l.bf16 %v78
  %v207 = vunpack.c.l.bf16 %v79
  %v208 = vunpack.c.l.bf16 %v80
  %v209 = vunpack.c.l.bf16 %v81
  %v210 = vunpack.c.l.bf16 %v82
  %v211 = vunpack.c.l.bf16 %v83
  %v212 = vunpack.c.l.bf16 %v84
  %v213 = vunpack.c.l.bf16 %v85
  %v214 = vunpack.c.l.bf16 %v86
  %v215 = vunpack.c.l.bf16 %v87
  %v216 = vunpack.c.l.bf16 %v88
  %v217 = vunpack.c.l.bf16 %v89
  %v218 = vunpack.c.l.bf16 %v90
  %v219 = vunpack.c.l.bf16 %v91
  %v220 = vunpack.c.l.bf16 %v92
  %v221 = vunpack.c.l.bf16 %v93
  %v222 = vunpack.c.l.bf16 %v94
  %v223 = vunpack.c.l.bf16 %v95
  %v224 = vunpack.c.l.bf16 %v96
  %v225 = vunpack.c.l.bf16 %v97
  %v226 = vunpack.c.l.bf16 %v98
  %v227 = vunpack.c.l.bf16 %v99
  %v228 = vunpack.c.l.bf16 %v100
  %v229 = vunpack.c.l.bf16 %v101
  %v230 = vunpack.c.l.bf16 %v102
  %v231 = vunpack.c.l.bf16 %v103
  %v232 = vunpack.c.l.bf16 %v104
  %v233 = vunpack.c.l.bf16 %v105
  %v234 = vunpack.c.l.bf16 %v106
  %v235 = vunpack.c.l.bf16 %v107
  %v236 = vunpack.c.l.bf16 %v108
  %v237 = vunpack.c.l.bf16 %v109
  %v238 = vunpack.c.l.bf16 %v110
  %v239 = vunpack.c.l.bf16 %v111
  %v240 = vunpack.c.l.bf16 %v112
  %v241 = vunpack.c.l.bf16 %v113
  %v242 = vunpack.c.l.bf16 %v114
  %v243 = vunpack.c.l.bf16 %v115
  %v244 = vunpack.c.l.bf16 %v116
  %v245 = vunpack.c.l.bf16 %v117
  %v246 = vunpack.c.l.bf16 %v118
  %v247 = vunpack.c.l.bf16 %v119
  %v248 = vunpack.c.l.bf16 %v120
  %v249 = vunpack.c.l.bf16 %v121
  %v250 = vunpack.c.l.bf16 %v122
  %v251 = vunpack.c.l.bf16 %v123
  %v252 = vunpack.c.l.bf16 %v124
  %v253 = vunpack.c.l.bf16 %v125
  %v254 = vunpack.c.l.bf16 %v126
  %v255 = vunpack.c.l.bf16 %v127
  %v256 = vunpack.c.l.bf16 %v128
  %v257 = vunpack.c.l.bf16 %v129
  %v258 = vunpack.c.l.bf16 %v130
  %v259 = vunpack.c.l.bf16 %v131
  %v260 = vunpack.c.l.bf16 %v132
  %v261 = vunpack.c.l.bf16 %v133
  %v262 = vunpack.c.l.bf16 %v134
  %v263 = vunpack.c.l.bf16 %v135
  %v264 = vunpack.c.l.bf16 %v136
  %v265 = vunpack.c.l.bf16 %v137
  %v266 = vunpack.c.l.bf16 %v138
  %v267 = vunpack.c.l.bf16 %v139
  %v268 = vunpack.c.l.bf16 %v140
  %v269 = vunpack.c.l.bf16 %v141
  %v270 = vld [vmem:[%s1] sm:$0x1]
  %v272 = vperm.slane %v270, 0
  %v274 = vmul.f32 %v142, %v272
  %v275 = vmul.f32 %v143, %v272
  %v276 = vmul.f32 %v144, %v272
  %v277 = vmul.f32 %v145, %v272
  %v278 = vmul.f32 %v146, %v272
  %v279 = vmul.f32 %v147, %v272
  %v280 = vmul.f32 %v148, %v272
  %v281 = vmul.f32 %v149, %v272
  %v282 = vmul.f32 %v150, %v272
  %v283 = vmul.f32 %v151, %v272
  %v284 = vmul.f32 %v152, %v272
  %v285 = vmul.f32 %v153, %v272
  %v286 = vmul.f32 %v154, %v272
  %v287 = vmul.f32 %v155, %v272
  %v288 = vmul.f32 %v156, %v272
  %v289 = vmul.f32 %v157, %v272
  %v290 = vmul.f32 %v158, %v272
  %v291 = vmul.f32 %v159, %v272
  %v292 = vmul.f32 %v160, %v272
  %v293 = vmul.f32 %v161, %v272
  %v294 = vmul.f32 %v162, %v272
  %v295 = vmul.f32 %v163, %v272
  %v296 = vmul.f32 %v164, %v272
  %v297 = vmul.f32 %v165, %v272
  %v298 = vmul.f32 %v166, %v272
  %v299 = vmul.f32 %v167, %v272
  %v300 = vmul.f32 %v168, %v272
  %v301 = vmul.f32 %v169, %v272
  %v302 = vmul.f32 %v170, %v272
  %v303 = vmul.f32 %v171, %v272
  %v304 = vmul.f32 %v172, %v272
  %v305 = vmul.f32 %v173, %v272
  %v306 = vmul.f32 %v174, %v272
  %v307 = vmul.f32 %v175, %v272
  %v308 = vmul.f32 %v176, %v272
  %v309 = vmul.f32 %v177, %v272
  %v310 = vmul.f32 %v178, %v272
  %v311 = vmul.f32 %v179, %v272
  %v312 = vmul.f32 %v180, %v272
  %v313 = vmul.f32 %v181, %v272
  %v314 = vmul.f32 %v182, %v272
  %v315 = vmul.f32 %v183, %v272
  %v316 = vmul.f32 %v184, %v272
  %v317 = vmul.f32 %v185, %v272
  %v318 = vmul.f32 %v186, %v272
  %v319 = vmul.f32 %v187, %v272
  %v320 = vmul.f32 %v188, %v272
  %v321 = vmul.f32 %v189, %v272
  %v322 = vmul.f32 %v190, %v272
  %v323 = vmul.f32 %v191, %v272
  %v324 = vmul.f32 %v192, %v272
  %v325 = vmul.f32 %v193, %v272
  %v326 = vmul.f32 %v194, %v272
  %v327 = vmul.f32 %v195, %v272
  %v328 = vmul.f32 %v196, %v272
  %v329 = vmul.f32 %v197, %v272
  %v330 = vmul.f32 %v198, %v272
  %v331 = vmul.f32 %v199, %v272
  %v332 = vmul.f32 %v200, %v272
  %v333 = vmul.f32 %v201, %v272
  %v334 = vmul.f32 %v202, %v272
  %v335 = vmul.f32 %v203, %v272
  %v336 = vmul.f32 %v204, %v272
  %v337 = vmul.f32 %v205, %v272
  %v338 = vmul.f32 %v206, %v272
  %v339 = vmul.f32 %v207, %v272
  %v340 = vmul.f32 %v208, %v272
  %v341 = vmul.f32 %v209, %v272
  %v342 = vmul.f32 %v210, %v272
  %v343 = vmul.f32 %v211, %v272
  %v344 = vmul.f32 %v212, %v272
  %v345 = vmul.f32 %v213, %v272
  %v346 = vmul.f32 %v214, %v272
  %v347 = vmul.f32 %v215, %v272
  %v348 = vmul.f32 %v216, %v272
  %v349 = vmul.f32 %v217, %v272
  %v350 = vmul.f32 %v218, %v272
  %v351 = vmul.f32 %v219, %v272
  %v352 = vmul.f32 %v220, %v272
  %v353 = vmul.f32 %v221, %v272
  %v354 = vmul.f32 %v222, %v272
  %v355 = vmul.f32 %v223, %v272
  %v356 = vmul.f32 %v224, %v272
  %v357 = vmul.f32 %v225, %v272
  %v358 = vmul.f32 %v226, %v272
  %v359 = vmul.f32 %v227, %v272
  %v360 = vmul.f32 %v228, %v272
  %v361 = vmul.f32 %v229, %v272
  %v362 = vmul.f32 %v230, %v272
  %v363 = vmul.f32 %v231, %v272
  %v364 = vmul.f32 %v232, %v272
  %v365 = vmul.f32 %v233, %v272
  %v366 = vmul.f32 %v234, %v272
  %v367 = vmul.f32 %v235, %v272
  %v368 = vmul.f32 %v236, %v272
  %v369 = vmul.f32 %v237, %v272
  %v370 = vmul.f32 %v238, %v272
  %v371 = vmul.f32 %v239, %v272
  %v372 = vmul.f32 %v240, %v272
  %v373 = vmul.f32 %v241, %v272
  %v374 = vmul.f32 %v242, %v272
  %v375 = vmul.f32 %v243, %v272
  %v376 = vmul.f32 %v244, %v272
  %v377 = vmul.f32 %v245, %v272
  %v378 = vmul.f32 %v246, %v272
  %v379 = vmul.f32 %v247, %v272
  %v380 = vmul.f32 %v248, %v272
  %v381 = vmul.f32 %v249, %v272
  %v382 = vmul.f32 %v250, %v272
  %v383 = vmul.f32 %v251, %v272
  %v384 = vmul.f32 %v252, %v272
  %v385 = vmul.f32 %v253, %v272
  %v386 = vmul.f32 %v254, %v272
  %v387 = vmul.f32 %v255, %v272
  %v388 = vmul.f32 %v256, %v272
  %v389 = vmul.f32 %v257, %v272
  %v390 = vmul.f32 %v258, %v272
  %v391 = vmul.f32 %v259, %v272
  %v392 = vmul.f32 %v260, %v272
  %v393 = vmul.f32 %v261, %v272
  %v394 = vmul.f32 %v262, %v272
  %v395 = vmul.f32 %v263, %v272
  %v396 = vmul.f32 %v264, %v272
  %v397 = vmul.f32 %v265, %v272
  %v398 = vmul.f32 %v266, %v272
  %v399 = vmul.f32 %v267, %v272
  %v400 = vmul.f32 %v268, %v272
  %v401 = vmul.f32 %v269, %v272
  %v402 = vld [vmem:[%s2] sm:$0x1]
  %v404 = vperm.slane %v402, 0
  %v406 = vadd.f32 %v274, %v404
  %v407 = vadd.f32 %v275, %v404
  %v408 = vadd.f32 %v276, %v404
  %v409 = vadd.f32 %v277, %v404
  %v410 = vadd.f32 %v278, %v404
  %v411 = vadd.f32 %v279, %v404
  %v412 = vadd.f32 %v280, %v404
  %v413 = vadd.f32 %v281, %v404
  %v414 = vadd.f32 %v282, %v404
  %v415 = vadd.f32 %v283, %v404
  %v416 = vadd.f32 %v284, %v404
  %v417 = vadd.f32 %v285, %v404
  %v418 = vadd.f32 %v286, %v404
  %v419 = vadd.f32 %v287, %v404
  %v420 = vadd.f32 %v288, %v404
  %v421 = vadd.f32 %v289, %v404
  %v422 = vadd.f32 %v290, %v404
  %v423 = vadd.f32 %v291, %v404
  %v424 = vadd.f32 %v292, %v404
  %v425 = vadd.f32 %v293, %v404
  %v426 = vadd.f32 %v294, %v404
  %v427 = vadd.f32 %v295, %v404
  %v428 = vadd.f32 %v296, %v404
  %v429 = vadd.f32 %v297, %v404
  %v430 = vadd.f32 %v298, %v404
  %v431 = vadd.f32 %v299, %v404
  %v432 = vadd.f32 %v300, %v404
  %v433 = vadd.f32 %v301, %v404
  %v434 = vadd.f32 %v302, %v404
  %v435 = vadd.f32 %v303, %v404
  %v436 = vadd.f32 %v304, %v404
  %v437 = vadd.f32 %v305, %v404
  %v438 = vadd.f32 %v306, %v404
  %v439 = vadd.f32 %v307, %v404
  %v440 = vadd.f32 %v308, %v404
  %v441 = vadd.f32 %v309, %v404
  %v442 = vadd.f32 %v310, %v404
  %v443 = vadd.f32 %v311, %v404
  %v444 = vadd.f32 %v312, %v404
  %v445 = vadd.f32 %v313, %v404
  %v446 = vadd.f32 %v314, %v404
  %v447 = vadd.f32 %v315, %v404
  %v448 = vadd.f32 %v316, %v404
  %v449 = vadd.f32 %v317, %v404
  %v450 = vadd.f32 %v318, %v404
  %v451 = vadd.f32 %v319, %v404
  %v452 = vadd.f32 %v320, %v404
  %v453 = vadd.f32 %v321, %v404
  %v454 = vadd.f32 %v322, %v404
  %v455 = vadd.f32 %v323, %v404
  %v456 = vadd.f32 %v324, %v404
  %v457 = vadd.f32 %v325, %v404
  %v458 = vadd.f32 %v326, %v404
  %v459 = vadd.f32 %v327, %v404
  %v460 = vadd.f32 %v328, %v404
  %v461 = vadd.f32 %v329, %v404
  %v462 = vadd.f32 %v330, %v404
  %v463 = vadd.f32 %v331, %v404
  %v464 = vadd.f32 %v332, %v404
  %v465 = vadd.f32 %v333, %v404
  %v466 = vadd.f32 %v334, %v404
  %v467 = vadd.f32 %v335, %v404
  %v468 = vadd.f32 %v336, %v404
  %v469 = vadd.f32 %v337, %v404
  %v470 = vadd.f32 %v338, %v404
  %v471 = vadd.f32 %v339, %v404
  %v472 = vadd.f32 %v340, %v404
  %v473 = vadd.f32 %v341, %v404
  %v474 = vadd.f32 %v342, %v404
  %v475 = vadd.f32 %v343, %v404
  %v476 = vadd.f32 %v344, %v404
  %v477 = vadd.f32 %v345, %v404
  %v478 = vadd.f32 %v346, %v404
  %v479 = vadd.f32 %v347, %v404
  %v480 = vadd.f32 %v348, %v404
  %v481 = vadd.f32 %v349, %v404
  %v482 = vadd.f32 %v350, %v404
  %v483 = vadd.f32 %v351, %v404
  %v484 = vadd.f32 %v352, %v404
  %v485 = vadd.f32 %v353, %v404
  %v486 = vadd.f32 %v354, %v404
  %v487 = vadd.f32 %v355, %v404
  %v488 = vadd.f32 %v356, %v404
  %v489 = vadd.f32 %v357, %v404
  %v490 = vadd.f32 %v358, %v404
  %v491 = vadd.f32 %v359, %v404
  %v492 = vadd.f32 %v360, %v404
  %v493 = vadd.f32 %v361, %v404
  %v494 = vadd.f32 %v362, %v404
  %v495 = vadd.f32 %v363, %v404
  %v496 = vadd.f32 %v364, %v404
  %v497 = vadd.f32 %v365, %v404
  %v498 = vadd.f32 %v366, %v404
  %v499 = vadd.f32 %v367, %v404
  %v500 = vadd.f32 %v368, %v404
  %v501 = vadd.f32 %v369, %v404
  %v502 = vadd.f32 %v370, %v404
  %v503 = vadd.f32 %v371, %v404
  %v504 = vadd.f32 %v372, %v404
  %v505 = vadd.f32 %v373, %v404
  %v506 = vadd.f32 %v374, %v404
  %v507 = vadd.f32 %v375, %v404
  %v508 = vadd.f32 %v376, %v404
  %v509 = vadd.f32 %v377, %v404
  %v510 = vadd.f32 %v378, %v404
  %v511 = vadd.f32 %v379, %v404
  %v512 = vadd.f32 %v380, %v404
  %v513 = vadd.f32 %v381, %v404
  %v514 = vadd.f32 %v382, %v404
  %v515 = vadd.f32 %v383, %v404
  %v516 = vadd.f32 %v384, %v404
  %v517 = vadd.f32 %v385, %v404
  %v518 = vadd.f32 %v386, %v404
  %v519 = vadd.f32 %v387, %v404
  %v520 = vadd.f32 %v388, %v404
  %v521 = vadd.f32 %v389, %v404
  %v522 = vadd.f32 %v390, %v404
  %v523 = vadd.f32 %v391, %v404
  %v524 = vadd.f32 %v392, %v404
  %v525 = vadd.f32 %v393, %v404
  %v526 = vadd.f32 %v394, %v404
  %v527 = vadd.f32 %v395, %v404
  %v528 = vadd.f32 %v396, %v404
  %v529 = vadd.f32 %v397, %v404
  %v530 = vadd.f32 %v398, %v404
  %v531 = vadd.f32 %v399, %v404
  %v532 = vadd.f32 %v400, %v404
  %v533 = vadd.f32 %v401, %v404
  %v534 = vmax.f32 %v406, 0.0
  %v535 = vmax.f32 %v407, 0.0
  %v536 = vmax.f32 %v408, 0.0
  %v537 = vmax.f32 %v409, 0.0
  %v538 = vmax.f32 %v410, 0.0
  %v539 = vmax.f32 %v411, 0.0
  %v540 = vmax.f32 %v412, 0.0
  %v541 = vmax.f32 %v413, 0.0
  %v542 = vmax.f32 %v414, 0.0
  %v543 = vmax.f32 %v415, 0.0
  %v544 = vmax.f32 %v416, 0.0
  %v545 = vmax.f32 %v417, 0.0
  %v546 = vmax.f32 %v418, 0.0
  %v547 = vmax.f32 %v419, 0.0
  %v548 = vmax.f32 %v420, 0.0
  %v549 = vmax.f32 %v421, 0.0
  %v550 = vmax.f32 %v422, 0.0
  %v551 = vmax.f32 %v423, 0.0
  %v552 = vmax.f32 %v424, 0.0
  %v553 = vmax.f32 %v425, 0.0
  %v554 = vmax.f32 %v426, 0.0
  %v555 = vmax.f32 %v427, 0.0
  %v556 = vmax.f32 %v428, 0.0
  %v557 = vmax.f32 %v429, 0.0
  %v558 = vmax.f32 %v430, 0.0
  %v559 = vmax.f32 %v431, 0.0
  %v560 = vmax.f32 %v432, 0.0
  %v561 = vmax.f32 %v433, 0.0
  %v562 = vmax.f32 %v434, 0.0
  %v563 = vmax.f32 %v435, 0.0
  %v564 = vmax.f32 %v436, 0.0
  %v565 = vmax.f32 %v437, 0.0
  %v566 = vmax.f32 %v438, 0.0
  %v567 = vmax.f32 %v439, 0.0
  %v568 = vmax.f32 %v440, 0.0
  %v569 = vmax.f32 %v441, 0.0
  %v570 = vmax.f32 %v442, 0.0
  %v571 = vmax.f32 %v443, 0.0
  %v572 = vmax.f32 %v444, 0.0
  %v573 = vmax.f32 %v445, 0.0
  %v574 = vmax.f32 %v446, 0.0
  %v575 = vmax.f32 %v447, 0.0
  %v576 = vmax.f32 %v448, 0.0
  %v577 = vmax.f32 %v449, 0.0
  %v578 = vmax.f32 %v450, 0.0
  %v579 = vmax.f32 %v451, 0.0
  %v580 = vmax.f32 %v452, 0.0
  %v581 = vmax.f32 %v453, 0.0
  %v582 = vmax.f32 %v454, 0.0
  %v583 = vmax.f32 %v455, 0.0
  %v584 = vmax.f32 %v456, 0.0
  %v585 = vmax.f32 %v457, 0.0
  %v586 = vmax.f32 %v458, 0.0
  %v587 = vmax.f32 %v459, 0.0
  %v588 = vmax.f32 %v460, 0.0
  %v589 = vmax.f32 %v461, 0.0
  %v590 = vmax.f32 %v462, 0.0
  %v591 = vmax.f32 %v463, 0.0
  %v592 = vmax.f32 %v464, 0.0
  %v593 = vmax.f32 %v465, 0.0
  %v594 = vmax.f32 %v466, 0.0
  %v595 = vmax.f32 %v467, 0.0
  %v596 = vmax.f32 %v468, 0.0
  %v597 = vmax.f32 %v469, 0.0
  %v598 = vmax.f32 %v470, 0.0
  %v599 = vmax.f32 %v471, 0.0
  %v600 = vmax.f32 %v472, 0.0
  %v601 = vmax.f32 %v473, 0.0
  %v602 = vmax.f32 %v474, 0.0
  %v603 = vmax.f32 %v475, 0.0
  %v604 = vmax.f32 %v476, 0.0
  %v605 = vmax.f32 %v477, 0.0
  %v606 = vmax.f32 %v478, 0.0
  %v607 = vmax.f32 %v479, 0.0
  %v608 = vmax.f32 %v480, 0.0
  %v609 = vmax.f32 %v481, 0.0
  %v610 = vmax.f32 %v482, 0.0
  %v611 = vmax.f32 %v483, 0.0
  %v612 = vmax.f32 %v484, 0.0
  %v613 = vmax.f32 %v485, 0.0
  %v614 = vmax.f32 %v486, 0.0
  %v615 = vmax.f32 %v487, 0.0
  %v616 = vmax.f32 %v488, 0.0
  %v617 = vmax.f32 %v489, 0.0
  %v618 = vmax.f32 %v490, 0.0
  %v619 = vmax.f32 %v491, 0.0
  %v620 = vmax.f32 %v492, 0.0
  %v621 = vmax.f32 %v493, 0.0
  %v622 = vmax.f32 %v494, 0.0
  %v623 = vmax.f32 %v495, 0.0
  %v624 = vmax.f32 %v496, 0.0
  %v625 = vmax.f32 %v497, 0.0
  %v626 = vmax.f32 %v498, 0.0
  %v627 = vmax.f32 %v499, 0.0
  %v628 = vmax.f32 %v500, 0.0
  %v629 = vmax.f32 %v501, 0.0
  %v630 = vmax.f32 %v502, 0.0
  %v631 = vmax.f32 %v503, 0.0
  %v632 = vmax.f32 %v504, 0.0
  %v633 = vmax.f32 %v505, 0.0
  %v634 = vmax.f32 %v506, 0.0
  %v635 = vmax.f32 %v507, 0.0
  %v636 = vmax.f32 %v508, 0.0
  %v637 = vmax.f32 %v509, 0.0
  %v638 = vmax.f32 %v510, 0.0
  %v639 = vmax.f32 %v511, 0.0
  %v640 = vmax.f32 %v512, 0.0
  %v641 = vmax.f32 %v513, 0.0
  %v642 = vmax.f32 %v514, 0.0
  %v643 = vmax.f32 %v515, 0.0
  %v644 = vmax.f32 %v516, 0.0
  %v645 = vmax.f32 %v517, 0.0
  %v646 = vmax.f32 %v518, 0.0
  %v647 = vmax.f32 %v519, 0.0
  %v648 = vmax.f32 %v520, 0.0
  %v649 = vmax.f32 %v521, 0.0
  %v650 = vmax.f32 %v522, 0.0
  %v651 = vmax.f32 %v523, 0.0
  %v652 = vmax.f32 %v524, 0.0
  %v653 = vmax.f32 %v525, 0.0
  %v654 = vmax.f32 %v526, 0.0
  %v655 = vmax.f32 %v527, 0.0
  %v656 = vmax.f32 %v528, 0.0
  %v657 = vmax.f32 %v529, 0.0
  %v658 = vmax.f32 %v530, 0.0
  %v659 = vmax.f32 %v531, 0.0
  %v660 = vmax.f32 %v532, 0.0
  %v661 = vmax.f32 %v533, 0.0
  %vm662 = vcmask 64512
  %663 = vst.msk [vmem:[%s3] sm:$0xff] %vm662, %v534
  %664 = vst.msk [vmem:[%s3 + $0x8] sm:$0xff] %vm662, %v535
  %665 = vst.msk [vmem:[%s3 + $0x10] sm:$0xff] %vm662, %v536
  %666 = vst.msk [vmem:[%s3 + $0x18] sm:$0xff] %vm662, %v537
  %667 = vst.msk [vmem:[%s3 + $0x20] sm:$0xff] %vm662, %v538
  %668 = vst.msk [vmem:[%s3 + $0x28] sm:$0xff] %vm662, %v539
  %669 = vst.msk [vmem:[%s3 + $0x30] sm:$0xff] %vm662, %v540
  %670 = vst.msk [vmem:[%s3 + $0x38] sm:$0xff] %vm662, %v541
  %671 = vst.msk [vmem:[%s3 + $0x40] sm:$0xff] %vm662, %v542
  %672 = vst.msk [vmem:[%s3 + $0x48] sm:$0xff] %vm662, %v543
  %673 = vst.msk [vmem:[%s3 + $0x50] sm:$0xff] %vm662, %v544
  %674 = vst.msk [vmem:[%s3 + $0x58] sm:$0xff] %vm662, %v545
  %675 = vst.msk [vmem:[%s3 + $0x60] sm:$0xff] %vm662, %v546
  %676 = vst.msk [vmem:[%s3 + $0x68] sm:$0xff] %vm662, %v547
  %677 = vst.msk [vmem:[%s3 + $0x70] sm:$0xff] %vm662, %v548
  %678 = vst.msk [vmem:[%s3 + $0x78] sm:$0xff] %vm662, %v549
  %679 = vst.msk [vmem:[%s3 + $0x80] sm:$0xff] %vm662, %v550
  %680 = vst.msk [vmem:[%s3 + $0x88] sm:$0xff] %vm662, %v551
  %681 = vst.msk [vmem:[%s3 + $0x90] sm:$0xff] %vm662, %v552
  %682 = vst.msk [vmem:[%s3 + $0x98] sm:$0xff] %vm662, %v553
  %683 = vst.msk [vmem:[%s3 + $0xa0] sm:$0xff] %vm662, %v554
  %684 = vst.msk [vmem:[%s3 + $0xa8] sm:$0xff] %vm662, %v555
  %685 = vst.msk [vmem:[%s3 + $0xb0] sm:$0xff] %vm662, %v556
  %686 = vst.msk [vmem:[%s3 + $0xb8] sm:$0xff] %vm662, %v557
  %687 = vst.msk [vmem:[%s3 + $0xc0] sm:$0xff] %vm662, %v558
  %688 = vst.msk [vmem:[%s3 + $0xc8] sm:$0xff] %vm662, %v559
  %689 = vst.msk [vmem:[%s3 + $0xd0] sm:$0xff] %vm662, %v560
  %690 = vst.msk [vmem:[%s3 + $0xd8] sm:$0xff] %vm662, %v561
  %691 = vst.msk [vmem:[%s3 + $0xe0] sm:$0xff] %vm662, %v562
  %692 = vst.msk [vmem:[%s3 + $0xe8] sm:$0xff] %vm662, %v563
  %693 = vst.msk [vmem:[%s3 + $0xf0] sm:$0xff] %vm662, %v564
  %694 = vst.msk [vmem:[%s3 + $0xf8] sm:$0xff] %vm662, %v565
  %695 = vst.msk [vmem:[%s3 + $0x100] sm:$0xff] %vm662, %v566
  %696 = vst.msk [vmem:[%s3 + $0x108] sm:$0xff] %vm662, %v567
  %697 = vst.msk [vmem:[%s3 + $0x110] sm:$0xff] %vm662, %v568
  %698 = vst.msk [vmem:[%s3 + $0x118] sm:$0xff] %vm662, %v569
  %699 = vst.msk [vmem:[%s3 + $0x120] sm:$0xff] %vm662, %v570
  %700 = vst.msk [vmem:[%s3 + $0x128] sm:$0xff] %vm662, %v571
  %701 = vst.msk [vmem:[%s3 + $0x130] sm:$0xff] %vm662, %v572
  %702 = vst.msk [vmem:[%s3 + $0x138] sm:$0xff] %vm662, %v573
  %703 = vst.msk [vmem:[%s3 + $0x140] sm:$0xff] %vm662, %v574
  %704 = vst.msk [vmem:[%s3 + $0x148] sm:$0xff] %vm662, %v575
  %705 = vst.msk [vmem:[%s3 + $0x150] sm:$0xff] %vm662, %v576
  %706 = vst.msk [vmem:[%s3 + $0x158] sm:$0xff] %vm662, %v577
  %707 = vst.msk [vmem:[%s3 + $0x160] sm:$0xff] %vm662, %v578
  %708 = vst.msk [vmem:[%s3 + $0x168] sm:$0xff] %vm662, %v579
  %709 = vst.msk [vmem:[%s3 + $0x170] sm:$0xff] %vm662, %v580
  %710 = vst.msk [vmem:[%s3 + $0x178] sm:$0xff] %vm662, %v581
  %711 = vst.msk [vmem:[%s3 + $0x180] sm:$0xff] %vm662, %v582
  %712 = vst.msk [vmem:[%s3 + $0x188] sm:$0xff] %vm662, %v583
  %713 = vst.msk [vmem:[%s3 + $0x190] sm:$0xff] %vm662, %v584
  %714 = vst.msk [vmem:[%s3 + $0x198] sm:$0xff] %vm662, %v585
  %715 = vst.msk [vmem:[%s3 + $0x1a0] sm:$0xff] %vm662, %v586
  %716 = vst.msk [vmem:[%s3 + $0x1a8] sm:$0xff] %vm662, %v587
  %717 = vst.msk [vmem:[%s3 + $0x1b0] sm:$0xff] %vm662, %v588
  %718 = vst.msk [vmem:[%s3 + $0x1b8] sm:$0xff] %vm662, %v589
  %719 = vst.msk [vmem:[%s3 + $0x1c0] sm:$0xff] %vm662, %v590
  %720 = vst.msk [vmem:[%s3 + $0x1c8] sm:$0xff] %vm662, %v591
  %721 = vst.msk [vmem:[%s3 + $0x1d0] sm:$0xff] %vm662, %v592
  %722 = vst.msk [vmem:[%s3 + $0x1d8] sm:$0xff] %vm662, %v593
  %723 = vst.msk [vmem:[%s3 + $0x1e0] sm:$0xff] %vm662, %v594
  %724 = vst.msk [vmem:[%s3 + $0x1e8] sm:$0xff] %vm662, %v595
  %725 = vst.msk [vmem:[%s3 + $0x1f0] sm:$0xff] %vm662, %v596
  %726 = vst.msk [vmem:[%s3 + $0x1f8] sm:$0xff] %vm662, %v597
  %727 = vst.msk [vmem:[%s3 + $0x200] sm:$0xff] %vm662, %v598
  %728 = vst.msk [vmem:[%s3 + $0x208] sm:$0xff] %vm662, %v599
  %729 = vst.msk [vmem:[%s3 + $0x210] sm:$0xff] %vm662, %v600
  %730 = vst.msk [vmem:[%s3 + $0x218] sm:$0xff] %vm662, %v601
  %731 = vst.msk [vmem:[%s3 + $0x220] sm:$0xff] %vm662, %v602
  %732 = vst.msk [vmem:[%s3 + $0x228] sm:$0xff] %vm662, %v603
  %733 = vst.msk [vmem:[%s3 + $0x230] sm:$0xff] %vm662, %v604
  %734 = vst.msk [vmem:[%s3 + $0x238] sm:$0xff] %vm662, %v605
  %735 = vst.msk [vmem:[%s3 + $0x240] sm:$0xff] %vm662, %v606
  %736 = vst.msk [vmem:[%s3 + $0x248] sm:$0xff] %vm662, %v607
  %737 = vst.msk [vmem:[%s3 + $0x250] sm:$0xff] %vm662, %v608
  %738 = vst.msk [vmem:[%s3 + $0x258] sm:$0xff] %vm662, %v609
  %739 = vst.msk [vmem:[%s3 + $0x260] sm:$0xff] %vm662, %v610
  %740 = vst.msk [vmem:[%s3 + $0x268] sm:$0xff] %vm662, %v611
  %741 = vst.msk [vmem:[%s3 + $0x270] sm:$0xff] %vm662, %v612
  %742 = vst.msk [vmem:[%s3 + $0x278] sm:$0xff] %vm662, %v613
  %743 = vst.msk [vmem:[%s3 + $0x280] sm:$0xff] %vm662, %v614
  %744 = vst.msk [vmem:[%s3 + $0x288] sm:$0xff] %vm662, %v615
  %745 = vst.msk [vmem:[%s3 + $0x290] sm:$0xff] %vm662, %v616
  %746 = vst.msk [vmem:[%s3 + $0x298] sm:$0xff] %vm662, %v617
  %747 = vst.msk [vmem:[%s3 + $0x2a0] sm:$0xff] %vm662, %v618
  %748 = vst.msk [vmem:[%s3 + $0x2a8] sm:$0xff] %vm662, %v619
  %749 = vst.msk [vmem:[%s3 + $0x2b0] sm:$0xff] %vm662, %v620
  %750 = vst.msk [vmem:[%s3 + $0x2b8] sm:$0xff] %vm662, %v621
  %751 = vst.msk [vmem:[%s3 + $0x2c0] sm:$0xff] %vm662, %v622
  %752 = vst.msk [vmem:[%s3 + $0x2c8] sm:$0xff] %vm662, %v623
  %753 = vst.msk [vmem:[%s3 + $0x2d0] sm:$0xff] %vm662, %v624
  %754 = vst.msk [vmem:[%s3 + $0x2d8] sm:$0xff] %vm662, %v625
  %755 = vst.msk [vmem:[%s3 + $0x2e0] sm:$0xff] %vm662, %v626
  %756 = vst.msk [vmem:[%s3 + $0x2e8] sm:$0xff] %vm662, %v627
  %757 = vst.msk [vmem:[%s3 + $0x2f0] sm:$0xff] %vm662, %v628
  %758 = vst.msk [vmem:[%s3 + $0x2f8] sm:$0xff] %vm662, %v629
  %759 = vst.msk [vmem:[%s3 + $0x300] sm:$0xff] %vm662, %v630
  %760 = vst.msk [vmem:[%s3 + $0x308] sm:$0xff] %vm662, %v631
  %761 = vst.msk [vmem:[%s3 + $0x310] sm:$0xff] %vm662, %v632
  %762 = vst.msk [vmem:[%s3 + $0x318] sm:$0xff] %vm662, %v633
  %763 = vst.msk [vmem:[%s3 + $0x320] sm:$0xff] %vm662, %v634
  %764 = vst.msk [vmem:[%s3 + $0x328] sm:$0xff] %vm662, %v635
  %765 = vst.msk [vmem:[%s3 + $0x330] sm:$0xff] %vm662, %v636
  %766 = vst.msk [vmem:[%s3 + $0x338] sm:$0xff] %vm662, %v637
  %767 = vst.msk [vmem:[%s3 + $0x340] sm:$0xff] %vm662, %v638
  %768 = vst.msk [vmem:[%s3 + $0x348] sm:$0xff] %vm662, %v639
  %769 = vst.msk [vmem:[%s3 + $0x350] sm:$0xff] %vm662, %v640
  %770 = vst.msk [vmem:[%s3 + $0x358] sm:$0xff] %vm662, %v641
  %771 = vst.msk [vmem:[%s3 + $0x360] sm:$0xff] %vm662, %v642
  %772 = vst.msk [vmem:[%s3 + $0x368] sm:$0xff] %vm662, %v643
  %773 = vst.msk [vmem:[%s3 + $0x370] sm:$0xff] %vm662, %v644
  %774 = vst.msk [vmem:[%s3 + $0x378] sm:$0xff] %vm662, %v645
  %775 = vst.msk [vmem:[%s3 + $0x380] sm:$0xff] %vm662, %v646
  %776 = vst.msk [vmem:[%s3 + $0x388] sm:$0xff] %vm662, %v647
  %777 = vst.msk [vmem:[%s3 + $0x390] sm:$0xff] %vm662, %v648
  %778 = vst.msk [vmem:[%s3 + $0x398] sm:$0xff] %vm662, %v649
  %779 = vst.msk [vmem:[%s3 + $0x3a0] sm:$0xff] %vm662, %v650
  %780 = vst.msk [vmem:[%s3 + $0x3a8] sm:$0xff] %vm662, %v651
  %781 = vst.msk [vmem:[%s3 + $0x3b0] sm:$0xff] %vm662, %v652
  %782 = vst.msk [vmem:[%s3 + $0x3b8] sm:$0xff] %vm662, %v653
  %783 = vst.msk [vmem:[%s3 + $0x3c0] sm:$0xff] %vm662, %v654
  %784 = vst.msk [vmem:[%s3 + $0x3c8] sm:$0xff] %vm662, %v655
  %785 = vst.msk [vmem:[%s3 + $0x3d0] sm:$0xff] %vm662, %v656
  %786 = vst.msk [vmem:[%s3 + $0x3d8] sm:$0xff] %vm662, %v657
  %787 = vst.msk [vmem:[%s3 + $0x3e0] sm:$0xff] %vm662, %v658
  %788 = vst.msk [vmem:[%s3 + $0x3e8] sm:$0xff] %vm662, %v659
  %789 = vst.msk [vmem:[%s3 + $0x3f0] sm:$0xff] %vm662, %v660
  %790 = vst.msk [vmem:[%s3 + $0x3f8] sm:$0xff] %vm662, %v661
  // Predicated region
  $region14: #{conv_block_forward.7} parent=0 // pred_check
    _
  $region15: #{conv_block_forward.7} parent=0 // pred_check_branch
    %792 = sbr.rel (0) target = $region17
  $region16: #{conv_block_forward.7} parent=0 // pred_region
    _
  $region17: #{conv_block_forward.7} parent=0 // pred_fallthru
    _
  // Predicated region
  $region18: #{conv_block_forward.7} parent=0 // pred_check
    _
  $region19: #{conv_block_forward.7} parent=0 // pred_check_branch
    %794 = sbr.rel (0) target = $region21
  $region20: #{conv_block_forward.7} parent=0 // pred_region
    _
  $region21: #{conv_block_forward.7} parent=0 // pred_fallthru
    _

</llo_original>
